<compile_context>
chip_gen: v5e
topology: v5e:2x2
jax: 0.10.0
libtpu: 0.0.40
codegen_flags: <defaults>
</compile_context>

<pallas_src>
import jax
import jax.numpy as jnp
from jax.experimental import pallas as pl
from jax.experimental.pallas import tpu as pltpu

LAYER_SIZES = [1024, 1024, 512, 256, 128, 1000]
PADDED_LAST = 1024  # lane-dense final width (1000 -> 1024), sliced off in wrapper


def mlp_kernel(x_ref,
               w1, b1, w2, b2, w3, b3, w4, b4, w5, b5, w6, b6,
               o_ref):
    """Fused 6-layer MLP with ReLU after every layer.

    bf16 weight tiles go straight to the MXU (no f32 weight copies in VMEM);
    activations are cast to bf16 only at the MXU feed; accumulation, bias add
    and ReLU are f32 (correct MXU accumulate + v5e-friendly elementwise)."""
    h = x_ref[...]                                   # f32 activations
    for w_ref, b_ref in ((w1, b1), (w2, b2), (w3, b3),
                         (w4, b4), (w5, b5), (w6, b6)):
        h = jnp.dot(h.astype(jnp.bfloat16), w_ref[...],   # bf16 x bf16 -> MXU
                    preferred_element_type=jnp.float32)    # f32 accumulate
        h = h + b_ref[...]          # [1, out] broadcasts over the batch rows
        h = jnp.maximum(h, 0.0)     # ReLU on VPU (f32)
    o_ref[...] = h.astype(o_ref.dtype)


def _resident_spec(shape):
    """Full-array block pinned to block (0, 0): stays VMEM-resident across all
    M tiles.  Single-buffered -- the block never changes, so the default
    double buffer would only waste VMEM."""
    try:
        return pl.BlockSpec(shape, lambda i: (0, 0),
                            pipeline_mode=pl.Buffered(1))
    except TypeError:   # older Pallas without pipeline_mode on BlockSpec
        return pl.BlockSpec(shape, lambda i: (0, 0))


def mlps_for_reprogram(x, params):
    """x: [B, H] float32; params: list of (W [in,out] f32, b [1,out] f32)."""
    B, H = x.shape

    # --- prepare weights: bf16 stream, last layer padded to 1024 lanes ------
    flat = []
    for li, (w, b) in enumerate(params):
        if li == len(params) - 1 and w.shape[1] != PADDED_LAST:
            pad = PADDED_LAST - w.shape[1]
            w = jnp.pad(w, ((0, 0), (0, pad)))   # zero cols -> zero outputs
            b = jnp.pad(b, ((0, 0), (0, pad)))
        flat.append(w.astype(jnp.bfloat16))      # weight stream in bf16
        flat.append(b.astype(jnp.float32))       # biases tiny; keep f32

    # --- tile the batch/M dimension ------------------------------------------
    if B <= 512:
        B_pad = max(8, -(-B // 8) * 8)           # round up to sublane multiple
        TM = B_pad                               # single tile
    else:
        TM = 512                                 # big tile: MXU stays full
        B_pad = -(-B // TM) * TM
    if B_pad != B:
        x = jnp.pad(x, ((0, B_pad - B), (0, 0)))
    grid_m = B_pad // TM

    in_specs = [pl.BlockSpec((TM, H), lambda i: (i, 0))]
    for arr in flat:
        in_specs.append(_resident_spec(arr.shape))
    out_spec = pl.BlockSpec((TM, PADDED_LAST), lambda i: (i, 0))

    # Megacore-shard M only when per-core compute outweighs duplicating the
    # ~3.8 MiB weight fetch on v7x's two TensorCores (weight-DMA-bound regime).
    dim_sem = ("parallel",) if B_pad >= 2048 else ("arbitrary",)

    # --- advisory cost estimate (DMA-bound at small B) ------------------------
    dims = [(H, LAYER_SIZES[0])] + list(zip(LAYER_SIZES[:-1], LAYER_SIZES[1:]))
    flops = 2 * B_pad * sum(a * b for a, b in dims)
    bytes_accessed = (sum(int(a.size) * a.dtype.itemsize for a in flat)
                      + int(x.size) * x.dtype.itemsize
                      + B_pad * PADDED_LAST * 4)
    cost = pl.CostEstimate(flops=flops, transcendentals=0,
                           bytes_accessed=bytes_accessed)

    vmem_limit = (24 << 20) if TM <= 256 else (32 << 20)   # v7x-safe either way

    out = pl.pallas_call(
        mlp_kernel,
        out_shape=jax.ShapeDtypeStruct((B_pad, PADDED_LAST), jnp.float32),
        grid_spec=pltpu.PrefetchScalarGridSpec(
            num_scalar_prefetch=0,
            grid=(grid_m,),
            in_specs=in_specs,
            out_specs=out_spec),
        compiler_params=pltpu.CompilerParams(
            dimension_semantics=dim_sem,
            vmem_limit_bytes=vmem_limit),
        cost_estimate=cost,
    )(x, *flat)

    return out[:B, :LAYER_SIZES[-1]]


def init_params(key, H):
    """Deterministic init matching the nn.Linear shapes of the module."""
    params = []
    in_dim = H
    for out_dim in LAYER_SIZES:
        key, kw, kb = jax.random.split(key, 3)
        bound = 1.0 / jnp.sqrt(in_dim)
        w = jax.random.uniform(kw, (in_dim, out_dim), jnp.float32, -bound, bound)
        b = jax.random.uniform(kb, (1, out_dim), jnp.float32, -bound, bound)
        params.append((w, b))
        in_dim = out_dim
    return params


if __name__ == "__main__":
    H = 32     # hidden size fed to the module
    B = 8      # small batch of bert_tensor rows

    key = jax.random.PRNGKey(0)
    key, kx = jax.random.split(key)
    x = jax.random.normal(kx, (B, H), jnp.float32)
    params = init_params(key, H)

    out = mlps_for_reprogram(x, params)
    out = jax.block_until_ready(out)
    assert out.shape == (B, LAYER_SIZES[-1])

    # Tight check: reference applies the SAME quantization as the kernel
    # (bf16 operands at the MXU feed, f32 accumulate, f32 bias/ReLU).
    ref_q = x
    for w, b in params:
        ref_q = jnp.maximum(
            jnp.dot(ref_q.astype(jnp.bfloat16), w.astype(jnp.bfloat16),
                    preferred_element_type=jnp.float32) + b, 0.0)
    assert jnp.allclose(out, ref_q, atol=2e-3, rtol=2e-3)

    # Loose sanity check against the full-precision f32 reference
    # (the math of the original PyTorch module).
    ref_f = x
    for w, b in params:
        ref_f = jnp.maximum(ref_f @ w + b, 0.0)
    assert jnp.allclose(out, ref_f, atol=1e-1, rtol=1e-1)

    print("KERNEL_OK")
</pallas_src>

<mosaic_0001>
module attributes {stable_mosaic.version = 11 : i64} {
  func.func @mlp_kernel(%arg0: i32, %arg1: memref<8x32xf32, #tpu.memory_space<vmem>>, %arg2: memref<32x1024xbf16, #tpu.memory_space<vmem>>, %arg3: memref<1x1024xf32, #tpu.memory_space<vmem>>, %arg4: memref<1024x1024xbf16, #tpu.memory_space<vmem>>, %arg5: memref<1x1024xf32, #tpu.memory_space<vmem>>, %arg6: memref<1024x512xbf16, #tpu.memory_space<vmem>>, %arg7: memref<1x512xf32, #tpu.memory_space<vmem>>, %arg8: memref<512x256xbf16, #tpu.memory_space<vmem>>, %arg9: memref<1x256xf32, #tpu.memory_space<vmem>>, %arg10: memref<256x128xbf16, #tpu.memory_space<vmem>>, %arg11: memref<1x128xf32, #tpu.memory_space<vmem>>, %arg12: memref<128x1024xbf16, #tpu.memory_space<vmem>>, %arg13: memref<1x1024xf32, #tpu.memory_space<vmem>>, %arg14: memref<8x1024xf32, #tpu.memory_space<vmem>>) attributes {dimension_semantics = [#tpu.dimension_semantics<arbitrary>], iteration_bounds = array<i64: 1>, scalar_prefetch = 0 : i64, scratch_operands = 0 : i64, tpu.core_type = #tpu.core_type<tc>, window_params = [{transform_indices = @transform_0, window_bounds = array<i64: 8, 32>}, {pipeline_mode = #tpu.pipeline_mode<synchronous>, transform_indices = @transform_1, window_bounds = array<i64: 32, 1024>}, {pipeline_mode = #tpu.pipeline_mode<synchronous>, transform_indices = @transform_2, window_bounds = array<i64: 1, 1024>}, {pipeline_mode = #tpu.pipeline_mode<synchronous>, transform_indices = @transform_3, window_bounds = array<i64: 1024, 1024>}, {pipeline_mode = #tpu.pipeline_mode<synchronous>, transform_indices = @transform_4, window_bounds = array<i64: 1, 1024>}, {pipeline_mode = #tpu.pipeline_mode<synchronous>, transform_indices = @transform_5, window_bounds = array<i64: 1024, 512>}, {pipeline_mode = #tpu.pipeline_mode<synchronous>, transform_indices = @transform_6, window_bounds = array<i64: 1, 512>}, {pipeline_mode = #tpu.pipeline_mode<synchronous>, transform_indices = @transform_7, window_bounds = array<i64: 512, 256>}, {pipeline_mode = #tpu.pipeline_mode<synchronous>, transform_indices = @transform_8, window_bounds = array<i64: 1, 256>}, {pipeline_mode = #tpu.pipeline_mode<synchronous>, transform_indices = @transform_9, window_bounds = array<i64: 256, 128>}, {pipeline_mode = #tpu.pipeline_mode<synchronous>, transform_indices = @transform_10, window_bounds = array<i64: 1, 128>}, {pipeline_mode = #tpu.pipeline_mode<synchronous>, transform_indices = @transform_11, window_bounds = array<i64: 128, 1024>}, {pipeline_mode = #tpu.pipeline_mode<synchronous>, transform_indices = @transform_12, window_bounds = array<i64: 1, 1024>}, {transform_indices = @transform_13, window_bounds = array<i64: 8, 1024>}]} {
    %c0 = arith.constant 0 : index
    %c0_0 = arith.constant 0 : index
    %0 = vector.load %arg1[%c0, %c0_0] : memref<8x32xf32, #tpu.memory_space<vmem>>, vector<8x32xf32>
    %1 = arith.truncf %0 : vector<8x32xf32> to vector<8x32xbf16>
    %c0_1 = arith.constant 0 : index
    %c0_2 = arith.constant 0 : index
    %2 = vector.load %arg2[%c0_1, %c0_2] : memref<32x1024xbf16, #tpu.memory_space<vmem>>, vector<32x1024xbf16>
    %cst = arith.constant dense<0.000000e+00> : vector<8x1024xf32>
    %3 = tpu.matmul %1, %2, %cst {dimension_numbers = #tpu.dot_dimension_numbers<[1], [0], [0], [1], [0, 0, 1, 1], [], []>} : vector<8x32xbf16>, vector<32x1024xbf16>, vector<8x1024xf32> -> vector<8x1024xf32>
    %c0_3 = arith.constant 0 : index
    %c0_4 = arith.constant 0 : index
    %4 = vector.load %arg3[%c0_3, %c0_4] : memref<1x1024xf32, #tpu.memory_space<vmem>>, vector<1x1024xf32>
    %5 = vector.broadcast %4 : vector<1x1024xf32> to vector<8x1024xf32>
    %6 = arith.addf %3, %5 : vector<8x1024xf32>
    %cst_5 = arith.constant 0.000000e+00 : f32
    %7 = vector.broadcast %cst_5 : f32 to vector<8x1024xf32>
    %8 = arith.maximumf %6, %7 : vector<8x1024xf32>
    %9 = arith.truncf %8 : vector<8x1024xf32> to vector<8x1024xbf16>
    %c0_6 = arith.constant 0 : index
    %c0_7 = arith.constant 0 : index
    %10 = vector.load %arg4[%c0_6, %c0_7] : memref<1024x1024xbf16, #tpu.memory_space<vmem>>, vector<1024x1024xbf16>
    %cst_8 = arith.constant dense<0.000000e+00> : vector<8x1024xf32>
    %11 = tpu.matmul %9, %10, %cst_8 {dimension_numbers = #tpu.dot_dimension_numbers<[1], [0], [0], [1], [0, 0, 1, 1], [], []>} : vector<8x1024xbf16>, vector<1024x1024xbf16>, vector<8x1024xf32> -> vector<8x1024xf32>
    %c0_9 = arith.constant 0 : index
    %c0_10 = arith.constant 0 : index
    %12 = vector.load %arg5[%c0_9, %c0_10] : memref<1x1024xf32, #tpu.memory_space<vmem>>, vector<1x1024xf32>
    %13 = vector.broadcast %12 : vector<1x1024xf32> to vector<8x1024xf32>
    %14 = arith.addf %11, %13 : vector<8x1024xf32>
    %cst_11 = arith.constant 0.000000e+00 : f32
    %15 = vector.broadcast %cst_11 : f32 to vector<8x1024xf32>
    %16 = arith.maximumf %14, %15 : vector<8x1024xf32>
    %17 = arith.truncf %16 : vector<8x1024xf32> to vector<8x1024xbf16>
    %c0_12 = arith.constant 0 : index
    %c0_13 = arith.constant 0 : index
    %18 = vector.load %arg6[%c0_12, %c0_13] : memref<1024x512xbf16, #tpu.memory_space<vmem>>, vector<1024x512xbf16>
    %cst_14 = arith.constant dense<0.000000e+00> : vector<8x512xf32>
    %19 = tpu.matmul %17, %18, %cst_14 {dimension_numbers = #tpu.dot_dimension_numbers<[1], [0], [0], [1], [0, 0, 1, 1], [], []>} : vector<8x1024xbf16>, vector<1024x512xbf16>, vector<8x512xf32> -> vector<8x512xf32>
    %c0_15 = arith.constant 0 : index
    %c0_16 = arith.constant 0 : index
    %20 = vector.load %arg7[%c0_15, %c0_16] : memref<1x512xf32, #tpu.memory_space<vmem>>, vector<1x512xf32>
    %21 = vector.broadcast %20 : vector<1x512xf32> to vector<8x512xf32>
    %22 = arith.addf %19, %21 : vector<8x512xf32>
    %cst_17 = arith.constant 0.000000e+00 : f32
    %23 = vector.broadcast %cst_17 : f32 to vector<8x512xf32>
    %24 = arith.maximumf %22, %23 : vector<8x512xf32>
    %25 = arith.truncf %24 : vector<8x512xf32> to vector<8x512xbf16>
    %c0_18 = arith.constant 0 : index
    %c0_19 = arith.constant 0 : index
    %26 = vector.load %arg8[%c0_18, %c0_19] : memref<512x256xbf16, #tpu.memory_space<vmem>>, vector<512x256xbf16>
    %cst_20 = arith.constant dense<0.000000e+00> : vector<8x256xf32>
    %27 = tpu.matmul %25, %26, %cst_20 {dimension_numbers = #tpu.dot_dimension_numbers<[1], [0], [0], [1], [0, 0, 1, 1], [], []>} : vector<8x512xbf16>, vector<512x256xbf16>, vector<8x256xf32> -> vector<8x256xf32>
    %c0_21 = arith.constant 0 : index
    %c0_22 = arith.constant 0 : index
    %28 = vector.load %arg9[%c0_21, %c0_22] : memref<1x256xf32, #tpu.memory_space<vmem>>, vector<1x256xf32>
    %29 = vector.broadcast %28 : vector<1x256xf32> to vector<8x256xf32>
    %30 = arith.addf %27, %29 : vector<8x256xf32>
    %cst_23 = arith.constant 0.000000e+00 : f32
    %31 = vector.broadcast %cst_23 : f32 to vector<8x256xf32>
    %32 = arith.maximumf %30, %31 : vector<8x256xf32>
    %33 = arith.truncf %32 : vector<8x256xf32> to vector<8x256xbf16>
    %c0_24 = arith.constant 0 : index
    %c0_25 = arith.constant 0 : index
    %34 = vector.load %arg10[%c0_24, %c0_25] : memref<256x128xbf16, #tpu.memory_space<vmem>>, vector<256x128xbf16>
    %cst_26 = arith.constant dense<0.000000e+00> : vector<8x128xf32>
    %35 = tpu.matmul %33, %34, %cst_26 {dimension_numbers = #tpu.dot_dimension_numbers<[1], [0], [0], [1], [0, 0, 1, 1], [], []>} : vector<8x256xbf16>, vector<256x128xbf16>, vector<8x128xf32> -> vector<8x128xf32>
    %c0_27 = arith.constant 0 : index
    %c0_28 = arith.constant 0 : index
    %36 = vector.load %arg11[%c0_27, %c0_28] : memref<1x128xf32, #tpu.memory_space<vmem>>, vector<1x128xf32>
    %37 = vector.broadcast %36 : vector<1x128xf32> to vector<8x128xf32>
    %38 = arith.addf %35, %37 : vector<8x128xf32>
    %cst_29 = arith.constant 0.000000e+00 : f32
    %39 = vector.broadcast %cst_29 : f32 to vector<8x128xf32>
    %40 = arith.maximumf %38, %39 : vector<8x128xf32>
    %41 = arith.truncf %40 : vector<8x128xf32> to vector<8x128xbf16>
    %c0_30 = arith.constant 0 : index
    %c0_31 = arith.constant 0 : index
    %42 = vector.load %arg12[%c0_30, %c0_31] : memref<128x1024xbf16, #tpu.memory_space<vmem>>, vector<128x1024xbf16>
    %cst_32 = arith.constant dense<0.000000e+00> : vector<8x1024xf32>
    %43 = tpu.matmul %41, %42, %cst_32 {dimension_numbers = #tpu.dot_dimension_numbers<[1], [0], [0], [1], [0, 0, 1, 1], [], []>} : vector<8x128xbf16>, vector<128x1024xbf16>, vector<8x1024xf32> -> vector<8x1024xf32>
    %c0_33 = arith.constant 0 : index
    %c0_34 = arith.constant 0 : index
    %44 = vector.load %arg13[%c0_33, %c0_34] : memref<1x1024xf32, #tpu.memory_space<vmem>>, vector<1x1024xf32>
    %45 = vector.broadcast %44 : vector<1x1024xf32> to vector<8x1024xf32>
    %46 = arith.addf %43, %45 : vector<8x1024xf32>
    %cst_35 = arith.constant 0.000000e+00 : f32
    %47 = vector.broadcast %cst_35 : f32 to vector<8x1024xf32>
    %48 = arith.maximumf %46, %47 : vector<8x1024xf32>
    %c0_36 = arith.constant 0 : index
    %c0_37 = arith.constant 0 : index
    %49 = vector.load %arg14[%c0_36, %c0_37] : memref<8x1024xf32, #tpu.memory_space<vmem>>, vector<8x1024xf32>
    tpu.vector_store %arg14[%c0_36, %c0_37], %48 {strides = array<i32>} : memref<8x1024xf32, #tpu.memory_space<vmem>>, vector<8x1024xf32>,
    return
  }
  func.func @transform_0(%arg0: i32) -> (i32, i32) {
    %c0_i32 = arith.constant 0 : i32
    %c0_i32_0 = arith.constant 0 : i32
    return %arg0, %c0_i32 : i32, i32
  }
  func.func @transform_1(%arg0: i32) -> (i32, i32) {
    %c0_i32 = arith.constant 0 : i32
    %c0_i32_0 = arith.constant 0 : i32
    %c0_i32_1 = arith.constant 0 : i32
    return %c0_i32, %c0_i32_0 : i32, i32
  }
  func.func @transform_2(%arg0: i32) -> (i32, i32) {
    %c0_i32 = arith.constant 0 : i32
    %c0_i32_0 = arith.constant 0 : i32
    %c0_i32_1 = arith.constant 0 : i32
    return %c0_i32, %c0_i32_0 : i32, i32
  }
  func.func @transform_3(%arg0: i32) -> (i32, i32) {
    %c0_i32 = arith.constant 0 : i32
    %c0_i32_0 = arith.constant 0 : i32
    %c0_i32_1 = arith.constant 0 : i32
    return %c0_i32, %c0_i32_0 : i32, i32
  }
  func.func @transform_4(%arg0: i32) -> (i32, i32) {
    %c0_i32 = arith.constant 0 : i32
    %c0_i32_0 = arith.constant 0 : i32
    %c0_i32_1 = arith.constant 0 : i32
    return %c0_i32, %c0_i32_0 : i32, i32
  }
  func.func @transform_5(%arg0: i32) -> (i32, i32) {
    %c0_i32 = arith.constant 0 : i32
    %c0_i32_0 = arith.constant 0 : i32
    %c0_i32_1 = arith.constant 0 : i32
    return %c0_i32, %c0_i32_0 : i32, i32
  }
  func.func @transform_6(%arg0: i32) -> (i32, i32) {
    %c0_i32 = arith.constant 0 : i32
    %c0_i32_0 = arith.constant 0 : i32
    %c0_i32_1 = arith.constant 0 : i32
    return %c0_i32, %c0_i32_0 : i32, i32
  }
  func.func @transform_7(%arg0: i32) -> (i32, i32) {
    %c0_i32 = arith.constant 0 : i32
    %c0_i32_0 = arith.constant 0 : i32
    %c0_i32_1 = arith.constant 0 : i32
    return %c0_i32, %c0_i32_0 : i32, i32
  }
  func.func @transform_8(%arg0: i32) -> (i32, i32) {
    %c0_i32 = arith.constant 0 : i32
    %c0_i32_0 = arith.constant 0 : i32
    %c0_i32_1 = arith.constant 0 : i32
    return %c0_i32, %c0_i32_0 : i32, i32
  }
  func.func @transform_9(%arg0: i32) -> (i32, i32) {
    %c0_i32 = arith.constant 0 : i32
    %c0_i32_0 = arith.constant 0 : i32
    %c0_i32_1 = arith.constant 0 : i32
    return %c0_i32, %c0_i32_0 : i32, i32
  }
  func.func @transform_10(%arg0: i32) -> (i32, i32) {
    %c0_i32 = arith.constant 0 : i32
    %c0_i32_0 = arith.constant 0 : i32
    %c0_i32_1 = arith.constant 0 : i32
    return %c0_i32, %c0_i32_0 : i32, i32
  }
  func.func @transform_11(%arg0: i32) -> (i32, i32) {
    %c0_i32 = arith.constant 0 : i32
    %c0_i32_0 = arith.constant 0 : i32
    %c0_i32_1 = arith.constant 0 : i32
    return %c0_i32, %c0_i32_0 : i32, i32
  }
  func.func @transform_12(%arg0: i32) -> (i32, i32) {
    %c0_i32 = arith.constant 0 : i32
    %c0_i32_0 = arith.constant 0 : i32
    %c0_i32_1 = arith.constant 0 : i32
    return %c0_i32, %c0_i32_0 : i32, i32
  }
  func.func @transform_13(%arg0: i32) -> (i32, i32) {
    %c0_i32 = arith.constant 0 : i32
    %c0_i32_0 = arith.constant 0 : i32
    return %arg0, %c0_i32 : i32, i32
  }
}

</mosaic_0001>

<llo_original>
// kernel: tpu_custom_call.1
$region0: #{tpu_custom_call.1}
  #allocation0 [shape = 'u32[]', space=smem, size = 0x4, offset = 0x4, fixed_abs, tag = 'smem constant byte address 0x4 - core index']
  #allocation1 [shape = 'u32[72,128]{1,0:T(1,128)}', space=vmem, size = 0x9000, scoped, tag = 'internal scratch']
  %s0 = inlined_call_operand.hbm [shape: f32[8,32], index: 0, kind: input, shape index: {}]
  %s1 = inlined_call_operand.hbm [shape: bf16[32,1024], index: 1, kind: input, shape index: {}]
  %s2 = inlined_call_operand.hbm [shape: f32[1,1024], index: 2, kind: input, shape index: {}]
  %s3 = inlined_call_operand.hbm [shape: bf16[1024,1024], index: 3, kind: input, shape index: {}]
  %s4 = inlined_call_operand.hbm [shape: f32[1,1024], index: 4, kind: input, shape index: {}]
  %s5 = inlined_call_operand.hbm [shape: bf16[1024,512], index: 5, kind: input, shape index: {}]
  %s6 = inlined_call_operand.hbm [shape: f32[1,512], index: 6, kind: input, shape index: {}]
  %s7 = inlined_call_operand.hbm [shape: bf16[512,256], index: 7, kind: input, shape index: {}]
  %s8 = inlined_call_operand.hbm [shape: f32[1,256], index: 8, kind: input, shape index: {}]
  %s9 = inlined_call_operand.hbm [shape: bf16[256,128], index: 9, kind: input, shape index: {}]
  %s10 = inlined_call_operand.hbm [shape: f32[1,128], index: 10, kind: input, shape index: {}]
  %s11 = inlined_call_operand.hbm [shape: bf16[128,1024], index: 11, kind: input, shape index: {}]
  %s12 = inlined_call_operand.hbm [shape: f32[1,1024], index: 12, kind: input, shape index: {}]
  %s13 = inlined_call_operand.hbm [shape: f32[8,1024], index: 13, kind: output, shape index: {}]
  %s14 = sld [smem:[#allocation0]]
  $region114: #{tpu_custom_call.1} parent=0
    _
  %s16 = ssub.s32 1, %s14
  %s17 = scalar_select 0, %s16, %s14
  $region1: #{tpu_custom_call.1} parent=0
    #allocation2 [shape = 'u8[4096]{0}', space=vmem, size = 0x1000, scoped, tag = 'input window, operand 0, single buffered']
    #allocation3 [shape = 's32[1]{0}', space=sflag, size = 0x4, scoped, tag = 'scoped memory for tpu_custom_call.1']
    #allocation4 [shape = 's32[1]{0}', space=sflag, size = 0x4, scoped, tag = 'scoped memory for tpu_custom_call.1']
    #allocation5 [shape = 'u8[65536]{0}', space=vmem, size = 0x10000, scoped, tag = 'input window, operand 1, single buffered']
    #allocation6 [shape = 's32[1]{0}', space=sflag, size = 0x4, scoped, tag = 'scoped memory for tpu_custom_call.1']
    #allocation7 [shape = 'u8[4096]{0}', space=vmem, size = 0x1000, scoped, tag = 'input window, operand 2, single buffered']
    #allocation8 [shape = 'u8[2097152]{0}', space=vmem, size = 0x200000, scoped, tag = 'input window, operand 3, single buffered']
    #allocation9 [shape = 's32[1]{0}', space=sflag, size = 0x4, scoped, tag = 'scoped memory for tpu_custom_call.1']
    #allocation10 [shape = 'u8[4096]{0}', space=vmem, size = 0x1000, scoped, tag = 'input window, operand 4, single buffered']
    #allocation11 [shape = 'u8[1048576]{0}', space=vmem, size = 0x100000, scoped, tag = 'input window, operand 5, single buffered']
    #allocation12 [shape = 's32[1]{0}', space=sflag, size = 0x4, scoped, tag = 'scoped memory for tpu_custom_call.1']
    #allocation13 [shape = 'u8[2048]{0}', space=vmem, size = 0x800, scoped, tag = 'input window, operand 6, single buffered']
    #allocation14 [shape = 'u8[262144]{0}', space=vmem, size = 0x40000, scoped, tag = 'input window, operand 7, single buffered']
    #allocation15 [shape = 's32[1]{0}', space=sflag, size = 0x4, scoped, tag = 'scoped memory for tpu_custom_call.1']
    #allocation16 [shape = 'u8[1024]{0}', space=vmem, size = 0x400, scoped, tag = 'input window, operand 8, single buffered']
    #allocation17 [shape = 'u8[65536]{0}', space=vmem, size = 0x10000, scoped, tag = 'input window, operand 9, single buffered']
    #allocation18 [shape = 's32[1]{0}', space=sflag, size = 0x4, scoped, tag = 'scoped memory for tpu_custom_call.1']
    #allocation19 [shape = 'u8[512]{0}', space=vmem, size = 0x400, scoped, tag = 'input window, operand 10, single buffered']
    #allocation20 [shape = 'u8[262144]{0}', space=vmem, size = 0x40000, scoped, tag = 'input window, operand 11, single buffered']
    #allocation21 [shape = 's32[1]{0}', space=sflag, size = 0x4, scoped, tag = 'scoped memory for tpu_custom_call.1']
    #allocation22 [shape = 'u8[4096]{0}', space=vmem, size = 0x1000, scoped, tag = 'input window, operand 12, single buffered']
    #allocation23 [shape = 'u8[32768]{0}', space=vmem, size = 0x8000, scoped, tag = 'output window, operand 0, single buffered']
    %18 = vsyncpa [#allocation3], 0
    %19 = vsyncpa [#allocation6], 0
    %20 = vsyncpa [#allocation9], 0
    %21 = vsyncpa [#allocation12], 0
    %22 = vsyncpa [#allocation15], 0
    %23 = vsyncpa [#allocation18], 0
    %24 = vsyncpa [#allocation21], 0
    %25 = vsyncpa [#allocation4], 0
    // Predicated region
    $region2: #{tpu_custom_call.1} parent=1 // pred_check
      _
    $region3: #{tpu_custom_call.1} parent=1 // pred_check_branch
      %27 = sbr.rel (0) target = $region5
    $region4: #{tpu_custom_call.1} parent=1 // pred_region
      %29 = vsyncadd [#allocation3], 0
      %s31 = sshll.u32 %s0, 4
      %s32 = int_to_ptr.hbm [resolvable:$true] %s31
      %s33 = sshll.u32 [#allocation2], 4
      %s34 = int_to_ptr.vmem [resolvable:$true] %s33
      %36 = dma.hbm_to_vmem [thread:$0]  %s32, 128, %s34, [#allocation3]
    $region5: #{tpu_custom_call.1} parent=1 // pred_fallthru
      _
    // Predicated region
    $region6: #{tpu_custom_call.1} parent=1 // pred_check
      _
    $region7: #{tpu_custom_call.1} parent=1 // pred_check_branch
      %38 = sbr.rel (0) target = $region9
    $region8: #{tpu_custom_call.1} parent=1 // pred_region
      %40 = vsyncadd [#allocation6], 0
      %s41 = sshll.u32 %s1, 4
      %s42 = int_to_ptr.hbm [resolvable:$true] %s41
      %s43 = sshll.u32 [#allocation5], 4
      %s44 = int_to_ptr.vmem [resolvable:$true] %s43
      %49 = dma.hbm_to_vmem [thread:$0]  %s42, 2048, %s44, [#allocation6], 512, 512, 32
    $region9: #{tpu_custom_call.1} parent=1 // pred_fallthru
      _
    // Predicated region
    $region10: #{tpu_custom_call.1} parent=1 // pred_check
      _
    $region11: #{tpu_custom_call.1} parent=1 // pred_check_branch
      %51 = sbr.rel (0) target = $region13
    $region12: #{tpu_custom_call.1} parent=1 // pred_region
      %53 = vsyncadd [#allocation6], 0
      %s55 = sshll.u32 %s2, 4
      %s56 = int_to_ptr.hbm [resolvable:$true] %s55
      %s57 = sshll.u32 [#allocation7], 4
      %s58 = int_to_ptr.vmem [resolvable:$true] %s57
      %60 = dma.hbm_to_vmem [thread:$0]  %s56, 128, %s58, [#allocation6]
    $region13: #{tpu_custom_call.1} parent=1 // pred_fallthru
      _
    // Predicated region
    $region14: #{tpu_custom_call.1} parent=1 // pred_check
      _
    $region15: #{tpu_custom_call.1} parent=1 // pred_check_branch
      %62 = sbr.rel (0) target = $region17
    $region16: #{tpu_custom_call.1} parent=1 // pred_region
      %64 = vsyncadd [#allocation9], 0
      %s65 = sshll.u32 %s3, 4
      %s66 = int_to_ptr.hbm [resolvable:$true] %s65
      %s67 = sshll.u32 [#allocation8], 4
      %s68 = int_to_ptr.vmem [resolvable:$true] %s67
      %73 = dma.hbm_to_vmem [thread:$0]  %s66, 65536, %s68, [#allocation9], 512, 512, 32
    $region17: #{tpu_custom_call.1} parent=1 // pred_fallthru
      _
    // Predicated region
    $region18: #{tpu_custom_call.1} parent=1 // pred_check
      _
    $region19: #{tpu_custom_call.1} parent=1 // pred_check_branch
      %75 = sbr.rel (0) target = $region21
    $region20: #{tpu_custom_call.1} parent=1 // pred_region
      %77 = vsyncadd [#allocation9], 0
      %s79 = sshll.u32 %s4, 4
      %s80 = int_to_ptr.hbm [resolvable:$true] %s79
      %s81 = sshll.u32 [#allocation10], 4
      %s82 = int_to_ptr.vmem [resolvable:$true] %s81
      %84 = dma.hbm_to_vmem [thread:$0]  %s80, 128, %s82, [#allocation9]
    $region21: #{tpu_custom_call.1} parent=1 // pred_fallthru
      _
    // Predicated region
    $region22: #{tpu_custom_call.1} parent=1 // pred_check
      _
    $region23: #{tpu_custom_call.1} parent=1 // pred_check_branch
      %86 = sbr.rel (0) target = $region25
    $region24: #{tpu_custom_call.1} parent=1 // pred_region
      %88 = vsyncadd [#allocation12], 0
      %s89 = sshll.u32 %s5, 4
      %s90 = int_to_ptr.hbm [resolvable:$true] %s89
      %s91 = sshll.u32 [#allocation11], 4
      %s92 = int_to_ptr.vmem [resolvable:$true] %s91
      %97 = dma.hbm_to_vmem [thread:$0]  %s90, 32768, %s92, [#allocation12], 256, 256, 16
    $region25: #{tpu_custom_call.1} parent=1 // pred_fallthru
      _
    // Predicated region
    $region26: #{tpu_custom_call.1} parent=1 // pred_check
      _
    $region27: #{tpu_custom_call.1} parent=1 // pred_check_branch
      %99 = sbr.rel (0) target = $region29
    $region28: #{tpu_custom_call.1} parent=1 // pred_region
      %101 = vsyncadd [#allocation12], 0
      %s103 = sshll.u32 %s6, 4
      %s104 = int_to_ptr.hbm [resolvable:$true] %s103
      %s105 = sshll.u32 [#allocation13], 4
      %s106 = int_to_ptr.vmem [resolvable:$true] %s105
      %108 = dma.hbm_to_vmem [thread:$0]  %s104, 64, %s106, [#allocation12]
    $region29: #{tpu_custom_call.1} parent=1 // pred_fallthru
      _
    // Predicated region
    $region30: #{tpu_custom_call.1} parent=1 // pred_check
      _
    $region31: #{tpu_custom_call.1} parent=1 // pred_check_branch
      %110 = sbr.rel (0) target = $region33
    $region32: #{tpu_custom_call.1} parent=1 // pred_region
      %112 = vsyncadd [#allocation15], 0
      %s113 = sshll.u32 %s7, 4
      %s114 = int_to_ptr.hbm [resolvable:$true] %s113
      %s115 = sshll.u32 [#allocation14], 4
      %s116 = int_to_ptr.vmem [resolvable:$true] %s115
      %121 = dma.hbm_to_vmem [thread:$0]  %s114, 8192, %s116, [#allocation15], 128, 128, 8
    $region33: #{tpu_custom_call.1} parent=1 // pred_fallthru
      _
    // Predicated region
    $region34: #{tpu_custom_call.1} parent=1 // pred_check
      _
    $region35: #{tpu_custom_call.1} parent=1 // pred_check_branch
      %123 = sbr.rel (0) target = $region37
    $region36: #{tpu_custom_call.1} parent=1 // pred_region
      %125 = vsyncadd [#allocation15], 0
      %s127 = sshll.u32 %s8, 4
      %s128 = int_to_ptr.hbm [resolvable:$true] %s127
      %s129 = sshll.u32 [#allocation16], 4
      %s130 = int_to_ptr.vmem [resolvable:$true] %s129
      %132 = dma.hbm_to_vmem [thread:$0]  %s128, 32, %s130, [#allocation15]
    $region37: #{tpu_custom_call.1} parent=1 // pred_fallthru
      _
    // Predicated region
    $region38: #{tpu_custom_call.1} parent=1 // pred_check
      _
    $region39: #{tpu_custom_call.1} parent=1 // pred_check_branch
      %134 = sbr.rel (0) target = $region41
    $region40: #{tpu_custom_call.1} parent=1 // pred_region
      %136 = vsyncadd [#allocation18], 0
      %s137 = sshll.u32 %s9, 4
      %s138 = int_to_ptr.hbm [resolvable:$true] %s137
      %s139 = sshll.u32 [#allocation17], 4
      %s140 = int_to_ptr.vmem [resolvable:$true] %s139
      %145 = dma.hbm_to_vmem [thread:$0]  %s138, 2048, %s140, [#allocation18], 64, 64, 4
    $region41: #{tpu_custom_call.1} parent=1 // pred_fallthru
      _
    // Predicated region
    $region42: #{tpu_custom_call.1} parent=1 // pred_check
      _
    $region43: #{tpu_custom_call.1} parent=1 // pred_check_branch
      %147 = sbr.rel (0) target = $region45
    $region44: #{tpu_custom_call.1} parent=1 // pred_region
      %149 = vsyncadd [#allocation18], 0
      %s151 = sshll.u32 %s10, 4
      %s152 = int_to_ptr.hbm [resolvable:$true] %s151
      %s153 = sshll.u32 [#allocation19], 4
      %s154 = int_to_ptr.vmem [resolvable:$true] %s153
      %156 = dma.hbm_to_vmem [thread:$0]  %s152, 16, %s154, [#allocation18]
    $region45: #{tpu_custom_call.1} parent=1 // pred_fallthru
      _
    // Predicated region
    $region46: #{tpu_custom_call.1} parent=1 // pred_check
      _
    $region47: #{tpu_custom_call.1} parent=1 // pred_check_branch
      %158 = sbr.rel (0) target = $region49
    $region48: #{tpu_custom_call.1} parent=1 // pred_region
      %160 = vsyncadd [#allocation21], 0
      %s161 = sshll.u32 %s11, 4
      %s162 = int_to_ptr.hbm [resolvable:$true] %s161
      %s163 = sshll.u32 [#allocation20], 4
      %s164 = int_to_ptr.vmem [resolvable:$true] %s163
      %169 = dma.hbm_to_vmem [thread:$0]  %s162, 8192, %s164, [#allocation21], 512, 512, 32
    $region49: #{tpu_custom_call.1} parent=1 // pred_fallthru
      _
    // Predicated region
    $region50: #{tpu_custom_call.1} parent=1 // pred_check
      _
    $region51: #{tpu_custom_call.1} parent=1 // pred_check_branch
      %171 = sbr.rel (0) target = $region53
    $region52: #{tpu_custom_call.1} parent=1 // pred_region
      %173 = vsyncadd [#allocation21], 0
      %s175 = sshll.u32 %s12, 4
      %s176 = int_to_ptr.hbm [resolvable:$true] %s175
      %s177 = sshll.u32 [#allocation22], 4
      %s178 = int_to_ptr.vmem [resolvable:$true] %s177
      %180 = dma.hbm_to_vmem [thread:$0]  %s176, 128, %s178, [#allocation21]
    $region53: #{tpu_custom_call.1} parent=1 // pred_fallthru
      _
    // Predicated region
    $region54: #{tpu_custom_call.1} parent=1 // pred_check
      _
    $region55: #{tpu_custom_call.1} parent=1 // pred_check_branch
      %182 = sbr.rel (0) target = $region57
    $region56: #{tpu_custom_call.1} parent=1 // pred_region
      %184 = dma.done [#allocation3], 128
    $region57: #{tpu_custom_call.1} parent=1 // pred_fallthru
      _
    // Predicated region
    $region58: #{tpu_custom_call.1} parent=1 // pred_check
      _
    $region59: #{tpu_custom_call.1} parent=1 // pred_check_branch
      %186 = sbr.rel (0) target = $region61
    $region60: #{tpu_custom_call.1} parent=1 // pred_region
      %188 = dma.done [#allocation6], 2048
    $region61: #{tpu_custom_call.1} parent=1 // pred_fallthru
      _
    // Predicated region
    $region62: #{tpu_custom_call.1} parent=1 // pred_check
      _
    $region63: #{tpu_custom_call.1} parent=1 // pred_check_branch
      %190 = sbr.rel (0) target = $region65
    $region64: #{tpu_custom_call.1} parent=1 // pred_region
      %192 = dma.done [#allocation6], 128
    $region65: #{tpu_custom_call.1} parent=1 // pred_fallthru
      _
    // Predicated region
    $region66: #{tpu_custom_call.1} parent=1 // pred_check
      _
    $region67: #{tpu_custom_call.1} parent=1 // pred_check_branch
      %194 = sbr.rel (0) target = $region69
    $region68: #{tpu_custom_call.1} parent=1 // pred_region
      %196 = dma.done [#allocation9], 65536
    $region69: #{tpu_custom_call.1} parent=1 // pred_fallthru
      _
    // Predicated region
    $region70: #{tpu_custom_call.1} parent=1 // pred_check
      _
    $region71: #{tpu_custom_call.1} parent=1 // pred_check_branch
      %198 = sbr.rel (0) target = $region73
    $region72: #{tpu_custom_call.1} parent=1 // pred_region
      %200 = dma.done [#allocation9], 128
    $region73: #{tpu_custom_call.1} parent=1 // pred_fallthru
      _
    // Predicated region
    $region74: #{tpu_custom_call.1} parent=1 // pred_check
      _
    $region75: #{tpu_custom_call.1} parent=1 // pred_check_branch
      %202 = sbr.rel (0) target = $region77
    $region76: #{tpu_custom_call.1} parent=1 // pred_region
      %204 = dma.done [#allocation12], 32768
    $region77: #{tpu_custom_call.1} parent=1 // pred_fallthru
      _
    // Predicated region
    $region78: #{tpu_custom_call.1} parent=1 // pred_check
      _
    $region79: #{tpu_custom_call.1} parent=1 // pred_check_branch
      %206 = sbr.rel (0) target = $region81
    $region80: #{tpu_custom_call.1} parent=1 // pred_region
      %208 = dma.done [#allocation12], 64
    $region81: #{tpu_custom_call.1} parent=1 // pred_fallthru
      _
    // Predicated region
    $region82: #{tpu_custom_call.1} parent=1 // pred_check
      _
    $region83: #{tpu_custom_call.1} parent=1 // pred_check_branch
      %210 = sbr.rel (0) target = $region85
    $region84: #{tpu_custom_call.1} parent=1 // pred_region
      %212 = dma.done [#allocation15], 8192
    $region85: #{tpu_custom_call.1} parent=1 // pred_fallthru
      _
    // Predicated region
    $region86: #{tpu_custom_call.1} parent=1 // pred_check
      _
    $region87: #{tpu_custom_call.1} parent=1 // pred_check_branch
      %214 = sbr.rel (0) target = $region89
    $region88: #{tpu_custom_call.1} parent=1 // pred_region
      %216 = dma.done [#allocation15], 32
    $region89: #{tpu_custom_call.1} parent=1 // pred_fallthru
      _
    // Predicated region
    $region90: #{tpu_custom_call.1} parent=1 // pred_check
      _
    $region91: #{tpu_custom_call.1} parent=1 // pred_check_branch
      %218 = sbr.rel (0) target = $region93
    $region92: #{tpu_custom_call.1} parent=1 // pred_region
      %220 = dma.done [#allocation18], 2048
    $region93: #{tpu_custom_call.1} parent=1 // pred_fallthru
      _
    // Predicated region
    $region94: #{tpu_custom_call.1} parent=1 // pred_check
      _
    $region95: #{tpu_custom_call.1} parent=1 // pred_check_branch
      %222 = sbr.rel (0) target = $region97
    $region96: #{tpu_custom_call.1} parent=1 // pred_region
      %224 = dma.done [#allocation18], 16
    $region97: #{tpu_custom_call.1} parent=1 // pred_fallthru
      _
    // Predicated region
    $region98: #{tpu_custom_call.1} parent=1 // pred_check
      _
    $region99: #{tpu_custom_call.1} parent=1 // pred_check_branch
      %226 = sbr.rel (0) target = $region101
    $region100: #{tpu_custom_call.1} parent=1 // pred_region
      %228 = dma.done [#allocation21], 8192
    $region101: #{tpu_custom_call.1} parent=1 // pred_fallthru
      _
    // Predicated region
    $region102: #{tpu_custom_call.1} parent=1 // pred_check
      _
    $region103: #{tpu_custom_call.1} parent=1 // pred_check_branch
      %230 = sbr.rel (0) target = $region105
    $region104: #{tpu_custom_call.1} parent=1 // pred_region
      %232 = dma.done [#allocation21], 128
    $region105: #{tpu_custom_call.1} parent=1 // pred_fallthru
      _
    %v234 = vld [vmem:[#allocation2] sm:$0xff]
    %v235 = vpack.c.bf16 %v234, %v234
    %v236 = vld [vmem:[#allocation5] sm:$0xff]
    %v237 = vld [vmem:[#allocation5 + $0x8] sm:$0xff]
    %v238 = vld [vmem:[#allocation5 + $0x10] sm:$0xff]
    %v239 = vld [vmem:[#allocation5 + $0x18] sm:$0xff]
    %v240 = vld [vmem:[#allocation5 + $0x20] sm:$0xff]
    %v241 = vld [vmem:[#allocation5 + $0x28] sm:$0xff]
    %v242 = vld [vmem:[#allocation5 + $0x30] sm:$0xff]
    %v243 = vld [vmem:[#allocation5 + $0x38] sm:$0xff]
    %v244 = vld [vmem:[#allocation5 + $0x40] sm:$0xff]
    %v245 = vld [vmem:[#allocation5 + $0x48] sm:$0xff]
    %v246 = vld [vmem:[#allocation5 + $0x50] sm:$0xff]
    %v247 = vld [vmem:[#allocation5 + $0x58] sm:$0xff]
    %v248 = vld [vmem:[#allocation5 + $0x60] sm:$0xff]
    %v249 = vld [vmem:[#allocation5 + $0x68] sm:$0xff]
    %v250 = vld [vmem:[#allocation5 + $0x70] sm:$0xff]
    %v251 = vld [vmem:[#allocation5 + $0x78] sm:$0xff]
    %v252 = vld [vmem:[#allocation7] sm:$0xff]
    %v254 = vperm.slane %v252, 0
    %v255 = vperm.slane %v252, 1
    %v256 = vperm.slane %v252, 2
    %v257 = vperm.slane %v252, 3
    %v258 = vperm.slane %v252, 4
    %v259 = vperm.slane %v252, 5
    %v260 = vperm.slane %v252, 6
    %v261 = vperm.slane %v252, 7
    %v286 = vunpack.c.l.b16 %v236
    %v287 = vunpack.c.h.b16 %v236
    %v288 = vunpack.c.l.b16 %v237
    %v289 = vunpack.c.h.b16 %v237
    %v290 = vunpack.c.l.b16 %v238
    %v291 = vunpack.c.h.b16 %v238
    %v292 = vunpack.c.l.b16 %v239
    %v293 = vunpack.c.h.b16 %v239
    %v294 = vunpack.c.l.b16 %v240
    %v295 = vunpack.c.h.b16 %v240
    %v296 = vunpack.c.l.b16 %v241
    %v297 = vunpack.c.h.b16 %v241
    %v298 = vunpack.c.l.b16 %v242
    %v299 = vunpack.c.h.b16 %v242
    %v300 = vunpack.c.l.b16 %v243
    %v301 = vunpack.c.h.b16 %v243
    %v302 = vunpack.c.l.b16 %v244
    %v303 = vunpack.c.h.b16 %v244
    %v304 = vunpack.c.l.b16 %v245
    %v305 = vunpack.c.h.b16 %v245
    %v306 = vunpack.c.l.b16 %v246
    %v307 = vunpack.c.h.b16 %v246
    %v308 = vunpack.c.l.b16 %v247
    %v309 = vunpack.c.h.b16 %v247
    %v310 = vunpack.c.l.b16 %v248
    %v311 = vunpack.c.h.b16 %v248
    %v312 = vunpack.c.l.b16 %v249
    %v313 = vunpack.c.h.b16 %v249
    %v314 = vunpack.c.l.b16 %v250
    %v315 = vunpack.c.h.b16 %v250
    %v316 = vunpack.c.l.b16 %v251
    %v317 = vunpack.c.h.b16 %v251
    %v318 = vpack.c.b16 %v294, %v286
    %v319 = vpack.c.b16 %v295, %v287
    %v320 = vpack.c.b16 %v296, %v288
    %v321 = vpack.c.b16 %v297, %v289
    %v322 = vpack.c.b16 %v298, %v290
    %v323 = vpack.c.b16 %v299, %v291
    %v324 = vpack.c.b16 %v300, %v292
    %v325 = vpack.c.b16 %v301, %v293
    %v326 = vpack.c.b16 %v310, %v302
    %v327 = vpack.c.b16 %v311, %v303
    %v328 = vpack.c.b16 %v312, %v304
    %v329 = vpack.c.b16 %v313, %v305
    %v330 = vpack.c.b16 %v314, %v306
    %v331 = vpack.c.b16 %v315, %v307
    %v332 = vpack.c.b16 %v316, %v308
    %v333 = vpack.c.b16 %v317, %v309
    %vm350 = vcmask 261120
    %v352 = vsel %vm350, %v235, 0
    %354 = vmatpush.bf16.msra.mxu0 0
    %355 = vmatpush.bf16.msra.mxu0 0
    %356 = vmatpush.bf16.msra.mxu0 0
    %357 = vmatpush.bf16.msra.mxu0 0
    %358 = vmatpush.bf16.msra.mxu0 0
    %359 = vmatpush.bf16.msra.mxu0 0
    %360 = vmatpush.bf16.msra.mxu0 %v326
    %361 = vmatpush.bf16.msra.mxu0 %v318
    %362 = vmatmul.bf16.gmra.mxu0 %v352
    %v363 = vpop.f32.mrf.mxu0
    %v364 = vadd.f32 %v254, %v363
    %v365 = vpop.f32.mrf.mxu0
    %366 = vdwg.mxu0
    %367 = vmatpush.bf16.msra.mxu0 0
    %368 = vmatpush.bf16.msra.mxu0 0
    %369 = vmatpush.bf16.msra.mxu0 0
    %370 = vmatpush.bf16.msra.mxu0 0
    %371 = vmatpush.bf16.msra.mxu0 0
    %372 = vmatpush.bf16.msra.mxu0 0
    %373 = vmatpush.bf16.msra.mxu0 %v327
    %374 = vmatpush.bf16.msra.mxu0 %v319
    %375 = vmatmul.bf16.gmra.mxu0 %v352
    %v376 = vpop.f32.mrf.mxu0
    %v377 = vadd.f32 %v255, %v376
    %v378 = vpop.f32.mrf.mxu0
    %379 = vdwg.mxu0
    %380 = vmatpush.bf16.msra.mxu0 0
    %381 = vmatpush.bf16.msra.mxu0 0
    %382 = vmatpush.bf16.msra.mxu0 0
    %383 = vmatpush.bf16.msra.mxu0 0
    %384 = vmatpush.bf16.msra.mxu0 0
    %385 = vmatpush.bf16.msra.mxu0 0
    %386 = vmatpush.bf16.msra.mxu0 %v328
    %387 = vmatpush.bf16.msra.mxu0 %v320
    %388 = vmatmul.bf16.gmra.mxu0 %v352
    %v389 = vpop.f32.mrf.mxu0
    %v390 = vadd.f32 %v256, %v389
    %v391 = vpop.f32.mrf.mxu0
    %392 = vdwg.mxu0
    %393 = vmatpush.bf16.msra.mxu0 0
    %394 = vmatpush.bf16.msra.mxu0 0
    %395 = vmatpush.bf16.msra.mxu0 0
    %396 = vmatpush.bf16.msra.mxu0 0
    %397 = vmatpush.bf16.msra.mxu0 0
    %398 = vmatpush.bf16.msra.mxu0 0
    %399 = vmatpush.bf16.msra.mxu0 %v329
    %400 = vmatpush.bf16.msra.mxu0 %v321
    %401 = vmatmul.bf16.gmra.mxu0 %v352
    %v402 = vpop.f32.mrf.mxu0
    %v403 = vadd.f32 %v257, %v402
    %v404 = vpop.f32.mrf.mxu0
    %405 = vdwg.mxu0
    %406 = vmatpush.bf16.msra.mxu0 0
    %407 = vmatpush.bf16.msra.mxu0 0
    %408 = vmatpush.bf16.msra.mxu0 0
    %409 = vmatpush.bf16.msra.mxu0 0
    %410 = vmatpush.bf16.msra.mxu0 0
    %411 = vmatpush.bf16.msra.mxu0 0
    %412 = vmatpush.bf16.msra.mxu0 %v330
    %413 = vmatpush.bf16.msra.mxu0 %v322
    %414 = vmatmul.bf16.gmra.mxu0 %v352
    %v415 = vpop.f32.mrf.mxu0
    %v416 = vadd.f32 %v258, %v415
    %v417 = vpop.f32.mrf.mxu0
    %418 = vdwg.mxu0
    %419 = vmatpush.bf16.msra.mxu0 0
    %420 = vmatpush.bf16.msra.mxu0 0
    %421 = vmatpush.bf16.msra.mxu0 0
    %422 = vmatpush.bf16.msra.mxu0 0
    %423 = vmatpush.bf16.msra.mxu0 0
    %424 = vmatpush.bf16.msra.mxu0 0
    %425 = vmatpush.bf16.msra.mxu0 %v331
    %426 = vmatpush.bf16.msra.mxu0 %v323
    %427 = vmatmul.bf16.gmra.mxu0 %v352
    %v428 = vpop.f32.mrf.mxu0
    %v429 = vadd.f32 %v259, %v428
    %v430 = vpop.f32.mrf.mxu0
    %431 = vdwg.mxu0
    %432 = vmatpush.bf16.msra.mxu0 0
    %433 = vmatpush.bf16.msra.mxu0 0
    %434 = vmatpush.bf16.msra.mxu0 0
    %435 = vmatpush.bf16.msra.mxu0 0
    %436 = vmatpush.bf16.msra.mxu0 0
    %437 = vmatpush.bf16.msra.mxu0 0
    %438 = vmatpush.bf16.msra.mxu0 %v332
    %439 = vmatpush.bf16.msra.mxu0 %v324
    %440 = vmatmul.bf16.gmra.mxu0 %v352
    %v441 = vpop.f32.mrf.mxu0
    %v442 = vadd.f32 %v260, %v441
    %v443 = vpop.f32.mrf.mxu0
    %444 = vdwg.mxu0
    %445 = vmatpush.bf16.msra.mxu0 0
    %446 = vmatpush.bf16.msra.mxu0 0
    %447 = vmatpush.bf16.msra.mxu0 0
    %448 = vmatpush.bf16.msra.mxu0 0
    %449 = vmatpush.bf16.msra.mxu0 0
    %450 = vmatpush.bf16.msra.mxu0 0
    %451 = vmatpush.bf16.msra.mxu0 %v333
    %452 = vmatpush.bf16.msra.mxu0 %v325
    %453 = vmatmul.bf16.gmra.mxu0 %v352
    %v454 = vpop.f32.mrf.mxu0
    %v455 = vadd.f32 %v261, %v454
    %v456 = vpop.f32.mrf.mxu0
    %457 = vdwg.mxu0
    %v458 = vmax.f32 %v364, 0.0
    %v459 = vmax.f32 %v377, 0.0
    %v460 = vmax.f32 %v390, 0.0
    %v461 = vmax.f32 %v403, 0.0
    %v462 = vmax.f32 %v416, 0.0
    %v463 = vmax.f32 %v429, 0.0
    %v464 = vmax.f32 %v442, 0.0
    %v465 = vmax.f32 %v455, 0.0
    %v466 = vpack.c.bf16 %v458, %v458
    %v467 = vpack.c.bf16 %v459, %v459
    %v468 = vpack.c.bf16 %v460, %v460
    %v469 = vpack.c.bf16 %v461, %v461
    %v470 = vpack.c.bf16 %v462, %v462
    %v471 = vpack.c.bf16 %v463, %v463
    %v472 = vpack.c.bf16 %v464, %v464
    %v473 = vpack.c.bf16 %v465, %v465
    %v474 = vld [vmem:[#allocation8] sm:$0xff]
    %v475 = vld [vmem:[#allocation8 + $0x8] sm:$0xff]
    %v476 = vld [vmem:[#allocation8 + $0x10] sm:$0xff]
    %v477 = vld [vmem:[#allocation8 + $0x18] sm:$0xff]
    %v478 = vld [vmem:[#allocation8 + $0x20] sm:$0xff]
    %v479 = vld [vmem:[#allocation8 + $0x28] sm:$0xff]
    %v480 = vld [vmem:[#allocation8 + $0x30] sm:$0xff]
    %v481 = vld [vmem:[#allocation8 + $0x38] sm:$0xff]
    %v482 = vld [vmem:[#allocation8 + $0x40] sm:$0xff]
    %v483 = vld [vmem:[#allocation8 + $0x48] sm:$0xff]
    %v484 = vld [vmem:[#allocation8 + $0x50] sm:$0xff]
    %v485 = vld [vmem:[#allocation8 + $0x58] sm:$0xff]
    %v486 = vld [vmem:[#allocation8 + $0x60] sm:$0xff]
    %v487 = vld [vmem:[#allocation8 + $0x68] sm:$0xff]
    %v488 = vld [vmem:[#allocation8 + $0x70] sm:$0xff]
    %v489 = vld [vmem:[#allocation8 + $0x78] sm:$0xff]
    %v490 = vld [vmem:[#allocation8 + $0x80] sm:$0xff]
    %v491 = vld [vmem:[#allocation8 + $0x88] sm:$0xff]
    %v492 = vld [vmem:[#allocation8 + $0x90] sm:$0xff]
    %v493 = vld [vmem:[#allocation8 + $0x98] sm:$0xff]
    %v494 = vld [vmem:[#allocation8 + $0xa0] sm:$0xff]
    %v495 = vld [vmem:[#allocation8 + $0xa8] sm:$0xff]
    %v496 = vld [vmem:[#allocation8 + $0xb0] sm:$0xff]
    %v497 = vld [vmem:[#allocation8 + $0xb8] sm:$0xff]
    %v498 = vld [vmem:[#allocation8 + $0xc0] sm:$0xff]
    %v499 = vld [vmem:[#allocation8 + $0xc8] sm:$0xff]
    %v500 = vld [vmem:[#allocation8 + $0xd0] sm:$0xff]
    %v501 = vld [vmem:[#allocation8 + $0xd8] sm:$0xff]
    %v502 = vld [vmem:[#allocation8 + $0xe0] sm:$0xff]
    %v503 = vld [vmem:[#allocation8 + $0xe8] sm:$0xff]
    %v504 = vld [vmem:[#allocation8 + $0xf0] sm:$0xff]
    %v505 = vld [vmem:[#allocation8 + $0xf8] sm:$0xff]
    %v506 = vld [vmem:[#allocation8 + $0x100] sm:$0xff]
    %v507 = vld [vmem:[#allocation8 + $0x108] sm:$0xff]
    %v508 = vld [vmem:[#allocation8 + $0x110] sm:$0xff]
    %v509 = vld [vmem:[#allocation8 + $0x118] sm:$0xff]
    %v510 = vld [vmem:[#allocation8 + $0x120] sm:$0xff]
    %v511 = vld [vmem:[#allocation8 + $0x128] sm:$0xff]
    %v512 = vld [vmem:[#allocation8 + $0x130] sm:$0xff]
    %v513 = vld [vmem:[#allocation8 + $0x138] sm:$0xff]
    %v514 = vld [vmem:[#allocation8 + $0x140] sm:$0xff]
    %v515 = vld [vmem:[#allocation8 + $0x148] sm:$0xff]
    %v516 = vld [vmem:[#allocation8 + $0x150] sm:$0xff]
    %v517 = vld [vmem:[#allocation8 + $0x158] sm:$0xff]
    %v518 = vld [vmem:[#allocation8 + $0x160] sm:$0xff]
    %v519 = vld [vmem:[#allocation8 + $0x168] sm:$0xff]
    %v520 = vld [vmem:[#allocation8 + $0x170] sm:$0xff]
    %v521 = vld [vmem:[#allocation8 + $0x178] sm:$0xff]
    %v522 = vld [vmem:[#allocation8 + $0x180] sm:$0xff]
    %v523 = vld [vmem:[#allocation8 + $0x188] sm:$0xff]
    %v524 = vld [vmem:[#allocation8 + $0x190] sm:$0xff]
    %v525 = vld [vmem:[#allocation8 + $0x198] sm:$0xff]
    %v526 = vld [vmem:[#allocation8 + $0x1a0] sm:$0xff]
    %v527 = vld [vmem:[#allocation8 + $0x1a8] sm:$0xff]
    %v528 = vld [vmem:[#allocation8 + $0x1b0] sm:$0xff]
    %v529 = vld [vmem:[#allocation8 + $0x1b8] sm:$0xff]
    %v530 = vld [vmem:[#allocation8 + $0x1c0] sm:$0xff]
    %v531 = vld [vmem:[#allocation8 + $0x1c8] sm:$0xff]
    %v532 = vld [vmem:[#allocation8 + $0x1d0] sm:$0xff]
    %v533 = vld [vmem:[#allocation8 + $0x1d8] sm:$0xff]
    %v534 = vld [vmem:[#allocation8 + $0x1e0] sm:$0xff]
    %v535 = vld [vmem:[#allocation8 + $0x1e8] sm:$0xff]
    %v536 = vld [vmem:[#allocation8 + $0x1f0] sm:$0xff]
    %v537 = vld [vmem:[#allocation8 + $0x1f8] sm:$0xff]
    %v538 = vld [vmem:[#allocation8 + $0x200] sm:$0xff]
    %v539 = vld [vmem:[#allocation8 + $0x208] sm:$0xff]
    %v540 = vld [vmem:[#allocation8 + $0x210] sm:$0xff]
    %v541 = vld [vmem:[#allocation8 + $0x218] sm:$0xff]
    %v542 = vld [vmem:[#allocation8 + $0x220] sm:$0xff]
    %v543 = vld [vmem:[#allocation8 + $0x228] sm:$0xff]
    %v544 = vld [vmem:[#allocation8 + $0x230] sm:$0xff]
    %v545 = vld [vmem:[#allocation8 + $0x238] sm:$0xff]
    %v546 = vld [vmem:[#allocation8 + $0x240] sm:$0xff]
    %v547 = vld [vmem:[#allocation8 + $0x248] sm:$0xff]
    %v548 = vld [vmem:[#allocation8 + $0x250] sm:$0xff]
    %v549 = vld [vmem:[#allocation8 + $0x258] sm:$0xff]
    %v550 = vld [vmem:[#allocation8 + $0x260] sm:$0xff]
    %v551 = vld [vmem:[#allocation8 + $0x268] sm:$0xff]
    %v552 = vld [vmem:[#allocation8 + $0x270] sm:$0xff]
    %v553 = vld [vmem:[#allocation8 + $0x278] sm:$0xff]
    %v554 = vld [vmem:[#allocation8 + $0x280] sm:$0xff]
    %v555 = vld [vmem:[#allocation8 + $0x288] sm:$0xff]
    %v556 = vld [vmem:[#allocation8 + $0x290] sm:$0xff]
    %v557 = vld [vmem:[#allocation8 + $0x298] sm:$0xff]
    %v558 = vld [vmem:[#allocation8 + $0x2a0] sm:$0xff]
    %v559 = vld [vmem:[#allocation8 + $0x2a8] sm:$0xff]
    %v560 = vld [vmem:[#allocation8 + $0x2b0] sm:$0xff]
    %v561 = vld [vmem:[#allocation8 + $0x2b8] sm:$0xff]
    %v562 = vld [vmem:[#allocation8 + $0x2c0] sm:$0xff]
    %v563 = vld [vmem:[#allocation8 + $0x2c8] sm:$0xff]
    %v564 = vld [vmem:[#allocation8 + $0x2d0] sm:$0xff]
    %v565 = vld [vmem:[#allocation8 + $0x2d8] sm:$0xff]
    %v566 = vld [vmem:[#allocation8 + $0x2e0] sm:$0xff]
    %v567 = vld [vmem:[#allocation8 + $0x2e8] sm:$0xff]
    %v568 = vld [vmem:[#allocation8 + $0x2f0] sm:$0xff]
    %v569 = vld [vmem:[#allocation8 + $0x2f8] sm:$0xff]
    %v570 = vld [vmem:[#allocation8 + $0x300] sm:$0xff]
    %v571 = vld [vmem:[#allocation8 + $0x308] sm:$0xff]
    %v572 = vld [vmem:[#allocation8 + $0x310] sm:$0xff]
    %v573 = vld [vmem:[#allocation8 + $0x318] sm:$0xff]
    %v574 = vld [vmem:[#allocation8 + $0x320] sm:$0xff]
    %v575 = vld [vmem:[#allocation8 + $0x328] sm:$0xff]
    %v576 = vld [vmem:[#allocation8 + $0x330] sm:$0xff]
    %v577 = vld [vmem:[#allocation8 + $0x338] sm:$0xff]
    %v578 = vld [vmem:[#allocation8 + $0x340] sm:$0xff]
    %v579 = vld [vmem:[#allocation8 + $0x348] sm:$0xff]
    %v580 = vld [vmem:[#allocation8 + $0x350] sm:$0xff]
    %v581 = vld [vmem:[#allocation8 + $0x358] sm:$0xff]
    %v582 = vld [vmem:[#allocation8 + $0x360] sm:$0xff]
    %v583 = vld [vmem:[#allocation8 + $0x368] sm:$0xff]
    %v584 = vld [vmem:[#allocation8 + $0x370] sm:$0xff]
    %v585 = vld [vmem:[#allocation8 + $0x378] sm:$0xff]
    %v586 = vld [vmem:[#allocation8 + $0x380] sm:$0xff]
    %v587 = vld [vmem:[#allocation8 + $0x388] sm:$0xff]
    %v588 = vld [vmem:[#allocation8 + $0x390] sm:$0xff]
    %v589 = vld [vmem:[#allocation8 + $0x398] sm:$0xff]
    %v590 = vld [vmem:[#allocation8 + $0x3a0] sm:$0xff]
    %v591 = vld [vmem:[#allocation8 + $0x3a8] sm:$0xff]
    %v592 = vld [vmem:[#allocation8 + $0x3b0] sm:$0xff]
    %v593 = vld [vmem:[#allocation8 + $0x3b8] sm:$0xff]
    %v594 = vld [vmem:[#allocation8 + $0x3c0] sm:$0xff]
    %v595 = vld [vmem:[#allocation8 + $0x3c8] sm:$0xff]
    %v596 = vld [vmem:[#allocation8 + $0x3d0] sm:$0xff]
    %v597 = vld [vmem:[#allocation8 + $0x3d8] sm:$0xff]
    %v598 = vld [vmem:[#allocation8 + $0x3e0] sm:$0xff]
    %v599 = vld [vmem:[#allocation8 + $0x3e8] sm:$0xff]
    %v600 = vld [vmem:[#allocation8 + $0x3f0] sm:$0xff]
    %v601 = vld [vmem:[#allocation8 + $0x3f8] sm:$0xff]
    %v602 = vld [vmem:[#allocation8 + $0x400] sm:$0xff]
    %v603 = vld [vmem:[#allocation8 + $0x408] sm:$0xff]
    %v604 = vld [vmem:[#allocation8 + $0x410] sm:$0xff]
    %v605 = vld [vmem:[#allocation8 + $0x418] sm:$0xff]
    %v606 = vld [vmem:[#allocation8 + $0x420] sm:$0xff]
    %v607 = vld [vmem:[#allocation8 + $0x428] sm:$0xff]
    %v608 = vld [vmem:[#allocation8 + $0x430] sm:$0xff]
    %v609 = vld [vmem:[#allocation8 + $0x438] sm:$0xff]
    %v610 = vld [vmem:[#allocation8 + $0x440] sm:$0xff]
    %v611 = vld [vmem:[#allocation8 + $0x448] sm:$0xff]
    %v612 = vld [vmem:[#allocation8 + $0x450] sm:$0xff]
    %v613 = vld [vmem:[#allocation8 + $0x458] sm:$0xff]
    %v614 = vld [vmem:[#allocation8 + $0x460] sm:$0xff]
    %v615 = vld [vmem:[#allocation8 + $0x468] sm:$0xff]
    %v616 = vld [vmem:[#allocation8 + $0x470] sm:$0xff]
    %v617 = vld [vmem:[#allocation8 + $0x478] sm:$0xff]
    %v618 = vld [vmem:[#allocation8 + $0x480] sm:$0xff]
    %v619 = vld [vmem:[#allocation8 + $0x488] sm:$0xff]
    %v620 = vld [vmem:[#allocation8 + $0x490] sm:$0xff]
    %v621 = vld [vmem:[#allocation8 + $0x498] sm:$0xff]
    %v622 = vld [vmem:[#allocation8 + $0x4a0] sm:$0xff]
    %v623 = vld [vmem:[#allocation8 + $0x4a8] sm:$0xff]
    %v624 = vld [vmem:[#allocation8 + $0x4b0] sm:$0xff]
    %v625 = vld [vmem:[#allocation8 + $0x4b8] sm:$0xff]
    %v626 = vld [vmem:[#allocation8 + $0x4c0] sm:$0xff]
    %v627 = vld [vmem:[#allocation8 + $0x4c8] sm:$0xff]
    %v628 = vld [vmem:[#allocation8 + $0x4d0] sm:$0xff]
    %v629 = vld [vmem:[#allocation8 + $0x4d8] sm:$0xff]
    %v630 = vld [vmem:[#allocation8 + $0x4e0] sm:$0xff]
    %v631 = vld [vmem:[#allocation8 + $0x4e8] sm:$0xff]
    %v632 = vld [vmem:[#allocation8 + $0x4f0] sm:$0xff]
    %v633 = vld [vmem:[#allocation8 + $0x4f8] sm:$0xff]
    %v634 = vld [vmem:[#allocation8 + $0x500] sm:$0xff]
    %v635 = vld [vmem:[#allocation8 + $0x508] sm:$0xff]
    %v636 = vld [vmem:[#allocation8 + $0x510] sm:$0xff]
    %v637 = vld [vmem:[#allocation8 + $0x518] sm:$0xff]
    %v638 = vld [vmem:[#allocation8 + $0x520] sm:$0xff]
    %v639 = vld [vmem:[#allocation8 + $0x528] sm:$0xff]
    %v640 = vld [vmem:[#allocation8 + $0x530] sm:$0xff]
    %v641 = vld [vmem:[#allocation8 + $0x538] sm:$0xff]
    %v642 = vld [vmem:[#allocation8 + $0x540] sm:$0xff]
    %v643 = vld [vmem:[#allocation8 + $0x548] sm:$0xff]
    %v644 = vld [vmem:[#allocation8 + $0x550] sm:$0xff]
    %v645 = vld [vmem:[#allocation8 + $0x558] sm:$0xff]
    %v646 = vld [vmem:[#allocation8 + $0x560] sm:$0xff]
    %v647 = vld [vmem:[#allocation8 + $0x568] sm:$0xff]
    %v648 = vld [vmem:[#allocation8 + $0x570] sm:$0xff]
    %v649 = vld [vmem:[#allocation8 + $0x578] sm:$0xff]
    %v650 = vld [vmem:[#allocation8 + $0x580] sm:$0xff]
    %v651 = vld [vmem:[#allocation8 + $0x588] sm:$0xff]
    %v652 = vld [vmem:[#allocation8 + $0x590] sm:$0xff]
    %v653 = vld [vmem:[#allocation8 + $0x598] sm:$0xff]
    %v654 = vld [vmem:[#allocation8 + $0x5a0] sm:$0xff]
    %v655 = vld [vmem:[#allocation8 + $0x5a8] sm:$0xff]
    %v656 = vld [vmem:[#allocation8 + $0x5b0] sm:$0xff]
    %v657 = vld [vmem:[#allocation8 + $0x5b8] sm:$0xff]
    %v658 = vld [vmem:[#allocation8 + $0x5c0] sm:$0xff]
    %v659 = vld [vmem:[#allocation8 + $0x5c8] sm:$0xff]
    %v660 = vld [vmem:[#allocation8 + $0x5d0] sm:$0xff]
    %v661 = vld [vmem:[#allocation8 + $0x5d8] sm:$0xff]
    %v662 = vld [vmem:[#allocation8 + $0x5e0] sm:$0xff]
    %v663 = vld [vmem:[#allocation8 + $0x5e8] sm:$0xff]
    %v664 = vld [vmem:[#allocation8 + $0x5f0] sm:$0xff]
    %v665 = vld [vmem:[#allocation8 + $0x5f8] sm:$0xff]
    %v666 = vld [vmem:[#allocation8 + $0x600] sm:$0xff]
    %v667 = vld [vmem:[#allocation8 + $0x608] sm:$0xff]
    %v668 = vld [vmem:[#allocation8 + $0x610] sm:$0xff]
    %v669 = vld [vmem:[#allocation8 + $0x618] sm:$0xff]
    %v670 = vld [vmem:[#allocation8 + $0x620] sm:$0xff]
    %v671 = vld [vmem:[#allocation8 + $0x628] sm:$0xff]
    %v672 = vld [vmem:[#allocation8 + $0x630] sm:$0xff]
    %v673 = vld [vmem:[#allocation8 + $0x638] sm:$0xff]
    %v674 = vld [vmem:[#allocation8 + $0x640] sm:$0xff]
    %v675 = vld [vmem:[#allocation8 + $0x648] sm:$0xff]
    %v676 = vld [vmem:[#allocation8 + $0x650] sm:$0xff]
    %v677 = vld [vmem:[#allocation8 + $0x658] sm:$0xff]
    %v678 = vld [vmem:[#allocation8 + $0x660] sm:$0xff]
    %v679 = vld [vmem:[#allocation8 + $0x668] sm:$0xff]
    %v680 = vld [vmem:[#allocation8 + $0x670] sm:$0xff]
    %v681 = vld [vmem:[#allocation8 + $0x678] sm:$0xff]
    %v682 = vld [vmem:[#allocation8 + $0x680] sm:$0xff]
    %v683 = vld [vmem:[#allocation8 + $0x688] sm:$0xff]
    %v684 = vld [vmem:[#allocation8 + $0x690] sm:$0xff]
    %v685 = vld [vmem:[#allocation8 + $0x698] sm:$0xff]
    %v686 = vld [vmem:[#allocation8 + $0x6a0] sm:$0xff]
    %v687 = vld [vmem:[#allocation8 + $0x6a8] sm:$0xff]
    %v688 = vld [vmem:[#allocation8 + $0x6b0] sm:$0xff]
    %v689 = vld [vmem:[#allocation8 + $0x6b8] sm:$0xff]
    %v690 = vld [vmem:[#allocation8 + $0x6c0] sm:$0xff]
    %v691 = vld [vmem:[#allocation8 + $0x6c8] sm:$0xff]
    %v692 = vld [vmem:[#allocation8 + $0x6d0] sm:$0xff]
    %v693 = vld [vmem:[#allocation8 + $0x6d8] sm:$0xff]
    %v694 = vld [vmem:[#allocation8 + $0x6e0] sm:$0xff]
    %v695 = vld [vmem:[#allocation8 + $0x6e8] sm:$0xff]
    %v696 = vld [vmem:[#allocation8 + $0x6f0] sm:$0xff]
    %v697 = vld [vmem:[#allocation8 + $0x6f8] sm:$0xff]
    %v698 = vld [vmem:[#allocation8 + $0x700] sm:$0xff]
    %v699 = vld [vmem:[#allocation8 + $0x708] sm:$0xff]
    %v700 = vld [vmem:[#allocation8 + $0x710] sm:$0xff]
    %v701 = vld [vmem:[#allocation8 + $0x718] sm:$0xff]
    %v702 = vld [vmem:[#allocation8 + $0x720] sm:$0xff]
    %v703 = vld [vmem:[#allocation8 + $0x728] sm:$0xff]
    %v704 = vld [vmem:[#allocation8 + $0x730] sm:$0xff]
    %v705 = vld [vmem:[#allocation8 + $0x738] sm:$0xff]
    %v706 = vld [vmem:[#allocation8 + $0x740] sm:$0xff]
    %v707 = vld [vmem:[#allocation8 + $0x748] sm:$0xff]
    %v708 = vld [vmem:[#allocation8 + $0x750] sm:$0xff]
    %v709 = vld [vmem:[#allocation8 + $0x758] sm:$0xff]
    %v710 = vld [vmem:[#allocation8 + $0x760] sm:$0xff]
    %v711 = vld [vmem:[#allocation8 + $0x768] sm:$0xff]
    %v712 = vld [vmem:[#allocation8 + $0x770] sm:$0xff]
    %v713 = vld [vmem:[#allocation8 + $0x778] sm:$0xff]
    %v714 = vld [vmem:[#allocation8 + $0x780] sm:$0xff]
    %v715 = vld [vmem:[#allocation8 + $0x788] sm:$0xff]
    %v716 = vld [vmem:[#allocation8 + $0x790] sm:$0xff]
    %v717 = vld [vmem:[#allocation8 + $0x798] sm:$0xff]
    %v718 = vld [vmem:[#allocation8 + $0x7a0] sm:$0xff]
    %v719 = vld [vmem:[#allocation8 + $0x7a8] sm:$0xff]
    %v720 = vld [vmem:[#allocation8 + $0x7b0] sm:$0xff]
    %v721 = vld [vmem:[#allocation8 + $0x7b8] sm:$0xff]
    %v722 = vld [vmem:[#allocation8 + $0x7c0] sm:$0xff]
    %v723 = vld [vmem:[#allocation8 + $0x7c8] sm:$0xff]
    %v724 = vld [vmem:[#allocation8 + $0x7d0] sm:$0xff]
    %v725 = vld [vmem:[#allocation8 + $0x7d8] sm:$0xff]
    %v726 = vld [vmem:[#allocation8 + $0x7e0] sm:$0xff]
    %v727 = vld [vmem:[#allocation8 + $0x7e8] sm:$0xff]
    %v728 = vld [vmem:[#allocation8 + $0x7f0] sm:$0xff]
    %v729 = vld [vmem:[#allocation8 + $0x7f8] sm:$0xff]
    %v730 = vld [vmem:[#allocation8 + $0x800] sm:$0xff]
    %v731 = vld [vmem:[#allocation8 + $0x808] sm:$0xff]
    %v732 = vld [vmem:[#allocation8 + $0x810] sm:$0xff]
    %v733 = vld [vmem:[#allocation8 + $0x818] sm:$0xff]
    %v734 = vld [vmem:[#allocation8 + $0x820] sm:$0xff]
    %v735 = vld [vmem:[#allocation8 + $0x828] sm:$0xff]
    %v736 = vld [vmem:[#allocation8 + $0x830] sm:$0xff]
    %v737 = vld [vmem:[#allocation8 + $0x838] sm:$0xff]
    %v738 = vld [vmem:[#allocation8 + $0x840] sm:$0xff]
    %v739 = vld [vmem:[#allocation8 + $0x848] sm:$0xff]
    %v740 = vld [vmem:[#allocation8 + $0x850] sm:$0xff]
    %v741 = vld [vmem:[#allocation8 + $0x858] sm:$0xff]
    %v742 = vld [vmem:[#allocation8 + $0x860] sm:$0xff]
    %v743 = vld [vmem:[#allocation8 + $0x868] sm:$0xff]
    %v744 = vld [vmem:[#allocation8 + $0x870] sm:$0xff]
    %v745 = vld [vmem:[#allocation8 + $0x878] sm:$0xff]
    %v746 = vld [vmem:[#allocation8 + $0x880] sm:$0xff]
    %v747 = vld [vmem:[#allocation8 + $0x888] sm:$0xff]
    %v748 = vld [vmem:[#allocation8 + $0x890] sm:$0xff]
    %v749 = vld [vmem:[#allocation8 + $0x898] sm:$0xff]
    %v750 = vld [vmem:[#allocation8 + $0x8a0] sm:$0xff]
    %v751 = vld [vmem:[#allocation8 + $0x8a8] sm:$0xff]
    %v752 = vld [vmem:[#allocation8 + $0x8b0] sm:$0xff]
    %v753 = vld [vmem:[#allocation8 + $0x8b8] sm:$0xff]
    %v754 = vld [vmem:[#allocation8 + $0x8c0] sm:$0xff]
    %v755 = vld [vmem:[#allocation8 + $0x8c8] sm:$0xff]
    %v756 = vld [vmem:[#allocation8 + $0x8d0] sm:$0xff]
    %v757 = vld [vmem:[#allocation8 + $0x8d8] sm:$0xff]
    %v758 = vld [vmem:[#allocation8 + $0x8e0] sm:$0xff]
    %v759 = vld [vmem:[#allocation8 + $0x8e8] sm:$0xff]
    %v760 = vld [vmem:[#allocation8 + $0x8f0] sm:$0xff]
    %v761 = vld [vmem:[#allocation8 + $0x8f8] sm:$0xff]
    %v762 = vld [vmem:[#allocation8 + $0x900] sm:$0xff]
    %v763 = vld [vmem:[#allocation8 + $0x908] sm:$0xff]
    %v764 = vld [vmem:[#allocation8 + $0x910] sm:$0xff]
    %v765 = vld [vmem:[#allocation8 + $0x918] sm:$0xff]
    %v766 = vld [vmem:[#allocation8 + $0x920] sm:$0xff]
    %v767 = vld [vmem:[#allocation8 + $0x928] sm:$0xff]
    %v768 = vld [vmem:[#allocation8 + $0x930] sm:$0xff]
    %v769 = vld [vmem:[#allocation8 + $0x938] sm:$0xff]
    %v770 = vld [vmem:[#allocation8 + $0x940] sm:$0xff]
    %v771 = vld [vmem:[#allocation8 + $0x948] sm:$0xff]
    %v772 = vld [vmem:[#allocation8 + $0x950] sm:$0xff]
    %v773 = vld [vmem:[#allocation8 + $0x958] sm:$0xff]
    %v774 = vld [vmem:[#allocation8 + $0x960] sm:$0xff]
    %v775 = vld [vmem:[#allocation8 + $0x968] sm:$0xff]
    %v776 = vld [vmem:[#allocation8 + $0x970] sm:$0xff]
    %v777 = vld [vmem:[#allocation8 + $0x978] sm:$0xff]
    %v778 = vld [vmem:[#allocation8 + $0x980] sm:$0xff]
    %v779 = vld [vmem:[#allocation8 + $0x988] sm:$0xff]
    %v780 = vld [vmem:[#allocation8 + $0x990] sm:$0xff]
    %v781 = vld [vmem:[#allocation8 + $0x998] sm:$0xff]
    %v782 = vld [vmem:[#allocation8 + $0x9a0] sm:$0xff]
    %v783 = vld [vmem:[#allocation8 + $0x9a8] sm:$0xff]
    %v784 = vld [vmem:[#allocation8 + $0x9b0] sm:$0xff]
    %v785 = vld [vmem:[#allocation8 + $0x9b8] sm:$0xff]
    %v786 = vld [vmem:[#allocation8 + $0x9c0] sm:$0xff]
    %v787 = vld [vmem:[#allocation8 + $0x9c8] sm:$0xff]
    %v788 = vld [vmem:[#allocation8 + $0x9d0] sm:$0xff]
    %v789 = vld [vmem:[#allocation8 + $0x9d8] sm:$0xff]
    %v790 = vld [vmem:[#allocation8 + $0x9e0] sm:$0xff]
    %v791 = vld [vmem:[#allocation8 + $0x9e8] sm:$0xff]
    %v792 = vld [vmem:[#allocation8 + $0x9f0] sm:$0xff]
    %v793 = vld [vmem:[#allocation8 + $0x9f8] sm:$0xff]
    %v794 = vld [vmem:[#allocation8 + $0xa00] sm:$0xff]
    %v795 = vld [vmem:[#allocation8 + $0xa08] sm:$0xff]
    %v796 = vld [vmem:[#allocation8 + $0xa10] sm:$0xff]
    %v797 = vld [vmem:[#allocation8 + $0xa18] sm:$0xff]
    %v798 = vld [vmem:[#allocation8 + $0xa20] sm:$0xff]
    %v799 = vld [vmem:[#allocation8 + $0xa28] sm:$0xff]
    %v800 = vld [vmem:[#allocation8 + $0xa30] sm:$0xff]
    %v801 = vld [vmem:[#allocation8 + $0xa38] sm:$0xff]
    %v802 = vld [vmem:[#allocation8 + $0xa40] sm:$0xff]
    %v803 = vld [vmem:[#allocation8 + $0xa48] sm:$0xff]
    %v804 = vld [vmem:[#allocation8 + $0xa50] sm:$0xff]
    %v805 = vld [vmem:[#allocation8 + $0xa58] sm:$0xff]
    %v806 = vld [vmem:[#allocation8 + $0xa60] sm:$0xff]
    %v807 = vld [vmem:[#allocation8 + $0xa68] sm:$0xff]
    %v808 = vld [vmem:[#allocation8 + $0xa70] sm:$0xff]
    %v809 = vld [vmem:[#allocation8 + $0xa78] sm:$0xff]
    %v810 = vld [vmem:[#allocation8 + $0xa80] sm:$0xff]
    %v811 = vld [vmem:[#allocation8 + $0xa88] sm:$0xff]
    %v812 = vld [vmem:[#allocation8 + $0xa90] sm:$0xff]
    %v813 = vld [vmem:[#allocation8 + $0xa98] sm:$0xff]
    %v814 = vld [vmem:[#allocation8 + $0xaa0] sm:$0xff]
    %v815 = vld [vmem:[#allocation8 + $0xaa8] sm:$0xff]
    %v816 = vld [vmem:[#allocation8 + $0xab0] sm:$0xff]
    %v817 = vld [vmem:[#allocation8 + $0xab8] sm:$0xff]
    %v818 = vld [vmem:[#allocation8 + $0xac0] sm:$0xff]
    %v819 = vld [vmem:[#allocation8 + $0xac8] sm:$0xff]
    %v820 = vld [vmem:[#allocation8 + $0xad0] sm:$0xff]
    %v821 = vld [vmem:[#allocation8 + $0xad8] sm:$0xff]
    %v822 = vld [vmem:[#allocation8 + $0xae0] sm:$0xff]
    %v823 = vld [vmem:[#allocation8 + $0xae8] sm:$0xff]
    %v824 = vld [vmem:[#allocation8 + $0xaf0] sm:$0xff]
    %v825 = vld [vmem:[#allocation8 + $0xaf8] sm:$0xff]
    %v826 = vld [vmem:[#allocation8 + $0xb00] sm:$0xff]
    %v827 = vld [vmem:[#allocation8 + $0xb08] sm:$0xff]
    %v828 = vld [vmem:[#allocation8 + $0xb10] sm:$0xff]
    %v829 = vld [vmem:[#allocation8 + $0xb18] sm:$0xff]
    %v830 = vld [vmem:[#allocation8 + $0xb20] sm:$0xff]
    %v831 = vld [vmem:[#allocation8 + $0xb28] sm:$0xff]
    %v832 = vld [vmem:[#allocation8 + $0xb30] sm:$0xff]
    %v833 = vld [vmem:[#allocation8 + $0xb38] sm:$0xff]
    %v834 = vld [vmem:[#allocation8 + $0xb40] sm:$0xff]
    %v835 = vld [vmem:[#allocation8 + $0xb48] sm:$0xff]
    %v836 = vld [vmem:[#allocation8 + $0xb50] sm:$0xff]
    %v837 = vld [vmem:[#allocation8 + $0xb58] sm:$0xff]
    %v838 = vld [vmem:[#allocation8 + $0xb60] sm:$0xff]
    %v839 = vld [vmem:[#allocation8 + $0xb68] sm:$0xff]
    %v840 = vld [vmem:[#allocation8 + $0xb70] sm:$0xff]
    %v841 = vld [vmem:[#allocation8 + $0xb78] sm:$0xff]
    %v842 = vld [vmem:[#allocation8 + $0xb80] sm:$0xff]
    %v843 = vld [vmem:[#allocation8 + $0xb88] sm:$0xff]
    %v844 = vld [vmem:[#allocation8 + $0xb90] sm:$0xff]
    %v845 = vld [vmem:[#allocation8 + $0xb98] sm:$0xff]
    %v846 = vld [vmem:[#allocation8 + $0xba0] sm:$0xff]
    %v847 = vld [vmem:[#allocation8 + $0xba8] sm:$0xff]
    %v848 = vld [vmem:[#allocation8 + $0xbb0] sm:$0xff]
    %v849 = vld [vmem:[#allocation8 + $0xbb8] sm:$0xff]
    %v850 = vld [vmem:[#allocation8 + $0xbc0] sm:$0xff]
    %v851 = vld [vmem:[#allocation8 + $0xbc8] sm:$0xff]
    %v852 = vld [vmem:[#allocation8 + $0xbd0] sm:$0xff]
    %v853 = vld [vmem:[#allocation8 + $0xbd8] sm:$0xff]
    %v854 = vld [vmem:[#allocation8 + $0xbe0] sm:$0xff]
    %v855 = vld [vmem:[#allocation8 + $0xbe8] sm:$0xff]
    %v856 = vld [vmem:[#allocation8 + $0xbf0] sm:$0xff]
    %v857 = vld [vmem:[#allocation8 + $0xbf8] sm:$0xff]
    %v858 = vld [vmem:[#allocation8 + $0xc00] sm:$0xff]
    %v859 = vld [vmem:[#allocation8 + $0xc08] sm:$0xff]
    %v860 = vld [vmem:[#allocation8 + $0xc10] sm:$0xff]
    %v861 = vld [vmem:[#allocation8 + $0xc18] sm:$0xff]
    %v862 = vld [vmem:[#allocation8 + $0xc20] sm:$0xff]
    %v863 = vld [vmem:[#allocation8 + $0xc28] sm:$0xff]
    %v864 = vld [vmem:[#allocation8 + $0xc30] sm:$0xff]
    %v865 = vld [vmem:[#allocation8 + $0xc38] sm:$0xff]
    %v866 = vld [vmem:[#allocation8 + $0xc40] sm:$0xff]
    %v867 = vld [vmem:[#allocation8 + $0xc48] sm:$0xff]
    %v868 = vld [vmem:[#allocation8 + $0xc50] sm:$0xff]
    %v869 = vld [vmem:[#allocation8 + $0xc58] sm:$0xff]
    %v870 = vld [vmem:[#allocation8 + $0xc60] sm:$0xff]
    %v871 = vld [vmem:[#allocation8 + $0xc68] sm:$0xff]
    %v872 = vld [vmem:[#allocation8 + $0xc70] sm:$0xff]
    %v873 = vld [vmem:[#allocation8 + $0xc78] sm:$0xff]
    %v874 = vld [vmem:[#allocation8 + $0xc80] sm:$0xff]
    %v875 = vld [vmem:[#allocation8 + $0xc88] sm:$0xff]
    %v876 = vld [vmem:[#allocation8 + $0xc90] sm:$0xff]
    %v877 = vld [vmem:[#allocation8 + $0xc98] sm:$0xff]
    %v878 = vld [vmem:[#allocation8 + $0xca0] sm:$0xff]
    %v879 = vld [vmem:[#allocation8 + $0xca8] sm:$0xff]
    %v880 = vld [vmem:[#allocation8 + $0xcb0] sm:$0xff]
    %v881 = vld [vmem:[#allocation8 + $0xcb8] sm:$0xff]
    %v882 = vld [vmem:[#allocation8 + $0xcc0] sm:$0xff]
    %v883 = vld [vmem:[#allocation8 + $0xcc8] sm:$0xff]
    %v884 = vld [vmem:[#allocation8 + $0xcd0] sm:$0xff]
    %v885 = vld [vmem:[#allocation8 + $0xcd8] sm:$0xff]
    %v886 = vld [vmem:[#allocation8 + $0xce0] sm:$0xff]
    %v887 = vld [vmem:[#allocation8 + $0xce8] sm:$0xff]
    %v888 = vld [vmem:[#allocation8 + $0xcf0] sm:$0xff]
    %v889 = vld [vmem:[#allocation8 + $0xcf8] sm:$0xff]
    %v890 = vld [vmem:[#allocation8 + $0xd00] sm:$0xff]
    %v891 = vld [vmem:[#allocation8 + $0xd08] sm:$0xff]
    %v892 = vld [vmem:[#allocation8 + $0xd10] sm:$0xff]
    %v893 = vld [vmem:[#allocation8 + $0xd18] sm:$0xff]
    %v894 = vld [vmem:[#allocation8 + $0xd20] sm:$0xff]
    %v895 = vld [vmem:[#allocation8 + $0xd28] sm:$0xff]
    %v896 = vld [vmem:[#allocation8 + $0xd30] sm:$0xff]
    %v897 = vld [vmem:[#allocation8 + $0xd38] sm:$0xff]
    %v898 = vld [vmem:[#allocation8 + $0xd40] sm:$0xff]
    %v899 = vld [vmem:[#allocation8 + $0xd48] sm:$0xff]
    %v900 = vld [vmem:[#allocation8 + $0xd50] sm:$0xff]
    %v901 = vld [vmem:[#allocation8 + $0xd58] sm:$0xff]
    %v902 = vld [vmem:[#allocation8 + $0xd60] sm:$0xff]
    %v903 = vld [vmem:[#allocation8 + $0xd68] sm:$0xff]
    %v904 = vld [vmem:[#allocation8 + $0xd70] sm:$0xff]
    %v905 = vld [vmem:[#allocation8 + $0xd78] sm:$0xff]
    %v906 = vld [vmem:[#allocation8 + $0xd80] sm:$0xff]
    %v907 = vld [vmem:[#allocation8 + $0xd88] sm:$0xff]
    %v908 = vld [vmem:[#allocation8 + $0xd90] sm:$0xff]
    %v909 = vld [vmem:[#allocation8 + $0xd98] sm:$0xff]
    %v910 = vld [vmem:[#allocation8 + $0xda0] sm:$0xff]
    %v911 = vld [vmem:[#allocation8 + $0xda8] sm:$0xff]
    %v912 = vld [vmem:[#allocation8 + $0xdb0] sm:$0xff]
    %v913 = vld [vmem:[#allocation8 + $0xdb8] sm:$0xff]
    %v914 = vld [vmem:[#allocation8 + $0xdc0] sm:$0xff]
    %v915 = vld [vmem:[#allocation8 + $0xdc8] sm:$0xff]
    %v916 = vld [vmem:[#allocation8 + $0xdd0] sm:$0xff]
    %v917 = vld [vmem:[#allocation8 + $0xdd8] sm:$0xff]
    %v918 = vld [vmem:[#allocation8 + $0xde0] sm:$0xff]
    %v919 = vld [vmem:[#allocation8 + $0xde8] sm:$0xff]
    %v920 = vld [vmem:[#allocation8 + $0xdf0] sm:$0xff]
    %v921 = vld [vmem:[#allocation8 + $0xdf8] sm:$0xff]
    %v922 = vld [vmem:[#allocation8 + $0xe00] sm:$0xff]
    %v923 = vld [vmem:[#allocation8 + $0xe08] sm:$0xff]
    %v924 = vld [vmem:[#allocation8 + $0xe10] sm:$0xff]
    %v925 = vld [vmem:[#allocation8 + $0xe18] sm:$0xff]
    %v926 = vld [vmem:[#allocation8 + $0xe20] sm:$0xff]
    %v927 = vld [vmem:[#allocation8 + $0xe28] sm:$0xff]
    %v928 = vld [vmem:[#allocation8 + $0xe30] sm:$0xff]
    %v929 = vld [vmem:[#allocation8 + $0xe38] sm:$0xff]
    %v930 = vld [vmem:[#allocation8 + $0xe40] sm:$0xff]
    %v931 = vld [vmem:[#allocation8 + $0xe48] sm:$0xff]
    %v932 = vld [vmem:[#allocation8 + $0xe50] sm:$0xff]
    %v933 = vld [vmem:[#allocation8 + $0xe58] sm:$0xff]
    %v934 = vld [vmem:[#allocation8 + $0xe60] sm:$0xff]
    %v935 = vld [vmem:[#allocation8 + $0xe68] sm:$0xff]
    %v936 = vld [vmem:[#allocation8 + $0xe70] sm:$0xff]
    %v937 = vld [vmem:[#allocation8 + $0xe78] sm:$0xff]
    %v938 = vld [vmem:[#allocation8 + $0xe80] sm:$0xff]
    %v939 = vld [vmem:[#allocation8 + $0xe88] sm:$0xff]
    %v940 = vld [vmem:[#allocation8 + $0xe90] sm:$0xff]
    %v941 = vld [vmem:[#allocation8 + $0xe98] sm:$0xff]
    %v942 = vld [vmem:[#allocation8 + $0xea0] sm:$0xff]
    %v943 = vld [vmem:[#allocation8 + $0xea8] sm:$0xff]
    %v944 = vld [vmem:[#allocation8 + $0xeb0] sm:$0xff]
    %v945 = vld [vmem:[#allocation8 + $0xeb8] sm:$0xff]
    %v946 = vld [vmem:[#allocation8 + $0xec0] sm:$0xff]
    %v947 = vld [vmem:[#allocation8 + $0xec8] sm:$0xff]
    %v948 = vld [vmem:[#allocation8 + $0xed0] sm:$0xff]
    %v949 = vld [vmem:[#allocation8 + $0xed8] sm:$0xff]
    %v950 = vld [vmem:[#allocation8 + $0xee0] sm:$0xff]
    %v951 = vld [vmem:[#allocation8 + $0xee8] sm:$0xff]
    %v952 = vld [vmem:[#allocation8 + $0xef0] sm:$0xff]
    %v953 = vld [vmem:[#allocation8 + $0xef8] sm:$0xff]
    %v954 = vld [vmem:[#allocation8 + $0xf00] sm:$0xff]
    %v955 = vld [vmem:[#allocation8 + $0xf08] sm:$0xff]
    %v956 = vld [vmem:[#allocation8 + $0xf10] sm:$0xff]
    %v957 = vld [vmem:[#allocation8 + $0xf18] sm:$0xff]
    %v958 = vld [vmem:[#allocation8 + $0xf20] sm:$0xff]
    %v959 = vld [vmem:[#allocation8 + $0xf28] sm:$0xff]
    %v960 = vld [vmem:[#allocation8 + $0xf30] sm:$0xff]
    %v961 = vld [vmem:[#allocation8 + $0xf38] sm:$0xff]
    %v962 = vld [vmem:[#allocation8 + $0xf40] sm:$0xff]
    %v963 = vld [vmem:[#allocation8 + $0xf48] sm:$0xff]
    %v964 = vld [vmem:[#allocation8 + $0xf50] sm:$0xff]
    %v965 = vld [vmem:[#allocation8 + $0xf58] sm:$0xff]
    %v966 = vld [vmem:[#allocation8 + $0xf60] sm:$0xff]
    %v967 = vld [vmem:[#allocation8 + $0xf68] sm:$0xff]
    %v968 = vld [vmem:[#allocation8 + $0xf70] sm:$0xff]
    %v969 = vld [vmem:[#allocation8 + $0xf78] sm:$0xff]
    %v970 = vld [vmem:[#allocation8 + $0xf80] sm:$0xff]
    %v971 = vld [vmem:[#allocation8 + $0xf88] sm:$0xff]
    %v972 = vld [vmem:[#allocation8 + $0xf90] sm:$0xff]
    %v973 = vld [vmem:[#allocation8 + $0xf98] sm:$0xff]
    %v974 = vld [vmem:[#allocation8 + $0xfa0] sm:$0xff]
    %v975 = vld [vmem:[#allocation8 + $0xfa8] sm:$0xff]
    %v976 = vld [vmem:[#allocation8 + $0xfb0] sm:$0xff]
    %v977 = vld [vmem:[#allocation8 + $0xfb8] sm:$0xff]
    %v978 = vld [vmem:[#allocation8 + $0xfc0] sm:$0xff]
    %v979 = vld [vmem:[#allocation8 + $0xfc8] sm:$0xff]
    %v980 = vld [vmem:[#allocation8 + $0xfd0] sm:$0xff]
    %v981 = vld [vmem:[#allocation8 + $0xfd8] sm:$0xff]
    %v982 = vld [vmem:[#allocation8 + $0xfe0] sm:$0xff]
    %v983 = vld [vmem:[#allocation8 + $0xfe8] sm:$0xff]
    %v984 = vld [vmem:[#allocation8 + $0xff0] sm:$0xff]
    %v985 = vld [vmem:[#allocation8 + $0xff8] sm:$0xff]
    %v986 = vld [vmem:[#allocation10] sm:$0xff]
    %v988 = vperm.slane %v986, 0
    %v989 = vperm.slane %v986, 1
    %v990 = vperm.slane %v986, 2
    %v991 = vperm.slane %v986, 3
    %v992 = vperm.slane %v986, 4
    %v993 = vperm.slane %v986, 5
    %v994 = vperm.slane %v986, 6
    %v995 = vperm.slane %v986, 7
    %v1516 = vunpack.c.l.b16 %v474
    %v1517 = vunpack.c.h.b16 %v474
    %v1518 = vunpack.c.l.b16 %v475
    %v1519 = vunpack.c.h.b16 %v475
    %v1520 = vunpack.c.l.b16 %v476
    %v1521 = vunpack.c.h.b16 %v476
    %v1522 = vunpack.c.l.b16 %v477
    %v1523 = vunpack.c.h.b16 %v477
    %v1524 = vunpack.c.l.b16 %v478
    %v1525 = vunpack.c.h.b16 %v478
    %v1526 = vunpack.c.l.b16 %v479
    %v1527 = vunpack.c.h.b16 %v479
    %v1528 = vunpack.c.l.b16 %v480
    %v1529 = vunpack.c.h.b16 %v480
    %v1530 = vunpack.c.l.b16 %v481
    %v1531 = vunpack.c.h.b16 %v481
    %v1532 = vunpack.c.l.b16 %v482
    %v1533 = vunpack.c.h.b16 %v482
    %v1534 = vunpack.c.l.b16 %v483
    %v1535 = vunpack.c.h.b16 %v483
    %v1536 = vunpack.c.l.b16 %v484
    %v1537 = vunpack.c.h.b16 %v484
    %v1538 = vunpack.c.l.b16 %v485
    %v1539 = vunpack.c.h.b16 %v485
    %v1540 = vunpack.c.l.b16 %v486
    %v1541 = vunpack.c.h.b16 %v486
    %v1542 = vunpack.c.l.b16 %v487
    %v1543 = vunpack.c.h.b16 %v487
    %v1544 = vunpack.c.l.b16 %v488
    %v1545 = vunpack.c.h.b16 %v488
    %v1546 = vunpack.c.l.b16 %v489
    %v1547 = vunpack.c.h.b16 %v489
    %v1548 = vunpack.c.l.b16 %v490
    %v1549 = vunpack.c.h.b16 %v490
    %v1550 = vunpack.c.l.b16 %v491
    %v1551 = vunpack.c.h.b16 %v491
    %v1552 = vunpack.c.l.b16 %v492
    %v1553 = vunpack.c.h.b16 %v492
    %v1554 = vunpack.c.l.b16 %v493
    %v1555 = vunpack.c.h.b16 %v493
    %v1556 = vunpack.c.l.b16 %v494
    %v1557 = vunpack.c.h.b16 %v494
    %v1558 = vunpack.c.l.b16 %v495
    %v1559 = vunpack.c.h.b16 %v495
    %v1560 = vunpack.c.l.b16 %v496
    %v1561 = vunpack.c.h.b16 %v496
    %v1562 = vunpack.c.l.b16 %v497
    %v1563 = vunpack.c.h.b16 %v497
    %v1564 = vunpack.c.l.b16 %v498
    %v1565 = vunpack.c.h.b16 %v498
    %v1566 = vunpack.c.l.b16 %v499
    %v1567 = vunpack.c.h.b16 %v499
    %v1568 = vunpack.c.l.b16 %v500
    %v1569 = vunpack.c.h.b16 %v500
    %v1570 = vunpack.c.l.b16 %v501
    %v1571 = vunpack.c.h.b16 %v501
    %v1572 = vunpack.c.l.b16 %v502
    %v1573 = vunpack.c.h.b16 %v502
    %v1574 = vunpack.c.l.b16 %v503
    %v1575 = vunpack.c.h.b16 %v503
    %v1576 = vunpack.c.l.b16 %v504
    %v1577 = vunpack.c.h.b16 %v504
    %v1578 = vunpack.c.l.b16 %v505
    %v1579 = vunpack.c.h.b16 %v505
    %v1580 = vunpack.c.l.b16 %v506
    %v1581 = vunpack.c.h.b16 %v506
    %v1582 = vunpack.c.l.b16 %v507
    %v1583 = vunpack.c.h.b16 %v507
    %v1584 = vunpack.c.l.b16 %v508
    %v1585 = vunpack.c.h.b16 %v508
    %v1586 = vunpack.c.l.b16 %v509
    %v1587 = vunpack.c.h.b16 %v509
    %v1588 = vunpack.c.l.b16 %v510
    %v1589 = vunpack.c.h.b16 %v510
    %v1590 = vunpack.c.l.b16 %v511
    %v1591 = vunpack.c.h.b16 %v511
    %v1592 = vunpack.c.l.b16 %v512
    %v1593 = vunpack.c.h.b16 %v512
    %v1594 = vunpack.c.l.b16 %v513
    %v1595 = vunpack.c.h.b16 %v513
    %v1596 = vunpack.c.l.b16 %v514
    %v1597 = vunpack.c.h.b16 %v514
    %v1598 = vunpack.c.l.b16 %v515
    %v1599 = vunpack.c.h.b16 %v515
    %v1600 = vunpack.c.l.b16 %v516
    %v1601 = vunpack.c.h.b16 %v516
    %v1602 = vunpack.c.l.b16 %v517
    %v1603 = vunpack.c.h.b16 %v517
    %v1604 = vunpack.c.l.b16 %v518
    %v1605 = vunpack.c.h.b16 %v518
    %v1606 = vunpack.c.l.b16 %v519
    %v1607 = vunpack.c.h.b16 %v519
    %v1608 = vunpack.c.l.b16 %v520
    %v1609 = vunpack.c.h.b16 %v520
    %v1610 = vunpack.c.l.b16 %v521
    %v1611 = vunpack.c.h.b16 %v521
    %v1612 = vunpack.c.l.b16 %v522
    %v1613 = vunpack.c.h.b16 %v522
    %v1614 = vunpack.c.l.b16 %v523
    %v1615 = vunpack.c.h.b16 %v523
    %v1616 = vunpack.c.l.b16 %v524
    %v1617 = vunpack.c.h.b16 %v524
    %v1618 = vunpack.c.l.b16 %v525
    %v1619 = vunpack.c.h.b16 %v525
    %v1620 = vunpack.c.l.b16 %v526
    %v1621 = vunpack.c.h.b16 %v526
    %v1622 = vunpack.c.l.b16 %v527
    %v1623 = vunpack.c.h.b16 %v527
    %v1624 = vunpack.c.l.b16 %v528
    %v1625 = vunpack.c.h.b16 %v528
    %v1626 = vunpack.c.l.b16 %v529
    %v1627 = vunpack.c.h.b16 %v529
    %v1628 = vunpack.c.l.b16 %v530
    %v1629 = vunpack.c.h.b16 %v530
    %v1630 = vunpack.c.l.b16 %v531
    %v1631 = vunpack.c.h.b16 %v531
    %v1632 = vunpack.c.l.b16 %v532
    %v1633 = vunpack.c.h.b16 %v532
    %v1634 = vunpack.c.l.b16 %v533
    %v1635 = vunpack.c.h.b16 %v533
    %v1636 = vunpack.c.l.b16 %v534
    %v1637 = vunpack.c.h.b16 %v534
    %v1638 = vunpack.c.l.b16 %v535
    %v1639 = vunpack.c.h.b16 %v535
    %v1640 = vunpack.c.l.b16 %v536
    %v1641 = vunpack.c.h.b16 %v536
    %v1642 = vunpack.c.l.b16 %v537
    %v1643 = vunpack.c.h.b16 %v537
    %v1644 = vunpack.c.l.b16 %v538
    %v1645 = vunpack.c.h.b16 %v538
    %v1646 = vunpack.c.l.b16 %v539
    %v1647 = vunpack.c.h.b16 %v539
    %v1648 = vunpack.c.l.b16 %v540
    %v1649 = vunpack.c.h.b16 %v540
    %v1650 = vunpack.c.l.b16 %v541
    %v1651 = vunpack.c.h.b16 %v541
    %v1652 = vunpack.c.l.b16 %v542
    %v1653 = vunpack.c.h.b16 %v542
    %v1654 = vunpack.c.l.b16 %v543
    %v1655 = vunpack.c.h.b16 %v543
    %v1656 = vunpack.c.l.b16 %v544
    %v1657 = vunpack.c.h.b16 %v544
    %v1658 = vunpack.c.l.b16 %v545
    %v1659 = vunpack.c.h.b16 %v545
    %v1660 = vunpack.c.l.b16 %v546
    %v1661 = vunpack.c.h.b16 %v546
    %v1662 = vunpack.c.l.b16 %v547
    %v1663 = vunpack.c.h.b16 %v547
    %v1664 = vunpack.c.l.b16 %v548
    %v1665 = vunpack.c.h.b16 %v548
    %v1666 = vunpack.c.l.b16 %v549
    %v1667 = vunpack.c.h.b16 %v549
    %v1668 = vunpack.c.l.b16 %v550
    %v1669 = vunpack.c.h.b16 %v550
    %v1670 = vunpack.c.l.b16 %v551
    %v1671 = vunpack.c.h.b16 %v551
    %v1672 = vunpack.c.l.b16 %v552
    %v1673 = vunpack.c.h.b16 %v552
    %v1674 = vunpack.c.l.b16 %v553
    %v1675 = vunpack.c.h.b16 %v553
    %v1676 = vunpack.c.l.b16 %v554
    %v1677 = vunpack.c.h.b16 %v554
    %v1678 = vunpack.c.l.b16 %v555
    %v1679 = vunpack.c.h.b16 %v555
    %v1680 = vunpack.c.l.b16 %v556
    %v1681 = vunpack.c.h.b16 %v556
    %v1682 = vunpack.c.l.b16 %v557
    %v1683 = vunpack.c.h.b16 %v557
    %v1684 = vunpack.c.l.b16 %v558
    %v1685 = vunpack.c.h.b16 %v558
    %v1686 = vunpack.c.l.b16 %v559
    %v1687 = vunpack.c.h.b16 %v559
    %v1688 = vunpack.c.l.b16 %v560
    %v1689 = vunpack.c.h.b16 %v560
    %v1690 = vunpack.c.l.b16 %v561
    %v1691 = vunpack.c.h.b16 %v561
    %v1692 = vunpack.c.l.b16 %v562
    %v1693 = vunpack.c.h.b16 %v562
    %v1694 = vunpack.c.l.b16 %v563
    %v1695 = vunpack.c.h.b16 %v563
    %v1696 = vunpack.c.l.b16 %v564
    %v1697 = vunpack.c.h.b16 %v564
    %v1698 = vunpack.c.l.b16 %v565
    %v1699 = vunpack.c.h.b16 %v565
    %v1700 = vunpack.c.l.b16 %v566
    %v1701 = vunpack.c.h.b16 %v566
    %v1702 = vunpack.c.l.b16 %v567
    %v1703 = vunpack.c.h.b16 %v567
    %v1704 = vunpack.c.l.b16 %v568
    %v1705 = vunpack.c.h.b16 %v568
    %v1706 = vunpack.c.l.b16 %v569
    %v1707 = vunpack.c.h.b16 %v569
    %v1708 = vunpack.c.l.b16 %v570
    %v1709 = vunpack.c.h.b16 %v570
    %v1710 = vunpack.c.l.b16 %v571
    %v1711 = vunpack.c.h.b16 %v571
    %v1712 = vunpack.c.l.b16 %v572
    %v1713 = vunpack.c.h.b16 %v572
    %v1714 = vunpack.c.l.b16 %v573
    %v1715 = vunpack.c.h.b16 %v573
    %v1716 = vunpack.c.l.b16 %v574
    %v1717 = vunpack.c.h.b16 %v574
    %v1718 = vunpack.c.l.b16 %v575
    %v1719 = vunpack.c.h.b16 %v575
    %v1720 = vunpack.c.l.b16 %v576
    %v1721 = vunpack.c.h.b16 %v576
    %v1722 = vunpack.c.l.b16 %v577
    %v1723 = vunpack.c.h.b16 %v577
    %v1724 = vunpack.c.l.b16 %v578
    %v1725 = vunpack.c.h.b16 %v578
    %v1726 = vunpack.c.l.b16 %v579
    %v1727 = vunpack.c.h.b16 %v579
    %v1728 = vunpack.c.l.b16 %v580
    %v1729 = vunpack.c.h.b16 %v580
    %v1730 = vunpack.c.l.b16 %v581
    %v1731 = vunpack.c.h.b16 %v581
    %v1732 = vunpack.c.l.b16 %v582
    %v1733 = vunpack.c.h.b16 %v582
    %v1734 = vunpack.c.l.b16 %v583
    %v1735 = vunpack.c.h.b16 %v583
    %v1736 = vunpack.c.l.b16 %v584
    %v1737 = vunpack.c.h.b16 %v584
    %v1738 = vunpack.c.l.b16 %v585
    %v1739 = vunpack.c.h.b16 %v585
    %v1740 = vunpack.c.l.b16 %v586
    %v1741 = vunpack.c.h.b16 %v586
    %v1742 = vunpack.c.l.b16 %v587
    %v1743 = vunpack.c.h.b16 %v587
    %v1744 = vunpack.c.l.b16 %v588
    %v1745 = vunpack.c.h.b16 %v588
    %v1746 = vunpack.c.l.b16 %v589
    %v1747 = vunpack.c.h.b16 %v589
    %v1748 = vunpack.c.l.b16 %v590
    %v1749 = vunpack.c.h.b16 %v590
    %v1750 = vunpack.c.l.b16 %v591
    %v1751 = vunpack.c.h.b16 %v591
    %v1752 = vunpack.c.l.b16 %v592
    %v1753 = vunpack.c.h.b16 %v592
    %v1754 = vunpack.c.l.b16 %v593
    %v1755 = vunpack.c.h.b16 %v593
    %v1756 = vunpack.c.l.b16 %v594
    %v1757 = vunpack.c.h.b16 %v594
    %v1758 = vunpack.c.l.b16 %v595
    %v1759 = vunpack.c.h.b16 %v595
    %v1760 = vunpack.c.l.b16 %v596
    %v1761 = vunpack.c.h.b16 %v596
    %v1762 = vunpack.c.l.b16 %v597
    %v1763 = vunpack.c.h.b16 %v597
    %v1764 = vunpack.c.l.b16 %v598
    %v1765 = vunpack.c.h.b16 %v598
    %v1766 = vunpack.c.l.b16 %v599
    %v1767 = vunpack.c.h.b16 %v599
    %v1768 = vunpack.c.l.b16 %v600
    %v1769 = vunpack.c.h.b16 %v600
    %v1770 = vunpack.c.l.b16 %v601
    %v1771 = vunpack.c.h.b16 %v601
    %v1772 = vunpack.c.l.b16 %v602
    %v1773 = vunpack.c.h.b16 %v602
    %v1774 = vunpack.c.l.b16 %v603
    %v1775 = vunpack.c.h.b16 %v603
    %v1776 = vunpack.c.l.b16 %v604
    %v1777 = vunpack.c.h.b16 %v604
    %v1778 = vunpack.c.l.b16 %v605
    %v1779 = vunpack.c.h.b16 %v605
    %v1780 = vunpack.c.l.b16 %v606
    %v1781 = vunpack.c.h.b16 %v606
    %v1782 = vunpack.c.l.b16 %v607
    %v1783 = vunpack.c.h.b16 %v607
    %v1784 = vunpack.c.l.b16 %v608
    %v1785 = vunpack.c.h.b16 %v608
    %v1786 = vunpack.c.l.b16 %v609
    %v1787 = vunpack.c.h.b16 %v609
    %v1788 = vunpack.c.l.b16 %v610
    %v1789 = vunpack.c.h.b16 %v610
    %v1790 = vunpack.c.l.b16 %v611
    %v1791 = vunpack.c.h.b16 %v611
    %v1792 = vunpack.c.l.b16 %v612
    %v1793 = vunpack.c.h.b16 %v612
    %v1794 = vunpack.c.l.b16 %v613
    %v1795 = vunpack.c.h.b16 %v613
    %v1796 = vunpack.c.l.b16 %v614
    %v1797 = vunpack.c.h.b16 %v614
    %v1798 = vunpack.c.l.b16 %v615
    %v1799 = vunpack.c.h.b16 %v615
    %v1800 = vunpack.c.l.b16 %v616
    %v1801 = vunpack.c.h.b16 %v616
    %v1802 = vunpack.c.l.b16 %v617
    %v1803 = vunpack.c.h.b16 %v617
    %v1804 = vunpack.c.l.b16 %v618
    %v1805 = vunpack.c.h.b16 %v618
    %v1806 = vunpack.c.l.b16 %v619
    %v1807 = vunpack.c.h.b16 %v619
    %v1808 = vunpack.c.l.b16 %v620
    %v1809 = vunpack.c.h.b16 %v620
    %v1810 = vunpack.c.l.b16 %v621
    %v1811 = vunpack.c.h.b16 %v621
    %v1812 = vunpack.c.l.b16 %v622
    %v1813 = vunpack.c.h.b16 %v622
    %v1814 = vunpack.c.l.b16 %v623
    %v1815 = vunpack.c.h.b16 %v623
    %v1816 = vunpack.c.l.b16 %v624
    %v1817 = vunpack.c.h.b16 %v624
    %v1818 = vunpack.c.l.b16 %v625
    %v1819 = vunpack.c.h.b16 %v625
    %v1820 = vunpack.c.l.b16 %v626
    %v1821 = vunpack.c.h.b16 %v626
    %v1822 = vunpack.c.l.b16 %v627
    %v1823 = vunpack.c.h.b16 %v627
    %v1824 = vunpack.c.l.b16 %v628
    %v1825 = vunpack.c.h.b16 %v628
    %v1826 = vunpack.c.l.b16 %v629
    %v1827 = vunpack.c.h.b16 %v629
    %v1828 = vunpack.c.l.b16 %v630
    %v1829 = vunpack.c.h.b16 %v630
    %v1830 = vunpack.c.l.b16 %v631
    %v1831 = vunpack.c.h.b16 %v631
    %v1832 = vunpack.c.l.b16 %v632
    %v1833 = vunpack.c.h.b16 %v632
    %v1834 = vunpack.c.l.b16 %v633
    %v1835 = vunpack.c.h.b16 %v633
    %v1836 = vunpack.c.l.b16 %v634
    %v1837 = vunpack.c.h.b16 %v634
    %v1838 = vunpack.c.l.b16 %v635
    %v1839 = vunpack.c.h.b16 %v635
    %v1840 = vunpack.c.l.b16 %v636
    %v1841 = vunpack.c.h.b16 %v636
    %v1842 = vunpack.c.l.b16 %v637
    %v1843 = vunpack.c.h.b16 %v637
    %v1844 = vunpack.c.l.b16 %v638
    %v1845 = vunpack.c.h.b16 %v638
    %v1846 = vunpack.c.l.b16 %v639
    %v1847 = vunpack.c.h.b16 %v639
    %v1848 = vunpack.c.l.b16 %v640
    %v1849 = vunpack.c.h.b16 %v640
    %v1850 = vunpack.c.l.b16 %v641
    %v1851 = vunpack.c.h.b16 %v641
    %v1852 = vunpack.c.l.b16 %v642
    %v1853 = vunpack.c.h.b16 %v642
    %v1854 = vunpack.c.l.b16 %v643
    %v1855 = vunpack.c.h.b16 %v643
    %v1856 = vunpack.c.l.b16 %v644
    %v1857 = vunpack.c.h.b16 %v644
    %v1858 = vunpack.c.l.b16 %v645
    %v1859 = vunpack.c.h.b16 %v645
    %v1860 = vunpack.c.l.b16 %v646
    %v1861 = vunpack.c.h.b16 %v646
    %v1862 = vunpack.c.l.b16 %v647
    %v1863 = vunpack.c.h.b16 %v647
    %v1864 = vunpack.c.l.b16 %v648
    %v1865 = vunpack.c.h.b16 %v648
    %v1866 = vunpack.c.l.b16 %v649
    %v1867 = vunpack.c.h.b16 %v649
    %v1868 = vunpack.c.l.b16 %v650
    %v1869 = vunpack.c.h.b16 %v650
    %v1870 = vunpack.c.l.b16 %v651
    %v1871 = vunpack.c.h.b16 %v651
    %v1872 = vunpack.c.l.b16 %v652
    %v1873 = vunpack.c.h.b16 %v652
    %v1874 = vunpack.c.l.b16 %v653
    %v1875 = vunpack.c.h.b16 %v653
    %v1876 = vunpack.c.l.b16 %v654
    %v1877 = vunpack.c.h.b16 %v654
    %v1878 = vunpack.c.l.b16 %v655
    %v1879 = vunpack.c.h.b16 %v655
    %v1880 = vunpack.c.l.b16 %v656
    %v1881 = vunpack.c.h.b16 %v656
    %v1882 = vunpack.c.l.b16 %v657
    %v1883 = vunpack.c.h.b16 %v657
    %v1884 = vunpack.c.l.b16 %v658
    %v1885 = vunpack.c.h.b16 %v658
    %v1886 = vunpack.c.l.b16 %v659
    %v1887 = vunpack.c.h.b16 %v659
    %v1888 = vunpack.c.l.b16 %v660
    %v1889 = vunpack.c.h.b16 %v660
    %v1890 = vunpack.c.l.b16 %v661
    %v1891 = vunpack.c.h.b16 %v661
    %v1892 = vunpack.c.l.b16 %v662
    %v1893 = vunpack.c.h.b16 %v662
    %v1894 = vunpack.c.l.b16 %v663
    %v1895 = vunpack.c.h.b16 %v663
    %v1896 = vunpack.c.l.b16 %v664
    %v1897 = vunpack.c.h.b16 %v664
    %v1898 = vunpack.c.l.b16 %v665
    %v1899 = vunpack.c.h.b16 %v665
    %v1900 = vunpack.c.l.b16 %v666
    %v1901 = vunpack.c.h.b16 %v666
    %v1902 = vunpack.c.l.b16 %v667
    %v1903 = vunpack.c.h.b16 %v667
    %v1904 = vunpack.c.l.b16 %v668
    %v1905 = vunpack.c.h.b16 %v668
    %v1906 = vunpack.c.l.b16 %v669
    %v1907 = vunpack.c.h.b16 %v669
    %v1908 = vunpack.c.l.b16 %v670
    %v1909 = vunpack.c.h.b16 %v670
    %v1910 = vunpack.c.l.b16 %v671
    %v1911 = vunpack.c.h.b16 %v671
    %v1912 = vunpack.c.l.b16 %v672
    %v1913 = vunpack.c.h.b16 %v672
    %v1914 = vunpack.c.l.b16 %v673
    %v1915 = vunpack.c.h.b16 %v673
    %v1916 = vunpack.c.l.b16 %v674
    %v1917 = vunpack.c.h.b16 %v674
    %v1918 = vunpack.c.l.b16 %v675
    %v1919 = vunpack.c.h.b16 %v675
    %v1920 = vunpack.c.l.b16 %v676
    %v1921 = vunpack.c.h.b16 %v676
    %v1922 = vunpack.c.l.b16 %v677
    %v1923 = vunpack.c.h.b16 %v677
    %v1924 = vunpack.c.l.b16 %v678
    %v1925 = vunpack.c.h.b16 %v678
    %v1926 = vunpack.c.l.b16 %v679
    %v1927 = vunpack.c.h.b16 %v679
    %v1928 = vunpack.c.l.b16 %v680
    %v1929 = vunpack.c.h.b16 %v680
    %v1930 = vunpack.c.l.b16 %v681
    %v1931 = vunpack.c.h.b16 %v681
    %v1932 = vunpack.c.l.b16 %v682
    %v1933 = vunpack.c.h.b16 %v682
    %v1934 = vunpack.c.l.b16 %v683
    %v1935 = vunpack.c.h.b16 %v683
    %v1936 = vunpack.c.l.b16 %v684
    %v1937 = vunpack.c.h.b16 %v684
    %v1938 = vunpack.c.l.b16 %v685
    %v1939 = vunpack.c.h.b16 %v685
    %v1940 = vunpack.c.l.b16 %v686
    %v1941 = vunpack.c.h.b16 %v686
    %v1942 = vunpack.c.l.b16 %v687
    %v1943 = vunpack.c.h.b16 %v687
    %v1944 = vunpack.c.l.b16 %v688
    %v1945 = vunpack.c.h.b16 %v688
    %v1946 = vunpack.c.l.b16 %v689
    %v1947 = vunpack.c.h.b16 %v689
    %v1948 = vunpack.c.l.b16 %v690
    %v1949 = vunpack.c.h.b16 %v690
    %v1950 = vunpack.c.l.b16 %v691
    %v1951 = vunpack.c.h.b16 %v691
    %v1952 = vunpack.c.l.b16 %v692
    %v1953 = vunpack.c.h.b16 %v692
    %v1954 = vunpack.c.l.b16 %v693
    %v1955 = vunpack.c.h.b16 %v693
    %v1956 = vunpack.c.l.b16 %v694
    %v1957 = vunpack.c.h.b16 %v694
    %v1958 = vunpack.c.l.b16 %v695
    %v1959 = vunpack.c.h.b16 %v695
    %v1960 = vunpack.c.l.b16 %v696
    %v1961 = vunpack.c.h.b16 %v696
    %v1962 = vunpack.c.l.b16 %v697
    %v1963 = vunpack.c.h.b16 %v697
    %v1964 = vunpack.c.l.b16 %v698
    %v1965 = vunpack.c.h.b16 %v698
    %v1966 = vunpack.c.l.b16 %v699
    %v1967 = vunpack.c.h.b16 %v699
    %v1968 = vunpack.c.l.b16 %v700
    %v1969 = vunpack.c.h.b16 %v700
    %v1970 = vunpack.c.l.b16 %v701
    %v1971 = vunpack.c.h.b16 %v701
    %v1972 = vunpack.c.l.b16 %v702
    %v1973 = vunpack.c.h.b16 %v702
    %v1974 = vunpack.c.l.b16 %v703
    %v1975 = vunpack.c.h.b16 %v703
    %v1976 = vunpack.c.l.b16 %v704
    %v1977 = vunpack.c.h.b16 %v704
    %v1978 = vunpack.c.l.b16 %v705
    %v1979 = vunpack.c.h.b16 %v705
    %v1980 = vunpack.c.l.b16 %v706
    %v1981 = vunpack.c.h.b16 %v706
    %v1982 = vunpack.c.l.b16 %v707
    %v1983 = vunpack.c.h.b16 %v707
    %v1984 = vunpack.c.l.b16 %v708
    %v1985 = vunpack.c.h.b16 %v708
    %v1986 = vunpack.c.l.b16 %v709
    %v1987 = vunpack.c.h.b16 %v709
    %v1988 = vunpack.c.l.b16 %v710
    %v1989 = vunpack.c.h.b16 %v710
    %v1990 = vunpack.c.l.b16 %v711
    %v1991 = vunpack.c.h.b16 %v711
    %v1992 = vunpack.c.l.b16 %v712
    %v1993 = vunpack.c.h.b16 %v712
    %v1994 = vunpack.c.l.b16 %v713
    %v1995 = vunpack.c.h.b16 %v713
    %v1996 = vunpack.c.l.b16 %v714
    %v1997 = vunpack.c.h.b16 %v714
    %v1998 = vunpack.c.l.b16 %v715
    %v1999 = vunpack.c.h.b16 %v715
    %v2000 = vunpack.c.l.b16 %v716
    %v2001 = vunpack.c.h.b16 %v716
    %v2002 = vunpack.c.l.b16 %v717
    %v2003 = vunpack.c.h.b16 %v717
    %v2004 = vunpack.c.l.b16 %v718
    %v2005 = vunpack.c.h.b16 %v718
    %v2006 = vunpack.c.l.b16 %v719
    %v2007 = vunpack.c.h.b16 %v719
    %v2008 = vunpack.c.l.b16 %v720
    %v2009 = vunpack.c.h.b16 %v720
    %v2010 = vunpack.c.l.b16 %v721
    %v2011 = vunpack.c.h.b16 %v721
    %v2012 = vunpack.c.l.b16 %v722
    %v2013 = vunpack.c.h.b16 %v722
    %v2014 = vunpack.c.l.b16 %v723
    %v2015 = vunpack.c.h.b16 %v723
    %v2016 = vunpack.c.l.b16 %v724
    %v2017 = vunpack.c.h.b16 %v724
    %v2018 = vunpack.c.l.b16 %v725
    %v2019 = vunpack.c.h.b16 %v725
    %v2020 = vunpack.c.l.b16 %v726
    %v2021 = vunpack.c.h.b16 %v726
    %v2022 = vunpack.c.l.b16 %v727
    %v2023 = vunpack.c.h.b16 %v727
    %v2024 = vunpack.c.l.b16 %v728
    %v2025 = vunpack.c.h.b16 %v728
    %v2026 = vunpack.c.l.b16 %v729
    %v2027 = vunpack.c.h.b16 %v729
    %v2028 = vunpack.c.l.b16 %v730
    %v2029 = vunpack.c.h.b16 %v730
    %v2030 = vunpack.c.l.b16 %v731
    %v2031 = vunpack.c.h.b16 %v731
    %v2032 = vunpack.c.l.b16 %v732
    %v2033 = vunpack.c.h.b16 %v732
    %v2034 = vunpack.c.l.b16 %v733
    %v2035 = vunpack.c.h.b16 %v733
    %v2036 = vunpack.c.l.b16 %v734
    %v2037 = vunpack.c.h.b16 %v734
    %v2038 = vunpack.c.l.b16 %v735
    %v2039 = vunpack.c.h.b16 %v735
    %v2040 = vunpack.c.l.b16 %v736
    %v2041 = vunpack.c.h.b16 %v736
    %v2042 = vunpack.c.l.b16 %v737
    %v2043 = vunpack.c.h.b16 %v737
    %v2044 = vunpack.c.l.b16 %v738
    %v2045 = vunpack.c.h.b16 %v738
    %v2046 = vunpack.c.l.b16 %v739
    %v2047 = vunpack.c.h.b16 %v739
    %v2048 = vunpack.c.l.b16 %v740
    %v2049 = vunpack.c.h.b16 %v740
    %v2050 = vunpack.c.l.b16 %v741
    %v2051 = vunpack.c.h.b16 %v741
    %v2052 = vunpack.c.l.b16 %v742
    %v2053 = vunpack.c.h.b16 %v742
    %v2054 = vunpack.c.l.b16 %v743
    %v2055 = vunpack.c.h.b16 %v743
    %v2056 = vunpack.c.l.b16 %v744
    %v2057 = vunpack.c.h.b16 %v744
    %v2058 = vunpack.c.l.b16 %v745
    %v2059 = vunpack.c.h.b16 %v745
    %v2060 = vunpack.c.l.b16 %v746
    %v2061 = vunpack.c.h.b16 %v746
    %v2062 = vunpack.c.l.b16 %v747
    %v2063 = vunpack.c.h.b16 %v747
    %v2064 = vunpack.c.l.b16 %v748
    %v2065 = vunpack.c.h.b16 %v748
    %v2066 = vunpack.c.l.b16 %v749
    %v2067 = vunpack.c.h.b16 %v749
    %v2068 = vunpack.c.l.b16 %v750
    %v2069 = vunpack.c.h.b16 %v750
    %v2070 = vunpack.c.l.b16 %v751
    %v2071 = vunpack.c.h.b16 %v751
    %v2072 = vunpack.c.l.b16 %v752
    %v2073 = vunpack.c.h.b16 %v752
    %v2074 = vunpack.c.l.b16 %v753
    %v2075 = vunpack.c.h.b16 %v753
    %v2076 = vunpack.c.l.b16 %v754
    %v2077 = vunpack.c.h.b16 %v754
    %v2078 = vunpack.c.l.b16 %v755
    %v2079 = vunpack.c.h.b16 %v755
    %v2080 = vunpack.c.l.b16 %v756
    %v2081 = vunpack.c.h.b16 %v756
    %v2082 = vunpack.c.l.b16 %v757
    %v2083 = vunpack.c.h.b16 %v757
    %v2084 = vunpack.c.l.b16 %v758
    %v2085 = vunpack.c.h.b16 %v758
    %v2086 = vunpack.c.l.b16 %v759
    %v2087 = vunpack.c.h.b16 %v759
    %v2088 = vunpack.c.l.b16 %v760
    %v2089 = vunpack.c.h.b16 %v760
    %v2090 = vunpack.c.l.b16 %v761
    %v2091 = vunpack.c.h.b16 %v761
    %v2092 = vunpack.c.l.b16 %v762
    %v2093 = vunpack.c.h.b16 %v762
    %v2094 = vunpack.c.l.b16 %v763
    %v2095 = vunpack.c.h.b16 %v763
    %v2096 = vunpack.c.l.b16 %v764
    %v2097 = vunpack.c.h.b16 %v764
    %v2098 = vunpack.c.l.b16 %v765
    %v2099 = vunpack.c.h.b16 %v765
    %v2100 = vunpack.c.l.b16 %v766
    %v2101 = vunpack.c.h.b16 %v766
    %v2102 = vunpack.c.l.b16 %v767
    %v2103 = vunpack.c.h.b16 %v767
    %v2104 = vunpack.c.l.b16 %v768
    %v2105 = vunpack.c.h.b16 %v768
    %v2106 = vunpack.c.l.b16 %v769
    %v2107 = vunpack.c.h.b16 %v769
    %v2108 = vunpack.c.l.b16 %v770
    %v2109 = vunpack.c.h.b16 %v770
    %v2110 = vunpack.c.l.b16 %v771
    %v2111 = vunpack.c.h.b16 %v771
    %v2112 = vunpack.c.l.b16 %v772
    %v2113 = vunpack.c.h.b16 %v772
    %v2114 = vunpack.c.l.b16 %v773
    %v2115 = vunpack.c.h.b16 %v773
    %v2116 = vunpack.c.l.b16 %v774
    %v2117 = vunpack.c.h.b16 %v774
    %v2118 = vunpack.c.l.b16 %v775
    %v2119 = vunpack.c.h.b16 %v775
    %v2120 = vunpack.c.l.b16 %v776
    %v2121 = vunpack.c.h.b16 %v776
    %v2122 = vunpack.c.l.b16 %v777
    %v2123 = vunpack.c.h.b16 %v777
    %v2124 = vunpack.c.l.b16 %v778
    %v2125 = vunpack.c.h.b16 %v778
    %v2126 = vunpack.c.l.b16 %v779
    %v2127 = vunpack.c.h.b16 %v779
    %v2128 = vunpack.c.l.b16 %v780
    %v2129 = vunpack.c.h.b16 %v780
    %v2130 = vunpack.c.l.b16 %v781
    %v2131 = vunpack.c.h.b16 %v781
    %v2132 = vunpack.c.l.b16 %v782
    %v2133 = vunpack.c.h.b16 %v782
    %v2134 = vunpack.c.l.b16 %v783
    %v2135 = vunpack.c.h.b16 %v783
    %v2136 = vunpack.c.l.b16 %v784
    %v2137 = vunpack.c.h.b16 %v784
    %v2138 = vunpack.c.l.b16 %v785
    %v2139 = vunpack.c.h.b16 %v785
    %v2140 = vunpack.c.l.b16 %v786
    %v2141 = vunpack.c.h.b16 %v786
    %v2142 = vunpack.c.l.b16 %v787
    %v2143 = vunpack.c.h.b16 %v787
    %v2144 = vunpack.c.l.b16 %v788
    %v2145 = vunpack.c.h.b16 %v788
    %v2146 = vunpack.c.l.b16 %v789
    %v2147 = vunpack.c.h.b16 %v789
    %v2148 = vunpack.c.l.b16 %v790
    %v2149 = vunpack.c.h.b16 %v790
    %v2150 = vunpack.c.l.b16 %v791
    %v2151 = vunpack.c.h.b16 %v791
    %v2152 = vunpack.c.l.b16 %v792
    %v2153 = vunpack.c.h.b16 %v792
    %v2154 = vunpack.c.l.b16 %v793
    %v2155 = vunpack.c.h.b16 %v793
    %v2156 = vunpack.c.l.b16 %v794
    %v2157 = vunpack.c.h.b16 %v794
    %v2158 = vunpack.c.l.b16 %v795
    %v2159 = vunpack.c.h.b16 %v795
    %v2160 = vunpack.c.l.b16 %v796
    %v2161 = vunpack.c.h.b16 %v796
    %v2162 = vunpack.c.l.b16 %v797
    %v2163 = vunpack.c.h.b16 %v797
    %v2164 = vunpack.c.l.b16 %v798
    %v2165 = vunpack.c.h.b16 %v798
    %v2166 = vunpack.c.l.b16 %v799
    %v2167 = vunpack.c.h.b16 %v799
    %v2168 = vunpack.c.l.b16 %v800
    %v2169 = vunpack.c.h.b16 %v800
    %v2170 = vunpack.c.l.b16 %v801
    %v2171 = vunpack.c.h.b16 %v801
    %v2172 = vunpack.c.l.b16 %v802
    %v2173 = vunpack.c.h.b16 %v802
    %v2174 = vunpack.c.l.b16 %v803
    %v2175 = vunpack.c.h.b16 %v803
    %v2176 = vunpack.c.l.b16 %v804
    %v2177 = vunpack.c.h.b16 %v804
    %v2178 = vunpack.c.l.b16 %v805
    %v2179 = vunpack.c.h.b16 %v805
    %v2180 = vunpack.c.l.b16 %v806
    %v2181 = vunpack.c.h.b16 %v806
    %v2182 = vunpack.c.l.b16 %v807
    %v2183 = vunpack.c.h.b16 %v807
    %v2184 = vunpack.c.l.b16 %v808
    %v2185 = vunpack.c.h.b16 %v808
    %v2186 = vunpack.c.l.b16 %v809
    %v2187 = vunpack.c.h.b16 %v809
    %v2188 = vunpack.c.l.b16 %v810
    %v2189 = vunpack.c.h.b16 %v810
    %v2190 = vunpack.c.l.b16 %v811
    %v2191 = vunpack.c.h.b16 %v811
    %v2192 = vunpack.c.l.b16 %v812
    %v2193 = vunpack.c.h.b16 %v812
    %v2194 = vunpack.c.l.b16 %v813
    %v2195 = vunpack.c.h.b16 %v813
    %v2196 = vunpack.c.l.b16 %v814
    %v2197 = vunpack.c.h.b16 %v814
    %v2198 = vunpack.c.l.b16 %v815
    %v2199 = vunpack.c.h.b16 %v815
    %v2200 = vunpack.c.l.b16 %v816
    %v2201 = vunpack.c.h.b16 %v816
    %v2202 = vunpack.c.l.b16 %v817
    %v2203 = vunpack.c.h.b16 %v817
    %v2204 = vunpack.c.l.b16 %v818
    %v2205 = vunpack.c.h.b16 %v818
    %v2206 = vunpack.c.l.b16 %v819
    %v2207 = vunpack.c.h.b16 %v819
    %v2208 = vunpack.c.l.b16 %v820
    %v2209 = vunpack.c.h.b16 %v820
    %v2210 = vunpack.c.l.b16 %v821
    %v2211 = vunpack.c.h.b16 %v821
    %v2212 = vunpack.c.l.b16 %v822
    %v2213 = vunpack.c.h.b16 %v822
    %v2214 = vunpack.c.l.b16 %v823
    %v2215 = vunpack.c.h.b16 %v823
    %v2216 = vunpack.c.l.b16 %v824
    %v2217 = vunpack.c.h.b16 %v824
    %v2218 = vunpack.c.l.b16 %v825
    %v2219 = vunpack.c.h.b16 %v825
    %v2220 = vunpack.c.l.b16 %v826
    %v2221 = vunpack.c.h.b16 %v826
    %v2222 = vunpack.c.l.b16 %v827
    %v2223 = vunpack.c.h.b16 %v827
    %v2224 = vunpack.c.l.b16 %v828
    %v2225 = vunpack.c.h.b16 %v828
    %v2226 = vunpack.c.l.b16 %v829
    %v2227 = vunpack.c.h.b16 %v829
    %v2228 = vunpack.c.l.b16 %v830
    %v2229 = vunpack.c.h.b16 %v830
    %v2230 = vunpack.c.l.b16 %v831
    %v2231 = vunpack.c.h.b16 %v831
    %v2232 = vunpack.c.l.b16 %v832
    %v2233 = vunpack.c.h.b16 %v832
    %v2234 = vunpack.c.l.b16 %v833
    %v2235 = vunpack.c.h.b16 %v833
    %v2236 = vunpack.c.l.b16 %v834
    %v2237 = vunpack.c.h.b16 %v834
    %v2238 = vunpack.c.l.b16 %v835
    %v2239 = vunpack.c.h.b16 %v835
    %v2240 = vunpack.c.l.b16 %v836
    %v2241 = vunpack.c.h.b16 %v836
    %v2242 = vunpack.c.l.b16 %v837
    %v2243 = vunpack.c.h.b16 %v837
    %v2244 = vunpack.c.l.b16 %v838
    %v2245 = vunpack.c.h.b16 %v838
    %v2246 = vunpack.c.l.b16 %v839
    %v2247 = vunpack.c.h.b16 %v839
    %v2248 = vunpack.c.l.b16 %v840
    %v2249 = vunpack.c.h.b16 %v840
    %v2250 = vunpack.c.l.b16 %v841
    %v2251 = vunpack.c.h.b16 %v841
    %v2252 = vunpack.c.l.b16 %v842
    %v2253 = vunpack.c.h.b16 %v842
    %v2254 = vunpack.c.l.b16 %v843
    %v2255 = vunpack.c.h.b16 %v843
    %v2256 = vunpack.c.l.b16 %v844
    %v2257 = vunpack.c.h.b16 %v844
    %v2258 = vunpack.c.l.b16 %v845
    %v2259 = vunpack.c.h.b16 %v845
    %v2260 = vunpack.c.l.b16 %v846
    %v2261 = vunpack.c.h.b16 %v846
    %v2262 = vunpack.c.l.b16 %v847
    %v2263 = vunpack.c.h.b16 %v847
    %v2264 = vunpack.c.l.b16 %v848
    %v2265 = vunpack.c.h.b16 %v848
    %v2266 = vunpack.c.l.b16 %v849
    %v2267 = vunpack.c.h.b16 %v849
    %v2268 = vunpack.c.l.b16 %v850
    %v2269 = vunpack.c.h.b16 %v850
    %v2270 = vunpack.c.l.b16 %v851
    %v2271 = vunpack.c.h.b16 %v851
    %v2272 = vunpack.c.l.b16 %v852
    %v2273 = vunpack.c.h.b16 %v852
    %v2274 = vunpack.c.l.b16 %v853
    %v2275 = vunpack.c.h.b16 %v853
    %v2276 = vunpack.c.l.b16 %v854
    %v2277 = vunpack.c.h.b16 %v854
    %v2278 = vunpack.c.l.b16 %v855
    %v2279 = vunpack.c.h.b16 %v855
    %v2280 = vunpack.c.l.b16 %v856
    %v2281 = vunpack.c.h.b16 %v856
    %v2282 = vunpack.c.l.b16 %v857
    %v2283 = vunpack.c.h.b16 %v857
    %v2284 = vunpack.c.l.b16 %v858
    %v2285 = vunpack.c.h.b16 %v858
    %v2286 = vunpack.c.l.b16 %v859
    %v2287 = vunpack.c.h.b16 %v859
    %v2288 = vunpack.c.l.b16 %v860
    %v2289 = vunpack.c.h.b16 %v860
    %v2290 = vunpack.c.l.b16 %v861
    %v2291 = vunpack.c.h.b16 %v861
    %v2292 = vunpack.c.l.b16 %v862
    %v2293 = vunpack.c.h.b16 %v862
    %v2294 = vunpack.c.l.b16 %v863
    %v2295 = vunpack.c.h.b16 %v863
    %v2296 = vunpack.c.l.b16 %v864
    %v2297 = vunpack.c.h.b16 %v864
    %v2298 = vunpack.c.l.b16 %v865
    %v2299 = vunpack.c.h.b16 %v865
    %v2300 = vunpack.c.l.b16 %v866
    %v2301 = vunpack.c.h.b16 %v866
    %v2302 = vunpack.c.l.b16 %v867
    %v2303 = vunpack.c.h.b16 %v867
    %v2304 = vunpack.c.l.b16 %v868
    %v2305 = vunpack.c.h.b16 %v868
    %v2306 = vunpack.c.l.b16 %v869
    %v2307 = vunpack.c.h.b16 %v869
    %v2308 = vunpack.c.l.b16 %v870
    %v2309 = vunpack.c.h.b16 %v870
    %v2310 = vunpack.c.l.b16 %v871
    %v2311 = vunpack.c.h.b16 %v871
    %v2312 = vunpack.c.l.b16 %v872
    %v2313 = vunpack.c.h.b16 %v872
    %v2314 = vunpack.c.l.b16 %v873
    %v2315 = vunpack.c.h.b16 %v873
    %v2316 = vunpack.c.l.b16 %v874
    %v2317 = vunpack.c.h.b16 %v874
    %v2318 = vunpack.c.l.b16 %v875
    %v2319 = vunpack.c.h.b16 %v875
    %v2320 = vunpack.c.l.b16 %v876
    %v2321 = vunpack.c.h.b16 %v876
    %v2322 = vunpack.c.l.b16 %v877
    %v2323 = vunpack.c.h.b16 %v877
    %v2324 = vunpack.c.l.b16 %v878
    %v2325 = vunpack.c.h.b16 %v878
    %v2326 = vunpack.c.l.b16 %v879
    %v2327 = vunpack.c.h.b16 %v879
    %v2328 = vunpack.c.l.b16 %v880
    %v2329 = vunpack.c.h.b16 %v880
    %v2330 = vunpack.c.l.b16 %v881
    %v2331 = vunpack.c.h.b16 %v881
    %v2332 = vunpack.c.l.b16 %v882
    %v2333 = vunpack.c.h.b16 %v882
    %v2334 = vunpack.c.l.b16 %v883
    %v2335 = vunpack.c.h.b16 %v883
    %v2336 = vunpack.c.l.b16 %v884
    %v2337 = vunpack.c.h.b16 %v884
    %v2338 = vunpack.c.l.b16 %v885
    %v2339 = vunpack.c.h.b16 %v885
    %v2340 = vunpack.c.l.b16 %v886
    %v2341 = vunpack.c.h.b16 %v886
    %v2342 = vunpack.c.l.b16 %v887
    %v2343 = vunpack.c.h.b16 %v887
    %v2344 = vunpack.c.l.b16 %v888
    %v2345 = vunpack.c.h.b16 %v888
    %v2346 = vunpack.c.l.b16 %v889
    %v2347 = vunpack.c.h.b16 %v889
    %v2348 = vunpack.c.l.b16 %v890
    %v2349 = vunpack.c.h.b16 %v890
    %v2350 = vunpack.c.l.b16 %v891
    %v2351 = vunpack.c.h.b16 %v891
    %v2352 = vunpack.c.l.b16 %v892
    %v2353 = vunpack.c.h.b16 %v892
    %v2354 = vunpack.c.l.b16 %v893
    %v2355 = vunpack.c.h.b16 %v893
    %v2356 = vunpack.c.l.b16 %v894
    %v2357 = vunpack.c.h.b16 %v894
    %v2358 = vunpack.c.l.b16 %v895
    %v2359 = vunpack.c.h.b16 %v895
    %v2360 = vunpack.c.l.b16 %v896
    %v2361 = vunpack.c.h.b16 %v896
    %v2362 = vunpack.c.l.b16 %v897
    %v2363 = vunpack.c.h.b16 %v897
    %v2364 = vunpack.c.l.b16 %v898
    %v2365 = vunpack.c.h.b16 %v898
    %v2366 = vunpack.c.l.b16 %v899
    %v2367 = vunpack.c.h.b16 %v899
    %v2368 = vunpack.c.l.b16 %v900
    %v2369 = vunpack.c.h.b16 %v900
    %v2370 = vunpack.c.l.b16 %v901
    %v2371 = vunpack.c.h.b16 %v901
    %v2372 = vunpack.c.l.b16 %v902
    %v2373 = vunpack.c.h.b16 %v902
    %v2374 = vunpack.c.l.b16 %v903
    %v2375 = vunpack.c.h.b16 %v903
    %v2376 = vunpack.c.l.b16 %v904
    %v2377 = vunpack.c.h.b16 %v904
    %v2378 = vunpack.c.l.b16 %v905
    %v2379 = vunpack.c.h.b16 %v905
    %v2380 = vunpack.c.l.b16 %v906
    %v2381 = vunpack.c.h.b16 %v906
    %v2382 = vunpack.c.l.b16 %v907
    %v2383 = vunpack.c.h.b16 %v907
    %v2384 = vunpack.c.l.b16 %v908
    %v2385 = vunpack.c.h.b16 %v908
    %v2386 = vunpack.c.l.b16 %v909
    %v2387 = vunpack.c.h.b16 %v909
    %v2388 = vunpack.c.l.b16 %v910
    %v2389 = vunpack.c.h.b16 %v910
    %v2390 = vunpack.c.l.b16 %v911
    %v2391 = vunpack.c.h.b16 %v911
    %v2392 = vunpack.c.l.b16 %v912
    %v2393 = vunpack.c.h.b16 %v912
    %v2394 = vunpack.c.l.b16 %v913
    %v2395 = vunpack.c.h.b16 %v913
    %v2396 = vunpack.c.l.b16 %v914
    %v2397 = vunpack.c.h.b16 %v914
    %v2398 = vunpack.c.l.b16 %v915
    %v2399 = vunpack.c.h.b16 %v915
    %v2400 = vunpack.c.l.b16 %v916
    %v2401 = vunpack.c.h.b16 %v916
    %v2402 = vunpack.c.l.b16 %v917
    %v2403 = vunpack.c.h.b16 %v917
    %v2404 = vunpack.c.l.b16 %v918
    %v2405 = vunpack.c.h.b16 %v918
    %v2406 = vunpack.c.l.b16 %v919
    %v2407 = vunpack.c.h.b16 %v919
    %v2408 = vunpack.c.l.b16 %v920
    %v2409 = vunpack.c.h.b16 %v920
    %v2410 = vunpack.c.l.b16 %v921
    %v2411 = vunpack.c.h.b16 %v921
    %v2412 = vunpack.c.l.b16 %v922
    %v2413 = vunpack.c.h.b16 %v922
    %v2414 = vunpack.c.l.b16 %v923
    %v2415 = vunpack.c.h.b16 %v923
    %v2416 = vunpack.c.l.b16 %v924
    %v2417 = vunpack.c.h.b16 %v924
    %v2418 = vunpack.c.l.b16 %v925
    %v2419 = vunpack.c.h.b16 %v925
    %v2420 = vunpack.c.l.b16 %v926
    %v2421 = vunpack.c.h.b16 %v926
    %v2422 = vunpack.c.l.b16 %v927
    %v2423 = vunpack.c.h.b16 %v927
    %v2424 = vunpack.c.l.b16 %v928
    %v2425 = vunpack.c.h.b16 %v928
    %v2426 = vunpack.c.l.b16 %v929
    %v2427 = vunpack.c.h.b16 %v929
    %v2428 = vunpack.c.l.b16 %v930
    %v2429 = vunpack.c.h.b16 %v930
    %v2430 = vunpack.c.l.b16 %v931
    %v2431 = vunpack.c.h.b16 %v931
    %v2432 = vunpack.c.l.b16 %v932
    %v2433 = vunpack.c.h.b16 %v932
    %v2434 = vunpack.c.l.b16 %v933
    %v2435 = vunpack.c.h.b16 %v933
    %v2436 = vunpack.c.l.b16 %v934
    %v2437 = vunpack.c.h.b16 %v934
    %v2438 = vunpack.c.l.b16 %v935
    %v2439 = vunpack.c.h.b16 %v935
    %v2440 = vunpack.c.l.b16 %v936
    %v2441 = vunpack.c.h.b16 %v936
    %v2442 = vunpack.c.l.b16 %v937
    %v2443 = vunpack.c.h.b16 %v937
    %v2444 = vunpack.c.l.b16 %v938
    %v2445 = vunpack.c.h.b16 %v938
    %v2446 = vunpack.c.l.b16 %v939
    %v2447 = vunpack.c.h.b16 %v939
    %v2448 = vunpack.c.l.b16 %v940
    %v2449 = vunpack.c.h.b16 %v940
    %v2450 = vunpack.c.l.b16 %v941
    %v2451 = vunpack.c.h.b16 %v941
    %v2452 = vunpack.c.l.b16 %v942
    %v2453 = vunpack.c.h.b16 %v942
    %v2454 = vunpack.c.l.b16 %v943
    %v2455 = vunpack.c.h.b16 %v943
    %v2456 = vunpack.c.l.b16 %v944
    %v2457 = vunpack.c.h.b16 %v944
    %v2458 = vunpack.c.l.b16 %v945
    %v2459 = vunpack.c.h.b16 %v945
    %v2460 = vunpack.c.l.b16 %v946
    %v2461 = vunpack.c.h.b16 %v946
    %v2462 = vunpack.c.l.b16 %v947
    %v2463 = vunpack.c.h.b16 %v947
    %v2464 = vunpack.c.l.b16 %v948
    %v2465 = vunpack.c.h.b16 %v948
    %v2466 = vunpack.c.l.b16 %v949
    %v2467 = vunpack.c.h.b16 %v949
    %v2468 = vunpack.c.l.b16 %v950
    %v2469 = vunpack.c.h.b16 %v950
    %v2470 = vunpack.c.l.b16 %v951
    %v2471 = vunpack.c.h.b16 %v951
    %v2472 = vunpack.c.l.b16 %v952
    %v2473 = vunpack.c.h.b16 %v952
    %v2474 = vunpack.c.l.b16 %v953
    %v2475 = vunpack.c.h.b16 %v953
    %v2476 = vunpack.c.l.b16 %v954
    %v2477 = vunpack.c.h.b16 %v954
    %v2478 = vunpack.c.l.b16 %v955
    %v2479 = vunpack.c.h.b16 %v955
    %v2480 = vunpack.c.l.b16 %v956
    %v2481 = vunpack.c.h.b16 %v956
    %v2482 = vunpack.c.l.b16 %v957
    %v2483 = vunpack.c.h.b16 %v957
    %v2484 = vunpack.c.l.b16 %v958
    %v2485 = vunpack.c.h.b16 %v958
    %v2486 = vunpack.c.l.b16 %v959
    %v2487 = vunpack.c.h.b16 %v959
    %v2488 = vunpack.c.l.b16 %v960
    %v2489 = vunpack.c.h.b16 %v960
    %v2490 = vunpack.c.l.b16 %v961
    %v2491 = vunpack.c.h.b16 %v961
    %v2492 = vunpack.c.l.b16 %v962
    %v2493 = vunpack.c.h.b16 %v962
    %v2494 = vunpack.c.l.b16 %v963
    %v2495 = vunpack.c.h.b16 %v963
    %v2496 = vunpack.c.l.b16 %v964
    %v2497 = vunpack.c.h.b16 %v964
    %v2498 = vunpack.c.l.b16 %v965
    %v2499 = vunpack.c.h.b16 %v965
    %v2500 = vunpack.c.l.b16 %v966
    %v2501 = vunpack.c.h.b16 %v966
    %v2502 = vunpack.c.l.b16 %v967
    %v2503 = vunpack.c.h.b16 %v967
    %v2504 = vunpack.c.l.b16 %v968
    %v2505 = vunpack.c.h.b16 %v968
    %v2506 = vunpack.c.l.b16 %v969
    %v2507 = vunpack.c.h.b16 %v969
    %v2508 = vunpack.c.l.b16 %v970
    %v2509 = vunpack.c.h.b16 %v970
    %v2510 = vunpack.c.l.b16 %v971
    %v2511 = vunpack.c.h.b16 %v971
    %v2512 = vunpack.c.l.b16 %v972
    %v2513 = vunpack.c.h.b16 %v972
    %v2514 = vunpack.c.l.b16 %v973
    %v2515 = vunpack.c.h.b16 %v973
    %v2516 = vunpack.c.l.b16 %v974
    %v2517 = vunpack.c.h.b16 %v974
    %v2518 = vunpack.c.l.b16 %v975
    %v2519 = vunpack.c.h.b16 %v975
    %v2520 = vunpack.c.l.b16 %v976
    %v2521 = vunpack.c.h.b16 %v976
    %v2522 = vunpack.c.l.b16 %v977
    %v2523 = vunpack.c.h.b16 %v977
    %v2524 = vunpack.c.l.b16 %v978
    %v2525 = vunpack.c.h.b16 %v978
    %v2526 = vunpack.c.l.b16 %v979
    %v2527 = vunpack.c.h.b16 %v979
    %v2528 = vunpack.c.l.b16 %v980
    %v2529 = vunpack.c.h.b16 %v980
    %v2530 = vunpack.c.l.b16 %v981
    %v2531 = vunpack.c.h.b16 %v981
    %v2532 = vunpack.c.l.b16 %v982
    %v2533 = vunpack.c.h.b16 %v982
    %v2534 = vunpack.c.l.b16 %v983
    %v2535 = vunpack.c.h.b16 %v983
    %v2536 = vunpack.c.l.b16 %v984
    %v2537 = vunpack.c.h.b16 %v984
    %v2538 = vunpack.c.l.b16 %v985
    %v2539 = vunpack.c.h.b16 %v985
    %v2540 = vpack.c.b16 %v1524, %v1516
    %v2541 = vpack.c.b16 %v1525, %v1517
    %v2542 = vpack.c.b16 %v1526, %v1518
    %v2543 = vpack.c.b16 %v1527, %v1519
    %v2544 = vpack.c.b16 %v1528, %v1520
    %v2545 = vpack.c.b16 %v1529, %v1521
    %v2546 = vpack.c.b16 %v1530, %v1522
    %v2547 = vpack.c.b16 %v1531, %v1523
    %v2548 = vpack.c.b16 %v1540, %v1532
    %v2549 = vpack.c.b16 %v1541, %v1533
    %v2550 = vpack.c.b16 %v1542, %v1534
    %v2551 = vpack.c.b16 %v1543, %v1535
    %v2552 = vpack.c.b16 %v1544, %v1536
    %v2553 = vpack.c.b16 %v1545, %v1537
    %v2554 = vpack.c.b16 %v1546, %v1538
    %v2555 = vpack.c.b16 %v1547, %v1539
    %v2556 = vpack.c.b16 %v1556, %v1548
    %v2557 = vpack.c.b16 %v1557, %v1549
    %v2558 = vpack.c.b16 %v1558, %v1550
    %v2559 = vpack.c.b16 %v1559, %v1551
    %v2560 = vpack.c.b16 %v1560, %v1552
    %v2561 = vpack.c.b16 %v1561, %v1553
    %v2562 = vpack.c.b16 %v1562, %v1554
    %v2563 = vpack.c.b16 %v1563, %v1555
    %v2564 = vpack.c.b16 %v1572, %v1564
    %v2565 = vpack.c.b16 %v1573, %v1565
    %v2566 = vpack.c.b16 %v1574, %v1566
    %v2567 = vpack.c.b16 %v1575, %v1567
    %v2568 = vpack.c.b16 %v1576, %v1568
    %v2569 = vpack.c.b16 %v1577, %v1569
    %v2570 = vpack.c.b16 %v1578, %v1570
    %v2571 = vpack.c.b16 %v1579, %v1571
    %v2572 = vpack.c.b16 %v1588, %v1580
    %v2573 = vpack.c.b16 %v1589, %v1581
    %v2574 = vpack.c.b16 %v1590, %v1582
    %v2575 = vpack.c.b16 %v1591, %v1583
    %v2576 = vpack.c.b16 %v1592, %v1584
    %v2577 = vpack.c.b16 %v1593, %v1585
    %v2578 = vpack.c.b16 %v1594, %v1586
    %v2579 = vpack.c.b16 %v1595, %v1587
    %v2580 = vpack.c.b16 %v1604, %v1596
    %v2581 = vpack.c.b16 %v1605, %v1597
    %v2582 = vpack.c.b16 %v1606, %v1598
    %v2583 = vpack.c.b16 %v1607, %v1599
    %v2584 = vpack.c.b16 %v1608, %v1600
    %v2585 = vpack.c.b16 %v1609, %v1601
    %v2586 = vpack.c.b16 %v1610, %v1602
    %v2587 = vpack.c.b16 %v1611, %v1603
    %v2588 = vpack.c.b16 %v1620, %v1612
    %v2589 = vpack.c.b16 %v1621, %v1613
    %v2590 = vpack.c.b16 %v1622, %v1614
    %v2591 = vpack.c.b16 %v1623, %v1615
    %v2592 = vpack.c.b16 %v1624, %v1616
    %v2593 = vpack.c.b16 %v1625, %v1617
    %v2594 = vpack.c.b16 %v1626, %v1618
    %v2595 = vpack.c.b16 %v1627, %v1619
    %v2596 = vpack.c.b16 %v1636, %v1628
    %v2597 = vpack.c.b16 %v1637, %v1629
    %v2598 = vpack.c.b16 %v1638, %v1630
    %v2599 = vpack.c.b16 %v1639, %v1631
    %v2600 = vpack.c.b16 %v1640, %v1632
    %v2601 = vpack.c.b16 %v1641, %v1633
    %v2602 = vpack.c.b16 %v1642, %v1634
    %v2603 = vpack.c.b16 %v1643, %v1635
    %v2604 = vpack.c.b16 %v1652, %v1644
    %v2605 = vpack.c.b16 %v1653, %v1645
    %v2606 = vpack.c.b16 %v1654, %v1646
    %v2607 = vpack.c.b16 %v1655, %v1647
    %v2608 = vpack.c.b16 %v1656, %v1648
    %v2609 = vpack.c.b16 %v1657, %v1649
    %v2610 = vpack.c.b16 %v1658, %v1650
    %v2611 = vpack.c.b16 %v1659, %v1651
    %v2612 = vpack.c.b16 %v1668, %v1660
    %v2613 = vpack.c.b16 %v1669, %v1661
    %v2614 = vpack.c.b16 %v1670, %v1662
    %v2615 = vpack.c.b16 %v1671, %v1663
    %v2616 = vpack.c.b16 %v1672, %v1664
    %v2617 = vpack.c.b16 %v1673, %v1665
    %v2618 = vpack.c.b16 %v1674, %v1666
    %v2619 = vpack.c.b16 %v1675, %v1667
    %v2620 = vpack.c.b16 %v1684, %v1676
    %v2621 = vpack.c.b16 %v1685, %v1677
    %v2622 = vpack.c.b16 %v1686, %v1678
    %v2623 = vpack.c.b16 %v1687, %v1679
    %v2624 = vpack.c.b16 %v1688, %v1680
    %v2625 = vpack.c.b16 %v1689, %v1681
    %v2626 = vpack.c.b16 %v1690, %v1682
    %v2627 = vpack.c.b16 %v1691, %v1683
    %v2628 = vpack.c.b16 %v1700, %v1692
    %v2629 = vpack.c.b16 %v1701, %v1693
    %v2630 = vpack.c.b16 %v1702, %v1694
    %v2631 = vpack.c.b16 %v1703, %v1695
    %v2632 = vpack.c.b16 %v1704, %v1696
    %v2633 = vpack.c.b16 %v1705, %v1697
    %v2634 = vpack.c.b16 %v1706, %v1698
    %v2635 = vpack.c.b16 %v1707, %v1699
    %v2636 = vpack.c.b16 %v1716, %v1708
    %v2637 = vpack.c.b16 %v1717, %v1709
    %v2638 = vpack.c.b16 %v1718, %v1710
    %v2639 = vpack.c.b16 %v1719, %v1711
    %v2640 = vpack.c.b16 %v1720, %v1712
    %v2641 = vpack.c.b16 %v1721, %v1713
    %v2642 = vpack.c.b16 %v1722, %v1714
    %v2643 = vpack.c.b16 %v1723, %v1715
    %v2644 = vpack.c.b16 %v1732, %v1724
    %v2645 = vpack.c.b16 %v1733, %v1725
    %v2646 = vpack.c.b16 %v1734, %v1726
    %v2647 = vpack.c.b16 %v1735, %v1727
    %v2648 = vpack.c.b16 %v1736, %v1728
    %v2649 = vpack.c.b16 %v1737, %v1729
    %v2650 = vpack.c.b16 %v1738, %v1730
    %v2651 = vpack.c.b16 %v1739, %v1731
    %v2652 = vpack.c.b16 %v1748, %v1740
    %v2653 = vpack.c.b16 %v1749, %v1741
    %v2654 = vpack.c.b16 %v1750, %v1742
    %v2655 = vpack.c.b16 %v1751, %v1743
    %v2656 = vpack.c.b16 %v1752, %v1744
    %v2657 = vpack.c.b16 %v1753, %v1745
    %v2658 = vpack.c.b16 %v1754, %v1746
    %v2659 = vpack.c.b16 %v1755, %v1747
    %v2660 = vpack.c.b16 %v1764, %v1756
    %v2661 = vpack.c.b16 %v1765, %v1757
    %v2662 = vpack.c.b16 %v1766, %v1758
    %v2663 = vpack.c.b16 %v1767, %v1759
    %v2664 = vpack.c.b16 %v1768, %v1760
    %v2665 = vpack.c.b16 %v1769, %v1761
    %v2666 = vpack.c.b16 %v1770, %v1762
    %v2667 = vpack.c.b16 %v1771, %v1763
    %v2668 = vpack.c.b16 %v1780, %v1772
    %v2669 = vpack.c.b16 %v1781, %v1773
    %v2670 = vpack.c.b16 %v1782, %v1774
    %v2671 = vpack.c.b16 %v1783, %v1775
    %v2672 = vpack.c.b16 %v1784, %v1776
    %v2673 = vpack.c.b16 %v1785, %v1777
    %v2674 = vpack.c.b16 %v1786, %v1778
    %v2675 = vpack.c.b16 %v1787, %v1779
    %v2676 = vpack.c.b16 %v1796, %v1788
    %v2677 = vpack.c.b16 %v1797, %v1789
    %v2678 = vpack.c.b16 %v1798, %v1790
    %v2679 = vpack.c.b16 %v1799, %v1791
    %v2680 = vpack.c.b16 %v1800, %v1792
    %v2681 = vpack.c.b16 %v1801, %v1793
    %v2682 = vpack.c.b16 %v1802, %v1794
    %v2683 = vpack.c.b16 %v1803, %v1795
    %v2684 = vpack.c.b16 %v1812, %v1804
    %v2685 = vpack.c.b16 %v1813, %v1805
    %v2686 = vpack.c.b16 %v1814, %v1806
    %v2687 = vpack.c.b16 %v1815, %v1807
    %v2688 = vpack.c.b16 %v1816, %v1808
    %v2689 = vpack.c.b16 %v1817, %v1809
    %v2690 = vpack.c.b16 %v1818, %v1810
    %v2691 = vpack.c.b16 %v1819, %v1811
    %v2692 = vpack.c.b16 %v1828, %v1820
    %v2693 = vpack.c.b16 %v1829, %v1821
    %v2694 = vpack.c.b16 %v1830, %v1822
    %v2695 = vpack.c.b16 %v1831, %v1823
    %v2696 = vpack.c.b16 %v1832, %v1824
    %v2697 = vpack.c.b16 %v1833, %v1825
    %v2698 = vpack.c.b16 %v1834, %v1826
    %v2699 = vpack.c.b16 %v1835, %v1827
    %v2700 = vpack.c.b16 %v1844, %v1836
    %v2701 = vpack.c.b16 %v1845, %v1837
    %v2702 = vpack.c.b16 %v1846, %v1838
    %v2703 = vpack.c.b16 %v1847, %v1839
    %v2704 = vpack.c.b16 %v1848, %v1840
    %v2705 = vpack.c.b16 %v1849, %v1841
    %v2706 = vpack.c.b16 %v1850, %v1842
    %v2707 = vpack.c.b16 %v1851, %v1843
    %v2708 = vpack.c.b16 %v1860, %v1852
    %v2709 = vpack.c.b16 %v1861, %v1853
    %v2710 = vpack.c.b16 %v1862, %v1854
    %v2711 = vpack.c.b16 %v1863, %v1855
    %v2712 = vpack.c.b16 %v1864, %v1856
    %v2713 = vpack.c.b16 %v1865, %v1857
    %v2714 = vpack.c.b16 %v1866, %v1858
    %v2715 = vpack.c.b16 %v1867, %v1859
    %v2716 = vpack.c.b16 %v1876, %v1868
    %v2717 = vpack.c.b16 %v1877, %v1869
    %v2718 = vpack.c.b16 %v1878, %v1870
    %v2719 = vpack.c.b16 %v1879, %v1871
    %v2720 = vpack.c.b16 %v1880, %v1872
    %v2721 = vpack.c.b16 %v1881, %v1873
    %v2722 = vpack.c.b16 %v1882, %v1874
    %v2723 = vpack.c.b16 %v1883, %v1875
    %v2724 = vpack.c.b16 %v1892, %v1884
    %v2725 = vpack.c.b16 %v1893, %v1885
    %v2726 = vpack.c.b16 %v1894, %v1886
    %v2727 = vpack.c.b16 %v1895, %v1887
    %v2728 = vpack.c.b16 %v1896, %v1888
    %v2729 = vpack.c.b16 %v1897, %v1889
    %v2730 = vpack.c.b16 %v1898, %v1890
    %v2731 = vpack.c.b16 %v1899, %v1891
    %v2732 = vpack.c.b16 %v1908, %v1900
    %v2733 = vpack.c.b16 %v1909, %v1901
    %v2734 = vpack.c.b16 %v1910, %v1902
    %v2735 = vpack.c.b16 %v1911, %v1903
    %v2736 = vpack.c.b16 %v1912, %v1904
    %v2737 = vpack.c.b16 %v1913, %v1905
    %v2738 = vpack.c.b16 %v1914, %v1906
    %v2739 = vpack.c.b16 %v1915, %v1907
    %v2740 = vpack.c.b16 %v1924, %v1916
    %v2741 = vpack.c.b16 %v1925, %v1917
    %v2742 = vpack.c.b16 %v1926, %v1918
    %v2743 = vpack.c.b16 %v1927, %v1919
    %v2744 = vpack.c.b16 %v1928, %v1920
    %v2745 = vpack.c.b16 %v1929, %v1921
    %v2746 = vpack.c.b16 %v1930, %v1922
    %v2747 = vpack.c.b16 %v1931, %v1923
    %v2748 = vpack.c.b16 %v1940, %v1932
    %v2749 = vpack.c.b16 %v1941, %v1933
    %v2750 = vpack.c.b16 %v1942, %v1934
    %v2751 = vpack.c.b16 %v1943, %v1935
    %v2752 = vpack.c.b16 %v1944, %v1936
    %v2753 = vpack.c.b16 %v1945, %v1937
    %v2754 = vpack.c.b16 %v1946, %v1938
    %v2755 = vpack.c.b16 %v1947, %v1939
    %v2756 = vpack.c.b16 %v1956, %v1948
    %v2757 = vpack.c.b16 %v1957, %v1949
    %v2758 = vpack.c.b16 %v1958, %v1950
    %v2759 = vpack.c.b16 %v1959, %v1951
    %v2760 = vpack.c.b16 %v1960, %v1952
    %v2761 = vpack.c.b16 %v1961, %v1953
    %v2762 = vpack.c.b16 %v1962, %v1954
    %v2763 = vpack.c.b16 %v1963, %v1955
    %v2764 = vpack.c.b16 %v1972, %v1964
    %v2765 = vpack.c.b16 %v1973, %v1965
    %v2766 = vpack.c.b16 %v1974, %v1966
    %v2767 = vpack.c.b16 %v1975, %v1967
    %v2768 = vpack.c.b16 %v1976, %v1968
    %v2769 = vpack.c.b16 %v1977, %v1969
    %v2770 = vpack.c.b16 %v1978, %v1970
    %v2771 = vpack.c.b16 %v1979, %v1971
    %v2772 = vpack.c.b16 %v1988, %v1980
    %v2773 = vpack.c.b16 %v1989, %v1981
    %v2774 = vpack.c.b16 %v1990, %v1982
    %v2775 = vpack.c.b16 %v1991, %v1983
    %v2776 = vpack.c.b16 %v1992, %v1984
    %v2777 = vpack.c.b16 %v1993, %v1985
    %v2778 = vpack.c.b16 %v1994, %v1986
    %v2779 = vpack.c.b16 %v1995, %v1987
    %v2780 = vpack.c.b16 %v2004, %v1996
    %v2781 = vpack.c.b16 %v2005, %v1997
    %v2782 = vpack.c.b16 %v2006, %v1998
    %v2783 = vpack.c.b16 %v2007, %v1999
    %v2784 = vpack.c.b16 %v2008, %v2000
    %v2785 = vpack.c.b16 %v2009, %v2001
    %v2786 = vpack.c.b16 %v2010, %v2002
    %v2787 = vpack.c.b16 %v2011, %v2003
    %v2788 = vpack.c.b16 %v2020, %v2012
    %v2789 = vpack.c.b16 %v2021, %v2013
    %v2790 = vpack.c.b16 %v2022, %v2014
    %v2791 = vpack.c.b16 %v2023, %v2015
    %v2792 = vpack.c.b16 %v2024, %v2016
    %v2793 = vpack.c.b16 %v2025, %v2017
    %v2794 = vpack.c.b16 %v2026, %v2018
    %v2795 = vpack.c.b16 %v2027, %v2019
    %v2796 = vpack.c.b16 %v2036, %v2028
    %v2797 = vpack.c.b16 %v2037, %v2029
    %v2798 = vpack.c.b16 %v2038, %v2030
    %v2799 = vpack.c.b16 %v2039, %v2031
    %v2800 = vpack.c.b16 %v2040, %v2032
    %v2801 = vpack.c.b16 %v2041, %v2033
    %v2802 = vpack.c.b16 %v2042, %v2034
    %v2803 = vpack.c.b16 %v2043, %v2035
    %v2804 = vpack.c.b16 %v2052, %v2044
    %v2805 = vpack.c.b16 %v2053, %v2045
    %v2806 = vpack.c.b16 %v2054, %v2046
    %v2807 = vpack.c.b16 %v2055, %v2047
    %v2808 = vpack.c.b16 %v2056, %v2048
    %v2809 = vpack.c.b16 %v2057, %v2049
    %v2810 = vpack.c.b16 %v2058, %v2050
    %v2811 = vpack.c.b16 %v2059, %v2051
    %v2812 = vpack.c.b16 %v2068, %v2060
    %v2813 = vpack.c.b16 %v2069, %v2061
    %v2814 = vpack.c.b16 %v2070, %v2062
    %v2815 = vpack.c.b16 %v2071, %v2063
    %v2816 = vpack.c.b16 %v2072, %v2064
    %v2817 = vpack.c.b16 %v2073, %v2065
    %v2818 = vpack.c.b16 %v2074, %v2066
    %v2819 = vpack.c.b16 %v2075, %v2067
    %v2820 = vpack.c.b16 %v2084, %v2076
    %v2821 = vpack.c.b16 %v2085, %v2077
    %v2822 = vpack.c.b16 %v2086, %v2078
    %v2823 = vpack.c.b16 %v2087, %v2079
    %v2824 = vpack.c.b16 %v2088, %v2080
    %v2825 = vpack.c.b16 %v2089, %v2081
    %v2826 = vpack.c.b16 %v2090, %v2082
    %v2827 = vpack.c.b16 %v2091, %v2083
    %v2828 = vpack.c.b16 %v2100, %v2092
    %v2829 = vpack.c.b16 %v2101, %v2093
    %v2830 = vpack.c.b16 %v2102, %v2094
    %v2831 = vpack.c.b16 %v2103, %v2095
    %v2832 = vpack.c.b16 %v2104, %v2096
    %v2833 = vpack.c.b16 %v2105, %v2097
    %v2834 = vpack.c.b16 %v2106, %v2098
    %v2835 = vpack.c.b16 %v2107, %v2099
    %v2836 = vpack.c.b16 %v2116, %v2108
    %v2837 = vpack.c.b16 %v2117, %v2109
    %v2838 = vpack.c.b16 %v2118, %v2110
    %v2839 = vpack.c.b16 %v2119, %v2111
    %v2840 = vpack.c.b16 %v2120, %v2112
    %v2841 = vpack.c.b16 %v2121, %v2113
    %v2842 = vpack.c.b16 %v2122, %v2114
    %v2843 = vpack.c.b16 %v2123, %v2115
    %v2844 = vpack.c.b16 %v2132, %v2124
    %v2845 = vpack.c.b16 %v2133, %v2125
    %v2846 = vpack.c.b16 %v2134, %v2126
    %v2847 = vpack.c.b16 %v2135, %v2127
    %v2848 = vpack.c.b16 %v2136, %v2128
    %v2849 = vpack.c.b16 %v2137, %v2129
    %v2850 = vpack.c.b16 %v2138, %v2130
    %v2851 = vpack.c.b16 %v2139, %v2131
    %v2852 = vpack.c.b16 %v2148, %v2140
    %v2853 = vpack.c.b16 %v2149, %v2141
    %v2854 = vpack.c.b16 %v2150, %v2142
    %v2855 = vpack.c.b16 %v2151, %v2143
    %v2856 = vpack.c.b16 %v2152, %v2144
    %v2857 = vpack.c.b16 %v2153, %v2145
    %v2858 = vpack.c.b16 %v2154, %v2146
    %v2859 = vpack.c.b16 %v2155, %v2147
    %v2860 = vpack.c.b16 %v2164, %v2156
    %v2861 = vpack.c.b16 %v2165, %v2157
    %v2862 = vpack.c.b16 %v2166, %v2158
    %v2863 = vpack.c.b16 %v2167, %v2159
    %v2864 = vpack.c.b16 %v2168, %v2160
    %v2865 = vpack.c.b16 %v2169, %v2161
    %v2866 = vpack.c.b16 %v2170, %v2162
    %v2867 = vpack.c.b16 %v2171, %v2163
    %v2868 = vpack.c.b16 %v2180, %v2172
    %v2869 = vpack.c.b16 %v2181, %v2173
    %v2870 = vpack.c.b16 %v2182, %v2174
    %v2871 = vpack.c.b16 %v2183, %v2175
    %v2872 = vpack.c.b16 %v2184, %v2176
    %v2873 = vpack.c.b16 %v2185, %v2177
    %v2874 = vpack.c.b16 %v2186, %v2178
    %v2875 = vpack.c.b16 %v2187, %v2179
    %v2876 = vpack.c.b16 %v2196, %v2188
    %v2877 = vpack.c.b16 %v2197, %v2189
    %v2878 = vpack.c.b16 %v2198, %v2190
    %v2879 = vpack.c.b16 %v2199, %v2191
    %v2880 = vpack.c.b16 %v2200, %v2192
    %v2881 = vpack.c.b16 %v2201, %v2193
    %v2882 = vpack.c.b16 %v2202, %v2194
    %v2883 = vpack.c.b16 %v2203, %v2195
    %v2884 = vpack.c.b16 %v2212, %v2204
    %v2885 = vpack.c.b16 %v2213, %v2205
    %v2886 = vpack.c.b16 %v2214, %v2206
    %v2887 = vpack.c.b16 %v2215, %v2207
    %v2888 = vpack.c.b16 %v2216, %v2208
    %v2889 = vpack.c.b16 %v2217, %v2209
    %v2890 = vpack.c.b16 %v2218, %v2210
    %v2891 = vpack.c.b16 %v2219, %v2211
    %v2892 = vpack.c.b16 %v2228, %v2220
    %v2893 = vpack.c.b16 %v2229, %v2221
    %v2894 = vpack.c.b16 %v2230, %v2222
    %v2895 = vpack.c.b16 %v2231, %v2223
    %v2896 = vpack.c.b16 %v2232, %v2224
    %v2897 = vpack.c.b16 %v2233, %v2225
    %v2898 = vpack.c.b16 %v2234, %v2226
    %v2899 = vpack.c.b16 %v2235, %v2227
    %v2900 = vpack.c.b16 %v2244, %v2236
    %v2901 = vpack.c.b16 %v2245, %v2237
    %v2902 = vpack.c.b16 %v2246, %v2238
    %v2903 = vpack.c.b16 %v2247, %v2239
    %v2904 = vpack.c.b16 %v2248, %v2240
    %v2905 = vpack.c.b16 %v2249, %v2241
    %v2906 = vpack.c.b16 %v2250, %v2242
    %v2907 = vpack.c.b16 %v2251, %v2243
    %v2908 = vpack.c.b16 %v2260, %v2252
    %v2909 = vpack.c.b16 %v2261, %v2253
    %v2910 = vpack.c.b16 %v2262, %v2254
    %v2911 = vpack.c.b16 %v2263, %v2255
    %v2912 = vpack.c.b16 %v2264, %v2256
    %v2913 = vpack.c.b16 %v2265, %v2257
    %v2914 = vpack.c.b16 %v2266, %v2258
    %v2915 = vpack.c.b16 %v2267, %v2259
    %v2916 = vpack.c.b16 %v2276, %v2268
    %v2917 = vpack.c.b16 %v2277, %v2269
    %v2918 = vpack.c.b16 %v2278, %v2270
    %v2919 = vpack.c.b16 %v2279, %v2271
    %v2920 = vpack.c.b16 %v2280, %v2272
    %v2921 = vpack.c.b16 %v2281, %v2273
    %v2922 = vpack.c.b16 %v2282, %v2274
    %v2923 = vpack.c.b16 %v2283, %v2275
    %v2924 = vpack.c.b16 %v2292, %v2284
    %v2925 = vpack.c.b16 %v2293, %v2285
    %v2926 = vpack.c.b16 %v2294, %v2286
    %v2927 = vpack.c.b16 %v2295, %v2287
    %v2928 = vpack.c.b16 %v2296, %v2288
    %v2929 = vpack.c.b16 %v2297, %v2289
    %v2930 = vpack.c.b16 %v2298, %v2290
    %v2931 = vpack.c.b16 %v2299, %v2291
    %v2932 = vpack.c.b16 %v2308, %v2300
    %v2933 = vpack.c.b16 %v2309, %v2301
    %v2934 = vpack.c.b16 %v2310, %v2302
    %v2935 = vpack.c.b16 %v2311, %v2303
    %v2936 = vpack.c.b16 %v2312, %v2304
    %v2937 = vpack.c.b16 %v2313, %v2305
    %v2938 = vpack.c.b16 %v2314, %v2306
    %v2939 = vpack.c.b16 %v2315, %v2307
    %v2940 = vpack.c.b16 %v2324, %v2316
    %v2941 = vpack.c.b16 %v2325, %v2317
    %v2942 = vpack.c.b16 %v2326, %v2318
    %v2943 = vpack.c.b16 %v2327, %v2319
    %v2944 = vpack.c.b16 %v2328, %v2320
    %v2945 = vpack.c.b16 %v2329, %v2321
    %v2946 = vpack.c.b16 %v2330, %v2322
    %v2947 = vpack.c.b16 %v2331, %v2323
    %v2948 = vpack.c.b16 %v2340, %v2332
    %v2949 = vpack.c.b16 %v2341, %v2333
    %v2950 = vpack.c.b16 %v2342, %v2334
    %v2951 = vpack.c.b16 %v2343, %v2335
    %v2952 = vpack.c.b16 %v2344, %v2336
    %v2953 = vpack.c.b16 %v2345, %v2337
    %v2954 = vpack.c.b16 %v2346, %v2338
    %v2955 = vpack.c.b16 %v2347, %v2339
    %v2956 = vpack.c.b16 %v2356, %v2348
    %v2957 = vpack.c.b16 %v2357, %v2349
    %v2958 = vpack.c.b16 %v2358, %v2350
    %v2959 = vpack.c.b16 %v2359, %v2351
    %v2960 = vpack.c.b16 %v2360, %v2352
    %v2961 = vpack.c.b16 %v2361, %v2353
    %v2962 = vpack.c.b16 %v2362, %v2354
    %v2963 = vpack.c.b16 %v2363, %v2355
    %v2964 = vpack.c.b16 %v2372, %v2364
    %v2965 = vpack.c.b16 %v2373, %v2365
    %v2966 = vpack.c.b16 %v2374, %v2366
    %v2967 = vpack.c.b16 %v2375, %v2367
    %v2968 = vpack.c.b16 %v2376, %v2368
    %v2969 = vpack.c.b16 %v2377, %v2369
    %v2970 = vpack.c.b16 %v2378, %v2370
    %v2971 = vpack.c.b16 %v2379, %v2371
    %v2972 = vpack.c.b16 %v2388, %v2380
    %v2973 = vpack.c.b16 %v2389, %v2381
    %v2974 = vpack.c.b16 %v2390, %v2382
    %v2975 = vpack.c.b16 %v2391, %v2383
    %v2976 = vpack.c.b16 %v2392, %v2384
    %v2977 = vpack.c.b16 %v2393, %v2385
    %v2978 = vpack.c.b16 %v2394, %v2386
    %v2979 = vpack.c.b16 %v2395, %v2387
    %v2980 = vpack.c.b16 %v2404, %v2396
    %v2981 = vpack.c.b16 %v2405, %v2397
    %v2982 = vpack.c.b16 %v2406, %v2398
    %v2983 = vpack.c.b16 %v2407, %v2399
    %v2984 = vpack.c.b16 %v2408, %v2400
    %v2985 = vpack.c.b16 %v2409, %v2401
    %v2986 = vpack.c.b16 %v2410, %v2402
    %v2987 = vpack.c.b16 %v2411, %v2403
    %v2988 = vpack.c.b16 %v2420, %v2412
    %v2989 = vpack.c.b16 %v2421, %v2413
    %v2990 = vpack.c.b16 %v2422, %v2414
    %v2991 = vpack.c.b16 %v2423, %v2415
    %v2992 = vpack.c.b16 %v2424, %v2416
    %v2993 = vpack.c.b16 %v2425, %v2417
    %v2994 = vpack.c.b16 %v2426, %v2418
    %v2995 = vpack.c.b16 %v2427, %v2419
    %v2996 = vpack.c.b16 %v2436, %v2428
    %v2997 = vpack.c.b16 %v2437, %v2429
    %v2998 = vpack.c.b16 %v2438, %v2430
    %v2999 = vpack.c.b16 %v2439, %v2431
    %v3000 = vpack.c.b16 %v2440, %v2432
    %v3001 = vpack.c.b16 %v2441, %v2433
    %v3002 = vpack.c.b16 %v2442, %v2434
    %v3003 = vpack.c.b16 %v2443, %v2435
    %v3004 = vpack.c.b16 %v2452, %v2444
    %v3005 = vpack.c.b16 %v2453, %v2445
    %v3006 = vpack.c.b16 %v2454, %v2446
    %v3007 = vpack.c.b16 %v2455, %v2447
    %v3008 = vpack.c.b16 %v2456, %v2448
    %v3009 = vpack.c.b16 %v2457, %v2449
    %v3010 = vpack.c.b16 %v2458, %v2450
    %v3011 = vpack.c.b16 %v2459, %v2451
    %v3012 = vpack.c.b16 %v2468, %v2460
    %v3013 = vpack.c.b16 %v2469, %v2461
    %v3014 = vpack.c.b16 %v2470, %v2462
    %v3015 = vpack.c.b16 %v2471, %v2463
    %v3016 = vpack.c.b16 %v2472, %v2464
    %v3017 = vpack.c.b16 %v2473, %v2465
    %v3018 = vpack.c.b16 %v2474, %v2466
    %v3019 = vpack.c.b16 %v2475, %v2467
    %v3020 = vpack.c.b16 %v2484, %v2476
    %v3021 = vpack.c.b16 %v2485, %v2477
    %v3022 = vpack.c.b16 %v2486, %v2478
    %v3023 = vpack.c.b16 %v2487, %v2479
    %v3024 = vpack.c.b16 %v2488, %v2480
    %v3025 = vpack.c.b16 %v2489, %v2481
    %v3026 = vpack.c.b16 %v2490, %v2482
    %v3027 = vpack.c.b16 %v2491, %v2483
    %v3028 = vpack.c.b16 %v2500, %v2492
    %v3029 = vpack.c.b16 %v2501, %v2493
    %v3030 = vpack.c.b16 %v2502, %v2494
    %v3031 = vpack.c.b16 %v2503, %v2495
    %v3032 = vpack.c.b16 %v2504, %v2496
    %v3033 = vpack.c.b16 %v2505, %v2497
    %v3034 = vpack.c.b16 %v2506, %v2498
    %v3035 = vpack.c.b16 %v2507, %v2499
    %v3036 = vpack.c.b16 %v2516, %v2508
    %v3037 = vpack.c.b16 %v2517, %v2509
    %v3038 = vpack.c.b16 %v2518, %v2510
    %v3039 = vpack.c.b16 %v2519, %v2511
    %v3040 = vpack.c.b16 %v2520, %v2512
    %v3041 = vpack.c.b16 %v2521, %v2513
    %v3042 = vpack.c.b16 %v2522, %v2514
    %v3043 = vpack.c.b16 %v2523, %v2515
    %v3044 = vpack.c.b16 %v2532, %v2524
    %v3045 = vpack.c.b16 %v2533, %v2525
    %v3046 = vpack.c.b16 %v2534, %v2526
    %v3047 = vpack.c.b16 %v2535, %v2527
    %v3048 = vpack.c.b16 %v2536, %v2528
    %v3049 = vpack.c.b16 %v2537, %v2529
    %v3050 = vpack.c.b16 %v2538, %v2530
    %v3051 = vpack.c.b16 %v2539, %v2531
    %3564 = vmatpush.bf16.msra.mxu0 %v2596
    %3565 = vmatpush.bf16.msra.mxu0 %v2588
    %3566 = vmatpush.bf16.msra.mxu0 %v2580
    %3567 = vmatpush.bf16.msra.mxu0 %v2572
    %3568 = vmatpush.bf16.msra.mxu0 %v2564
    %3569 = vmatpush.bf16.msra.mxu0 %v2556
    %3570 = vmatpush.bf16.msra.mxu0 %v2548
    %3571 = vmatpush.bf16.msra.mxu0 %v2540
    %3572 = vmatmul.bf16.gmra.mxu0 %v466
    %v3573 = vpop.f32.mrf.mxu0
    %v3574 = vadd.f32 %v988, %v3573
    %v3575 = vpop.f32.mrf.mxu0
    %3576 = vdwg.mxu0
    %3577 = vmatpush.bf16.msra.mxu0 %v2660
    %3578 = vmatpush.bf16.msra.mxu0 %v2652
    %3579 = vmatpush.bf16.msra.mxu0 %v2644
    %3580 = vmatpush.bf16.msra.mxu0 %v2636
    %3581 = vmatpush.bf16.msra.mxu0 %v2628
    %3582 = vmatpush.bf16.msra.mxu0 %v2620
    %3583 = vmatpush.bf16.msra.mxu0 %v2612
    %3584 = vmatpush.bf16.msra.mxu0 %v2604
    %3585 = vmatmul.bf16.gmra.mxu0 %v467
    %v3586 = vpop.f32.mrf.mxu0
    %v3587 = vadd.f32 %v3574, %v3586
    %v3588 = vpop.f32.mrf.mxu0
    %3589 = vdwg.mxu0
    %3590 = vmatpush.bf16.msra.mxu0 %v2724
    %3591 = vmatpush.bf16.msra.mxu0 %v2716
    %3592 = vmatpush.bf16.msra.mxu0 %v2708
    %3593 = vmatpush.bf16.msra.mxu0 %v2700
    %3594 = vmatpush.bf16.msra.mxu0 %v2692
    %3595 = vmatpush.bf16.msra.mxu0 %v2684
    %3596 = vmatpush.bf16.msra.mxu0 %v2676
    %3597 = vmatpush.bf16.msra.mxu0 %v2668
    %3598 = vmatmul.bf16.gmra.mxu0 %v468
    %v3599 = vpop.f32.mrf.mxu0
    %v3600 = vadd.f32 %v3587, %v3599
    %v3601 = vpop.f32.mrf.mxu0
    %3602 = vdwg.mxu0
    %3603 = vmatpush.bf16.msra.mxu0 %v2788
    %3604 = vmatpush.bf16.msra.mxu0 %v2780
    %3605 = vmatpush.bf16.msra.mxu0 %v2772
    %3606 = vmatpush.bf16.msra.mxu0 %v2764
    %3607 = vmatpush.bf16.msra.mxu0 %v2756
    %3608 = vmatpush.bf16.msra.mxu0 %v2748
    %3609 = vmatpush.bf16.msra.mxu0 %v2740
    %3610 = vmatpush.bf16.msra.mxu0 %v2732
    %3611 = vmatmul.bf16.gmra.mxu0 %v469
    %v3612 = vpop.f32.mrf.mxu0
    %v3613 = vadd.f32 %v3600, %v3612
    %v3614 = vpop.f32.mrf.mxu0
    %3615 = vdwg.mxu0
    %3616 = vmatpush.bf16.msra.mxu0 %v2852
    %3617 = vmatpush.bf16.msra.mxu0 %v2844
    %3618 = vmatpush.bf16.msra.mxu0 %v2836
    %3619 = vmatpush.bf16.msra.mxu0 %v2828
    %3620 = vmatpush.bf16.msra.mxu0 %v2820
    %3621 = vmatpush.bf16.msra.mxu0 %v2812
    %3622 = vmatpush.bf16.msra.mxu0 %v2804
    %3623 = vmatpush.bf16.msra.mxu0 %v2796
    %3624 = vmatmul.bf16.gmra.mxu0 %v470
    %v3625 = vpop.f32.mrf.mxu0
    %v3626 = vadd.f32 %v3613, %v3625
    %v3627 = vpop.f32.mrf.mxu0
    %3628 = vdwg.mxu0
    %3629 = vmatpush.bf16.msra.mxu0 %v2916
    %3630 = vmatpush.bf16.msra.mxu0 %v2908
    %3631 = vmatpush.bf16.msra.mxu0 %v2900
    %3632 = vmatpush.bf16.msra.mxu0 %v2892
    %3633 = vmatpush.bf16.msra.mxu0 %v2884
    %3634 = vmatpush.bf16.msra.mxu0 %v2876
    %3635 = vmatpush.bf16.msra.mxu0 %v2868
    %3636 = vmatpush.bf16.msra.mxu0 %v2860
    %3637 = vmatmul.bf16.gmra.mxu0 %v471
    %v3638 = vpop.f32.mrf.mxu0
    %v3639 = vadd.f32 %v3626, %v3638
    %v3640 = vpop.f32.mrf.mxu0
    %3641 = vdwg.mxu0
    %3642 = vmatpush.bf16.msra.mxu0 %v2980
    %3643 = vmatpush.bf16.msra.mxu0 %v2972
    %3644 = vmatpush.bf16.msra.mxu0 %v2964
    %3645 = vmatpush.bf16.msra.mxu0 %v2956
    %3646 = vmatpush.bf16.msra.mxu0 %v2948
    %3647 = vmatpush.bf16.msra.mxu0 %v2940
    %3648 = vmatpush.bf16.msra.mxu0 %v2932
    %3649 = vmatpush.bf16.msra.mxu0 %v2924
    %3650 = vmatmul.bf16.gmra.mxu0 %v472
    %v3651 = vpop.f32.mrf.mxu0
    %v3652 = vadd.f32 %v3639, %v3651
    %v3653 = vpop.f32.mrf.mxu0
    %3654 = vdwg.mxu0
    %3655 = vmatpush.bf16.msra.mxu0 %v3044
    %3656 = vmatpush.bf16.msra.mxu0 %v3036
    %3657 = vmatpush.bf16.msra.mxu0 %v3028
    %3658 = vmatpush.bf16.msra.mxu0 %v3020
    %3659 = vmatpush.bf16.msra.mxu0 %v3012
    %3660 = vmatpush.bf16.msra.mxu0 %v3004
    %3661 = vmatpush.bf16.msra.mxu0 %v2996
    %3662 = vmatpush.bf16.msra.mxu0 %v2988
    %3663 = vmatmul.bf16.gmra.mxu0 %v473
    %v3664 = vpop.f32.mrf.mxu0
    %v3665 = vadd.f32 %v3652, %v3664
    %v3666 = vpop.f32.mrf.mxu0
    %3667 = vdwg.mxu0
    %3668 = vmatpush.bf16.msra.mxu0 %v2597
    %3669 = vmatpush.bf16.msra.mxu0 %v2589
    %3670 = vmatpush.bf16.msra.mxu0 %v2581
    %3671 = vmatpush.bf16.msra.mxu0 %v2573
    %3672 = vmatpush.bf16.msra.mxu0 %v2565
    %3673 = vmatpush.bf16.msra.mxu0 %v2557
    %3674 = vmatpush.bf16.msra.mxu0 %v2549
    %3675 = vmatpush.bf16.msra.mxu0 %v2541
    %3676 = vmatmul.bf16.gmra.mxu0 %v466
    %v3677 = vpop.f32.mrf.mxu0
    %v3678 = vadd.f32 %v989, %v3677
    %v3679 = vpop.f32.mrf.mxu0
    %3680 = vdwg.mxu0
    %3681 = vmatpush.bf16.msra.mxu0 %v2661
    %3682 = vmatpush.bf16.msra.mxu0 %v2653
    %3683 = vmatpush.bf16.msra.mxu0 %v2645
    %3684 = vmatpush.bf16.msra.mxu0 %v2637
    %3685 = vmatpush.bf16.msra.mxu0 %v2629
    %3686 = vmatpush.bf16.msra.mxu0 %v2621
    %3687 = vmatpush.bf16.msra.mxu0 %v2613
    %3688 = vmatpush.bf16.msra.mxu0 %v2605
    %3689 = vmatmul.bf16.gmra.mxu0 %v467
    %v3690 = vpop.f32.mrf.mxu0
    %v3691 = vadd.f32 %v3678, %v3690
    %v3692 = vpop.f32.mrf.mxu0
    %3693 = vdwg.mxu0
    %3694 = vmatpush.bf16.msra.mxu0 %v2725
    %3695 = vmatpush.bf16.msra.mxu0 %v2717
    %3696 = vmatpush.bf16.msra.mxu0 %v2709
    %3697 = vmatpush.bf16.msra.mxu0 %v2701
    %3698 = vmatpush.bf16.msra.mxu0 %v2693
    %3699 = vmatpush.bf16.msra.mxu0 %v2685
    %3700 = vmatpush.bf16.msra.mxu0 %v2677
    %3701 = vmatpush.bf16.msra.mxu0 %v2669
    %3702 = vmatmul.bf16.gmra.mxu0 %v468
    %v3703 = vpop.f32.mrf.mxu0
    %v3704 = vadd.f32 %v3691, %v3703
    %v3705 = vpop.f32.mrf.mxu0
    %3706 = vdwg.mxu0
    %3707 = vmatpush.bf16.msra.mxu0 %v2789
    %3708 = vmatpush.bf16.msra.mxu0 %v2781
    %3709 = vmatpush.bf16.msra.mxu0 %v2773
    %3710 = vmatpush.bf16.msra.mxu0 %v2765
    %3711 = vmatpush.bf16.msra.mxu0 %v2757
    %3712 = vmatpush.bf16.msra.mxu0 %v2749
    %3713 = vmatpush.bf16.msra.mxu0 %v2741
    %3714 = vmatpush.bf16.msra.mxu0 %v2733
    %3715 = vmatmul.bf16.gmra.mxu0 %v469
    %v3716 = vpop.f32.mrf.mxu0
    %v3717 = vadd.f32 %v3704, %v3716
    %v3718 = vpop.f32.mrf.mxu0
    %3719 = vdwg.mxu0
    %3720 = vmatpush.bf16.msra.mxu0 %v2853
    %3721 = vmatpush.bf16.msra.mxu0 %v2845
    %3722 = vmatpush.bf16.msra.mxu0 %v2837
    %3723 = vmatpush.bf16.msra.mxu0 %v2829
    %3724 = vmatpush.bf16.msra.mxu0 %v2821
    %3725 = vmatpush.bf16.msra.mxu0 %v2813
    %3726 = vmatpush.bf16.msra.mxu0 %v2805
    %3727 = vmatpush.bf16.msra.mxu0 %v2797
    %3728 = vmatmul.bf16.gmra.mxu0 %v470
    %v3729 = vpop.f32.mrf.mxu0
    %v3730 = vadd.f32 %v3717, %v3729
    %v3731 = vpop.f32.mrf.mxu0
    %3732 = vdwg.mxu0
    %3733 = vmatpush.bf16.msra.mxu0 %v2917
    %3734 = vmatpush.bf16.msra.mxu0 %v2909
    %3735 = vmatpush.bf16.msra.mxu0 %v2901
    %3736 = vmatpush.bf16.msra.mxu0 %v2893
    %3737 = vmatpush.bf16.msra.mxu0 %v2885
    %3738 = vmatpush.bf16.msra.mxu0 %v2877
    %3739 = vmatpush.bf16.msra.mxu0 %v2869
    %3740 = vmatpush.bf16.msra.mxu0 %v2861
    %3741 = vmatmul.bf16.gmra.mxu0 %v471
    %v3742 = vpop.f32.mrf.mxu0
    %v3743 = vadd.f32 %v3730, %v3742
    %v3744 = vpop.f32.mrf.mxu0
    %3745 = vdwg.mxu0
    %3746 = vmatpush.bf16.msra.mxu0 %v2981
    %3747 = vmatpush.bf16.msra.mxu0 %v2973
    %3748 = vmatpush.bf16.msra.mxu0 %v2965
    %3749 = vmatpush.bf16.msra.mxu0 %v2957
    %3750 = vmatpush.bf16.msra.mxu0 %v2949
    %3751 = vmatpush.bf16.msra.mxu0 %v2941
    %3752 = vmatpush.bf16.msra.mxu0 %v2933
    %3753 = vmatpush.bf16.msra.mxu0 %v2925
    %3754 = vmatmul.bf16.gmra.mxu0 %v472
    %v3755 = vpop.f32.mrf.mxu0
    %v3756 = vadd.f32 %v3743, %v3755
    %v3757 = vpop.f32.mrf.mxu0
    %3758 = vdwg.mxu0
    %3759 = vmatpush.bf16.msra.mxu0 %v3045
    %3760 = vmatpush.bf16.msra.mxu0 %v3037
    %3761 = vmatpush.bf16.msra.mxu0 %v3029
    %3762 = vmatpush.bf16.msra.mxu0 %v3021
    %3763 = vmatpush.bf16.msra.mxu0 %v3013
    %3764 = vmatpush.bf16.msra.mxu0 %v3005
    %3765 = vmatpush.bf16.msra.mxu0 %v2997
    %3766 = vmatpush.bf16.msra.mxu0 %v2989
    %3767 = vmatmul.bf16.gmra.mxu0 %v473
    %v3768 = vpop.f32.mrf.mxu0
    %v3769 = vadd.f32 %v3756, %v3768
    %v3770 = vpop.f32.mrf.mxu0
    %3771 = vdwg.mxu0
    %3772 = vmatpush.bf16.msra.mxu0 %v2598
    %3773 = vmatpush.bf16.msra.mxu0 %v2590
    %3774 = vmatpush.bf16.msra.mxu0 %v2582
    %3775 = vmatpush.bf16.msra.mxu0 %v2574
    %3776 = vmatpush.bf16.msra.mxu0 %v2566
    %3777 = vmatpush.bf16.msra.mxu0 %v2558
    %3778 = vmatpush.bf16.msra.mxu0 %v2550
    %3779 = vmatpush.bf16.msra.mxu0 %v2542
    %3780 = vmatmul.bf16.gmra.mxu0 %v466
    %v3781 = vpop.f32.mrf.mxu0
    %v3782 = vadd.f32 %v990, %v3781
    %v3783 = vpop.f32.mrf.mxu0
    %3784 = vdwg.mxu0
    %3785 = vmatpush.bf16.msra.mxu0 %v2662
    %3786 = vmatpush.bf16.msra.mxu0 %v2654
    %3787 = vmatpush.bf16.msra.mxu0 %v2646
    %3788 = vmatpush.bf16.msra.mxu0 %v2638
    %3789 = vmatpush.bf16.msra.mxu0 %v2630
    %3790 = vmatpush.bf16.msra.mxu0 %v2622
    %3791 = vmatpush.bf16.msra.mxu0 %v2614
    %3792 = vmatpush.bf16.msra.mxu0 %v2606
    %3793 = vmatmul.bf16.gmra.mxu0 %v467
    %v3794 = vpop.f32.mrf.mxu0
    %v3795 = vadd.f32 %v3782, %v3794
    %v3796 = vpop.f32.mrf.mxu0
    %3797 = vdwg.mxu0
    %3798 = vmatpush.bf16.msra.mxu0 %v2726
    %3799 = vmatpush.bf16.msra.mxu0 %v2718
    %3800 = vmatpush.bf16.msra.mxu0 %v2710
    %3801 = vmatpush.bf16.msra.mxu0 %v2702
    %3802 = vmatpush.bf16.msra.mxu0 %v2694
    %3803 = vmatpush.bf16.msra.mxu0 %v2686
    %3804 = vmatpush.bf16.msra.mxu0 %v2678
    %3805 = vmatpush.bf16.msra.mxu0 %v2670
    %3806 = vmatmul.bf16.gmra.mxu0 %v468
    %v3807 = vpop.f32.mrf.mxu0
    %v3808 = vadd.f32 %v3795, %v3807
    %v3809 = vpop.f32.mrf.mxu0
    %3810 = vdwg.mxu0
    %3811 = vmatpush.bf16.msra.mxu0 %v2790
    %3812 = vmatpush.bf16.msra.mxu0 %v2782
    %3813 = vmatpush.bf16.msra.mxu0 %v2774
    %3814 = vmatpush.bf16.msra.mxu0 %v2766
    %3815 = vmatpush.bf16.msra.mxu0 %v2758
    %3816 = vmatpush.bf16.msra.mxu0 %v2750
    %3817 = vmatpush.bf16.msra.mxu0 %v2742
    %3818 = vmatpush.bf16.msra.mxu0 %v2734
    %3819 = vmatmul.bf16.gmra.mxu0 %v469
    %v3820 = vpop.f32.mrf.mxu0
    %v3821 = vadd.f32 %v3808, %v3820
    %v3822 = vpop.f32.mrf.mxu0
    %3823 = vdwg.mxu0
    %3824 = vmatpush.bf16.msra.mxu0 %v2854
    %3825 = vmatpush.bf16.msra.mxu0 %v2846
    %3826 = vmatpush.bf16.msra.mxu0 %v2838
    %3827 = vmatpush.bf16.msra.mxu0 %v2830
    %3828 = vmatpush.bf16.msra.mxu0 %v2822
    %3829 = vmatpush.bf16.msra.mxu0 %v2814
    %3830 = vmatpush.bf16.msra.mxu0 %v2806
    %3831 = vmatpush.bf16.msra.mxu0 %v2798
    %3832 = vmatmul.bf16.gmra.mxu0 %v470
    %v3833 = vpop.f32.mrf.mxu0
    %v3834 = vadd.f32 %v3821, %v3833
    %v3835 = vpop.f32.mrf.mxu0
    %3836 = vdwg.mxu0
    %3837 = vmatpush.bf16.msra.mxu0 %v2918
    %3838 = vmatpush.bf16.msra.mxu0 %v2910
    %3839 = vmatpush.bf16.msra.mxu0 %v2902
    %3840 = vmatpush.bf16.msra.mxu0 %v2894
    %3841 = vmatpush.bf16.msra.mxu0 %v2886
    %3842 = vmatpush.bf16.msra.mxu0 %v2878
    %3843 = vmatpush.bf16.msra.mxu0 %v2870
    %3844 = vmatpush.bf16.msra.mxu0 %v2862
    %3845 = vmatmul.bf16.gmra.mxu0 %v471
    %v3846 = vpop.f32.mrf.mxu0
    %v3847 = vadd.f32 %v3834, %v3846
    %v3848 = vpop.f32.mrf.mxu0
    %3849 = vdwg.mxu0
    %3850 = vmatpush.bf16.msra.mxu0 %v2982
    %3851 = vmatpush.bf16.msra.mxu0 %v2974
    %3852 = vmatpush.bf16.msra.mxu0 %v2966
    %3853 = vmatpush.bf16.msra.mxu0 %v2958
    %3854 = vmatpush.bf16.msra.mxu0 %v2950
    %3855 = vmatpush.bf16.msra.mxu0 %v2942
    %3856 = vmatpush.bf16.msra.mxu0 %v2934
    %3857 = vmatpush.bf16.msra.mxu0 %v2926
    %3858 = vmatmul.bf16.gmra.mxu0 %v472
    %v3859 = vpop.f32.mrf.mxu0
    %v3860 = vadd.f32 %v3847, %v3859
    %v3861 = vpop.f32.mrf.mxu0
    %3862 = vdwg.mxu0
    %3863 = vmatpush.bf16.msra.mxu0 %v3046
    %3864 = vmatpush.bf16.msra.mxu0 %v3038
    %3865 = vmatpush.bf16.msra.mxu0 %v3030
    %3866 = vmatpush.bf16.msra.mxu0 %v3022
    %3867 = vmatpush.bf16.msra.mxu0 %v3014
    %3868 = vmatpush.bf16.msra.mxu0 %v3006
    %3869 = vmatpush.bf16.msra.mxu0 %v2998
    %3870 = vmatpush.bf16.msra.mxu0 %v2990
    %3871 = vmatmul.bf16.gmra.mxu0 %v473
    %v3872 = vpop.f32.mrf.mxu0
    %v3873 = vadd.f32 %v3860, %v3872
    %v3874 = vpop.f32.mrf.mxu0
    %3875 = vdwg.mxu0
    %3876 = vmatpush.bf16.msra.mxu0 %v2599
    %3877 = vmatpush.bf16.msra.mxu0 %v2591
    %3878 = vmatpush.bf16.msra.mxu0 %v2583
    %3879 = vmatpush.bf16.msra.mxu0 %v2575
    %3880 = vmatpush.bf16.msra.mxu0 %v2567
    %3881 = vmatpush.bf16.msra.mxu0 %v2559
    %3882 = vmatpush.bf16.msra.mxu0 %v2551
    %3883 = vmatpush.bf16.msra.mxu0 %v2543
    %3884 = vmatmul.bf16.gmra.mxu0 %v466
    %v3885 = vpop.f32.mrf.mxu0
    %v3886 = vadd.f32 %v991, %v3885
    %v3887 = vpop.f32.mrf.mxu0
    %3888 = vdwg.mxu0
    %3889 = vmatpush.bf16.msra.mxu0 %v2663
    %3890 = vmatpush.bf16.msra.mxu0 %v2655
    %3891 = vmatpush.bf16.msra.mxu0 %v2647
    %3892 = vmatpush.bf16.msra.mxu0 %v2639
    %3893 = vmatpush.bf16.msra.mxu0 %v2631
    %3894 = vmatpush.bf16.msra.mxu0 %v2623
    %3895 = vmatpush.bf16.msra.mxu0 %v2615
    %3896 = vmatpush.bf16.msra.mxu0 %v2607
    %3897 = vmatmul.bf16.gmra.mxu0 %v467
    %v3898 = vpop.f32.mrf.mxu0
    %v3899 = vadd.f32 %v3886, %v3898
    %v3900 = vpop.f32.mrf.mxu0
    %3901 = vdwg.mxu0
    %3902 = vmatpush.bf16.msra.mxu0 %v2727
    %3903 = vmatpush.bf16.msra.mxu0 %v2719
    %3904 = vmatpush.bf16.msra.mxu0 %v2711
    %3905 = vmatpush.bf16.msra.mxu0 %v2703
    %3906 = vmatpush.bf16.msra.mxu0 %v2695
    %3907 = vmatpush.bf16.msra.mxu0 %v2687
    %3908 = vmatpush.bf16.msra.mxu0 %v2679
    %3909 = vmatpush.bf16.msra.mxu0 %v2671
    %3910 = vmatmul.bf16.gmra.mxu0 %v468
    %v3911 = vpop.f32.mrf.mxu0
    %v3912 = vadd.f32 %v3899, %v3911
    %v3913 = vpop.f32.mrf.mxu0
    %3914 = vdwg.mxu0
    %3915 = vmatpush.bf16.msra.mxu0 %v2791
    %3916 = vmatpush.bf16.msra.mxu0 %v2783
    %3917 = vmatpush.bf16.msra.mxu0 %v2775
    %3918 = vmatpush.bf16.msra.mxu0 %v2767
    %3919 = vmatpush.bf16.msra.mxu0 %v2759
    %3920 = vmatpush.bf16.msra.mxu0 %v2751
    %3921 = vmatpush.bf16.msra.mxu0 %v2743
    %3922 = vmatpush.bf16.msra.mxu0 %v2735
    %3923 = vmatmul.bf16.gmra.mxu0 %v469
    %v3924 = vpop.f32.mrf.mxu0
    %v3925 = vadd.f32 %v3912, %v3924
    %v3926 = vpop.f32.mrf.mxu0
    %3927 = vdwg.mxu0
    %3928 = vmatpush.bf16.msra.mxu0 %v2855
    %3929 = vmatpush.bf16.msra.mxu0 %v2847
    %3930 = vmatpush.bf16.msra.mxu0 %v2839
    %3931 = vmatpush.bf16.msra.mxu0 %v2831
    %3932 = vmatpush.bf16.msra.mxu0 %v2823
    %3933 = vmatpush.bf16.msra.mxu0 %v2815
    %3934 = vmatpush.bf16.msra.mxu0 %v2807
    %3935 = vmatpush.bf16.msra.mxu0 %v2799
    %3936 = vmatmul.bf16.gmra.mxu0 %v470
    %v3937 = vpop.f32.mrf.mxu0
    %v3938 = vadd.f32 %v3925, %v3937
    %v3939 = vpop.f32.mrf.mxu0
    %3940 = vdwg.mxu0
    %3941 = vmatpush.bf16.msra.mxu0 %v2919
    %3942 = vmatpush.bf16.msra.mxu0 %v2911
    %3943 = vmatpush.bf16.msra.mxu0 %v2903
    %3944 = vmatpush.bf16.msra.mxu0 %v2895
    %3945 = vmatpush.bf16.msra.mxu0 %v2887
    %3946 = vmatpush.bf16.msra.mxu0 %v2879
    %3947 = vmatpush.bf16.msra.mxu0 %v2871
    %3948 = vmatpush.bf16.msra.mxu0 %v2863
    %3949 = vmatmul.bf16.gmra.mxu0 %v471
    %v3950 = vpop.f32.mrf.mxu0
    %v3951 = vadd.f32 %v3938, %v3950
    %v3952 = vpop.f32.mrf.mxu0
    %3953 = vdwg.mxu0
    %3954 = vmatpush.bf16.msra.mxu0 %v2983
    %3955 = vmatpush.bf16.msra.mxu0 %v2975
    %3956 = vmatpush.bf16.msra.mxu0 %v2967
    %3957 = vmatpush.bf16.msra.mxu0 %v2959
    %3958 = vmatpush.bf16.msra.mxu0 %v2951
    %3959 = vmatpush.bf16.msra.mxu0 %v2943
    %3960 = vmatpush.bf16.msra.mxu0 %v2935
    %3961 = vmatpush.bf16.msra.mxu0 %v2927
    %3962 = vmatmul.bf16.gmra.mxu0 %v472
    %v3963 = vpop.f32.mrf.mxu0
    %v3964 = vadd.f32 %v3951, %v3963
    %v3965 = vpop.f32.mrf.mxu0
    %3966 = vdwg.mxu0
    %3967 = vmatpush.bf16.msra.mxu0 %v3047
    %3968 = vmatpush.bf16.msra.mxu0 %v3039
    %3969 = vmatpush.bf16.msra.mxu0 %v3031
    %3970 = vmatpush.bf16.msra.mxu0 %v3023
    %3971 = vmatpush.bf16.msra.mxu0 %v3015
    %3972 = vmatpush.bf16.msra.mxu0 %v3007
    %3973 = vmatpush.bf16.msra.mxu0 %v2999
    %3974 = vmatpush.bf16.msra.mxu0 %v2991
    %3975 = vmatmul.bf16.gmra.mxu0 %v473
    %v3976 = vpop.f32.mrf.mxu0
    %v3977 = vadd.f32 %v3964, %v3976
    %v3978 = vpop.f32.mrf.mxu0
    %3979 = vdwg.mxu0
    %3980 = vmatpush.bf16.msra.mxu0 %v2600
    %3981 = vmatpush.bf16.msra.mxu0 %v2592
    %3982 = vmatpush.bf16.msra.mxu0 %v2584
    %3983 = vmatpush.bf16.msra.mxu0 %v2576
    %3984 = vmatpush.bf16.msra.mxu0 %v2568
    %3985 = vmatpush.bf16.msra.mxu0 %v2560
    %3986 = vmatpush.bf16.msra.mxu0 %v2552
    %3987 = vmatpush.bf16.msra.mxu0 %v2544
    %3988 = vmatmul.bf16.gmra.mxu0 %v466
    %v3989 = vpop.f32.mrf.mxu0
    %v3990 = vadd.f32 %v992, %v3989
    %v3991 = vpop.f32.mrf.mxu0
    %3992 = vdwg.mxu0
    %3993 = vmatpush.bf16.msra.mxu0 %v2664
    %3994 = vmatpush.bf16.msra.mxu0 %v2656
    %3995 = vmatpush.bf16.msra.mxu0 %v2648
    %3996 = vmatpush.bf16.msra.mxu0 %v2640
    %3997 = vmatpush.bf16.msra.mxu0 %v2632
    %3998 = vmatpush.bf16.msra.mxu0 %v2624
    %3999 = vmatpush.bf16.msra.mxu0 %v2616
    %4000 = vmatpush.bf16.msra.mxu0 %v2608
    %4001 = vmatmul.bf16.gmra.mxu0 %v467
    %v4002 = vpop.f32.mrf.mxu0
    %v4003 = vadd.f32 %v3990, %v4002
    %v4004 = vpop.f32.mrf.mxu0
    %4005 = vdwg.mxu0
    %4006 = vmatpush.bf16.msra.mxu0 %v2728
    %4007 = vmatpush.bf16.msra.mxu0 %v2720
    %4008 = vmatpush.bf16.msra.mxu0 %v2712
    %4009 = vmatpush.bf16.msra.mxu0 %v2704
    %4010 = vmatpush.bf16.msra.mxu0 %v2696
    %4011 = vmatpush.bf16.msra.mxu0 %v2688
    %4012 = vmatpush.bf16.msra.mxu0 %v2680
    %4013 = vmatpush.bf16.msra.mxu0 %v2672
    %4014 = vmatmul.bf16.gmra.mxu0 %v468
    %v4015 = vpop.f32.mrf.mxu0
    %v4016 = vadd.f32 %v4003, %v4015
    %v4017 = vpop.f32.mrf.mxu0
    %4018 = vdwg.mxu0
    %4019 = vmatpush.bf16.msra.mxu0 %v2792
    %4020 = vmatpush.bf16.msra.mxu0 %v2784
    %4021 = vmatpush.bf16.msra.mxu0 %v2776
    %4022 = vmatpush.bf16.msra.mxu0 %v2768
    %4023 = vmatpush.bf16.msra.mxu0 %v2760
    %4024 = vmatpush.bf16.msra.mxu0 %v2752
    %4025 = vmatpush.bf16.msra.mxu0 %v2744
    %4026 = vmatpush.bf16.msra.mxu0 %v2736
    %4027 = vmatmul.bf16.gmra.mxu0 %v469
    %v4028 = vpop.f32.mrf.mxu0
    %v4029 = vadd.f32 %v4016, %v4028
    %v4030 = vpop.f32.mrf.mxu0
    %4031 = vdwg.mxu0
    %4032 = vmatpush.bf16.msra.mxu0 %v2856
    %4033 = vmatpush.bf16.msra.mxu0 %v2848
    %4034 = vmatpush.bf16.msra.mxu0 %v2840
    %4035 = vmatpush.bf16.msra.mxu0 %v2832
    %4036 = vmatpush.bf16.msra.mxu0 %v2824
    %4037 = vmatpush.bf16.msra.mxu0 %v2816
    %4038 = vmatpush.bf16.msra.mxu0 %v2808
    %4039 = vmatpush.bf16.msra.mxu0 %v2800
    %4040 = vmatmul.bf16.gmra.mxu0 %v470
    %v4041 = vpop.f32.mrf.mxu0
    %v4042 = vadd.f32 %v4029, %v4041
    %v4043 = vpop.f32.mrf.mxu0
    %4044 = vdwg.mxu0
    %4045 = vmatpush.bf16.msra.mxu0 %v2920
    %4046 = vmatpush.bf16.msra.mxu0 %v2912
    %4047 = vmatpush.bf16.msra.mxu0 %v2904
    %4048 = vmatpush.bf16.msra.mxu0 %v2896
    %4049 = vmatpush.bf16.msra.mxu0 %v2888
    %4050 = vmatpush.bf16.msra.mxu0 %v2880
    %4051 = vmatpush.bf16.msra.mxu0 %v2872
    %4052 = vmatpush.bf16.msra.mxu0 %v2864
    %4053 = vmatmul.bf16.gmra.mxu0 %v471
    %v4054 = vpop.f32.mrf.mxu0
    %v4055 = vadd.f32 %v4042, %v4054
    %v4056 = vpop.f32.mrf.mxu0
    %4057 = vdwg.mxu0
    %4058 = vmatpush.bf16.msra.mxu0 %v2984
    %4059 = vmatpush.bf16.msra.mxu0 %v2976
    %4060 = vmatpush.bf16.msra.mxu0 %v2968
    %4061 = vmatpush.bf16.msra.mxu0 %v2960
    %4062 = vmatpush.bf16.msra.mxu0 %v2952
    %4063 = vmatpush.bf16.msra.mxu0 %v2944
    %4064 = vmatpush.bf16.msra.mxu0 %v2936
    %4065 = vmatpush.bf16.msra.mxu0 %v2928
    %4066 = vmatmul.bf16.gmra.mxu0 %v472
    %v4067 = vpop.f32.mrf.mxu0
    %v4068 = vadd.f32 %v4055, %v4067
    %v4069 = vpop.f32.mrf.mxu0
    %4070 = vdwg.mxu0
    %4071 = vmatpush.bf16.msra.mxu0 %v3048
    %4072 = vmatpush.bf16.msra.mxu0 %v3040
    %4073 = vmatpush.bf16.msra.mxu0 %v3032
    %4074 = vmatpush.bf16.msra.mxu0 %v3024
    %4075 = vmatpush.bf16.msra.mxu0 %v3016
    %4076 = vmatpush.bf16.msra.mxu0 %v3008
    %4077 = vmatpush.bf16.msra.mxu0 %v3000
    %4078 = vmatpush.bf16.msra.mxu0 %v2992
    %4079 = vmatmul.bf16.gmra.mxu0 %v473
    %v4080 = vpop.f32.mrf.mxu0
    %v4081 = vadd.f32 %v4068, %v4080
    %v4082 = vpop.f32.mrf.mxu0
    %4083 = vdwg.mxu0
    %4084 = vmatpush.bf16.msra.mxu0 %v2601
    %4085 = vmatpush.bf16.msra.mxu0 %v2593
    %4086 = vmatpush.bf16.msra.mxu0 %v2585
    %4087 = vmatpush.bf16.msra.mxu0 %v2577
    %4088 = vmatpush.bf16.msra.mxu0 %v2569
    %4089 = vmatpush.bf16.msra.mxu0 %v2561
    %4090 = vmatpush.bf16.msra.mxu0 %v2553
    %4091 = vmatpush.bf16.msra.mxu0 %v2545
    %4092 = vmatmul.bf16.gmra.mxu0 %v466
    %v4093 = vpop.f32.mrf.mxu0
    %v4094 = vadd.f32 %v993, %v4093
    %v4095 = vpop.f32.mrf.mxu0
    %4096 = vdwg.mxu0
    %4097 = vmatpush.bf16.msra.mxu0 %v2665
    %4098 = vmatpush.bf16.msra.mxu0 %v2657
    %4099 = vmatpush.bf16.msra.mxu0 %v2649
    %4100 = vmatpush.bf16.msra.mxu0 %v2641
    %4101 = vmatpush.bf16.msra.mxu0 %v2633
    %4102 = vmatpush.bf16.msra.mxu0 %v2625
    %4103 = vmatpush.bf16.msra.mxu0 %v2617
    %4104 = vmatpush.bf16.msra.mxu0 %v2609
    %4105 = vmatmul.bf16.gmra.mxu0 %v467
    %v4106 = vpop.f32.mrf.mxu0
    %v4107 = vadd.f32 %v4094, %v4106
    %v4108 = vpop.f32.mrf.mxu0
    %4109 = vdwg.mxu0
    %4110 = vmatpush.bf16.msra.mxu0 %v2729
    %4111 = vmatpush.bf16.msra.mxu0 %v2721
    %4112 = vmatpush.bf16.msra.mxu0 %v2713
    %4113 = vmatpush.bf16.msra.mxu0 %v2705
    %4114 = vmatpush.bf16.msra.mxu0 %v2697
    %4115 = vmatpush.bf16.msra.mxu0 %v2689
    %4116 = vmatpush.bf16.msra.mxu0 %v2681
    %4117 = vmatpush.bf16.msra.mxu0 %v2673
    %4118 = vmatmul.bf16.gmra.mxu0 %v468
    %v4119 = vpop.f32.mrf.mxu0
    %v4120 = vadd.f32 %v4107, %v4119
    %v4121 = vpop.f32.mrf.mxu0
    %4122 = vdwg.mxu0
    %4123 = vmatpush.bf16.msra.mxu0 %v2793
    %4124 = vmatpush.bf16.msra.mxu0 %v2785
    %4125 = vmatpush.bf16.msra.mxu0 %v2777
    %4126 = vmatpush.bf16.msra.mxu0 %v2769
    %4127 = vmatpush.bf16.msra.mxu0 %v2761
    %4128 = vmatpush.bf16.msra.mxu0 %v2753
    %4129 = vmatpush.bf16.msra.mxu0 %v2745
    %4130 = vmatpush.bf16.msra.mxu0 %v2737
    %4131 = vmatmul.bf16.gmra.mxu0 %v469
    %v4132 = vpop.f32.mrf.mxu0
    %v4133 = vadd.f32 %v4120, %v4132
    %v4134 = vpop.f32.mrf.mxu0
    %4135 = vdwg.mxu0
    %4136 = vmatpush.bf16.msra.mxu0 %v2857
    %4137 = vmatpush.bf16.msra.mxu0 %v2849
    %4138 = vmatpush.bf16.msra.mxu0 %v2841
    %4139 = vmatpush.bf16.msra.mxu0 %v2833
    %4140 = vmatpush.bf16.msra.mxu0 %v2825
    %4141 = vmatpush.bf16.msra.mxu0 %v2817
    %4142 = vmatpush.bf16.msra.mxu0 %v2809
    %4143 = vmatpush.bf16.msra.mxu0 %v2801
    %4144 = vmatmul.bf16.gmra.mxu0 %v470
    %v4145 = vpop.f32.mrf.mxu0
    %v4146 = vadd.f32 %v4133, %v4145
    %v4147 = vpop.f32.mrf.mxu0
    %4148 = vdwg.mxu0
    %4149 = vmatpush.bf16.msra.mxu0 %v2921
    %4150 = vmatpush.bf16.msra.mxu0 %v2913
    %4151 = vmatpush.bf16.msra.mxu0 %v2905
    %4152 = vmatpush.bf16.msra.mxu0 %v2897
    %4153 = vmatpush.bf16.msra.mxu0 %v2889
    %4154 = vmatpush.bf16.msra.mxu0 %v2881
    %4155 = vmatpush.bf16.msra.mxu0 %v2873
    %4156 = vmatpush.bf16.msra.mxu0 %v2865
    %4157 = vmatmul.bf16.gmra.mxu0 %v471
    %v4158 = vpop.f32.mrf.mxu0
    %v4159 = vadd.f32 %v4146, %v4158
    %v4160 = vpop.f32.mrf.mxu0
    %4161 = vdwg.mxu0
    %4162 = vmatpush.bf16.msra.mxu0 %v2985
    %4163 = vmatpush.bf16.msra.mxu0 %v2977
    %4164 = vmatpush.bf16.msra.mxu0 %v2969
    %4165 = vmatpush.bf16.msra.mxu0 %v2961
    %4166 = vmatpush.bf16.msra.mxu0 %v2953
    %4167 = vmatpush.bf16.msra.mxu0 %v2945
    %4168 = vmatpush.bf16.msra.mxu0 %v2937
    %4169 = vmatpush.bf16.msra.mxu0 %v2929
    %4170 = vmatmul.bf16.gmra.mxu0 %v472
    %v4171 = vpop.f32.mrf.mxu0
    %v4172 = vadd.f32 %v4159, %v4171
    %v4173 = vpop.f32.mrf.mxu0
    %4174 = vdwg.mxu0
    %4175 = vmatpush.bf16.msra.mxu0 %v3049
    %4176 = vmatpush.bf16.msra.mxu0 %v3041
    %4177 = vmatpush.bf16.msra.mxu0 %v3033
    %4178 = vmatpush.bf16.msra.mxu0 %v3025
    %4179 = vmatpush.bf16.msra.mxu0 %v3017
    %4180 = vmatpush.bf16.msra.mxu0 %v3009
    %4181 = vmatpush.bf16.msra.mxu0 %v3001
    %4182 = vmatpush.bf16.msra.mxu0 %v2993
    %4183 = vmatmul.bf16.gmra.mxu0 %v473
    %v4184 = vpop.f32.mrf.mxu0
    %v4185 = vadd.f32 %v4172, %v4184
    %v4186 = vpop.f32.mrf.mxu0
    %4187 = vdwg.mxu0
    %4188 = vmatpush.bf16.msra.mxu0 %v2602
    %4189 = vmatpush.bf16.msra.mxu0 %v2594
    %4190 = vmatpush.bf16.msra.mxu0 %v2586
    %4191 = vmatpush.bf16.msra.mxu0 %v2578
    %4192 = vmatpush.bf16.msra.mxu0 %v2570
    %4193 = vmatpush.bf16.msra.mxu0 %v2562
    %4194 = vmatpush.bf16.msra.mxu0 %v2554
    %4195 = vmatpush.bf16.msra.mxu0 %v2546
    %4196 = vmatmul.bf16.gmra.mxu0 %v466
    %v4197 = vpop.f32.mrf.mxu0
    %v4198 = vadd.f32 %v994, %v4197
    %v4199 = vpop.f32.mrf.mxu0
    %4200 = vdwg.mxu0
    %4201 = vmatpush.bf16.msra.mxu0 %v2666
    %4202 = vmatpush.bf16.msra.mxu0 %v2658
    %4203 = vmatpush.bf16.msra.mxu0 %v2650
    %4204 = vmatpush.bf16.msra.mxu0 %v2642
    %4205 = vmatpush.bf16.msra.mxu0 %v2634
    %4206 = vmatpush.bf16.msra.mxu0 %v2626
    %4207 = vmatpush.bf16.msra.mxu0 %v2618
    %4208 = vmatpush.bf16.msra.mxu0 %v2610
    %4209 = vmatmul.bf16.gmra.mxu0 %v467
    %v4210 = vpop.f32.mrf.mxu0
    %v4211 = vadd.f32 %v4198, %v4210
    %v4212 = vpop.f32.mrf.mxu0
    %4213 = vdwg.mxu0
    %4214 = vmatpush.bf16.msra.mxu0 %v2730
    %4215 = vmatpush.bf16.msra.mxu0 %v2722
    %4216 = vmatpush.bf16.msra.mxu0 %v2714
    %4217 = vmatpush.bf16.msra.mxu0 %v2706
    %4218 = vmatpush.bf16.msra.mxu0 %v2698
    %4219 = vmatpush.bf16.msra.mxu0 %v2690
    %4220 = vmatpush.bf16.msra.mxu0 %v2682
    %4221 = vmatpush.bf16.msra.mxu0 %v2674
    %4222 = vmatmul.bf16.gmra.mxu0 %v468
    %v4223 = vpop.f32.mrf.mxu0
    %v4224 = vadd.f32 %v4211, %v4223
    %v4225 = vpop.f32.mrf.mxu0
    %4226 = vdwg.mxu0
    %4227 = vmatpush.bf16.msra.mxu0 %v2794
    %4228 = vmatpush.bf16.msra.mxu0 %v2786
    %4229 = vmatpush.bf16.msra.mxu0 %v2778
    %4230 = vmatpush.bf16.msra.mxu0 %v2770
    %4231 = vmatpush.bf16.msra.mxu0 %v2762
    %4232 = vmatpush.bf16.msra.mxu0 %v2754
    %4233 = vmatpush.bf16.msra.mxu0 %v2746
    %4234 = vmatpush.bf16.msra.mxu0 %v2738
    %4235 = vmatmul.bf16.gmra.mxu0 %v469
    %v4236 = vpop.f32.mrf.mxu0
    %v4237 = vadd.f32 %v4224, %v4236
    %v4238 = vpop.f32.mrf.mxu0
    %4239 = vdwg.mxu0
    %4240 = vmatpush.bf16.msra.mxu0 %v2858
    %4241 = vmatpush.bf16.msra.mxu0 %v2850
    %4242 = vmatpush.bf16.msra.mxu0 %v2842
    %4243 = vmatpush.bf16.msra.mxu0 %v2834
    %4244 = vmatpush.bf16.msra.mxu0 %v2826
    %4245 = vmatpush.bf16.msra.mxu0 %v2818
    %4246 = vmatpush.bf16.msra.mxu0 %v2810
    %4247 = vmatpush.bf16.msra.mxu0 %v2802
    %4248 = vmatmul.bf16.gmra.mxu0 %v470
    %v4249 = vpop.f32.mrf.mxu0
    %v4250 = vadd.f32 %v4237, %v4249
    %v4251 = vpop.f32.mrf.mxu0
    %4252 = vdwg.mxu0
    %4253 = vmatpush.bf16.msra.mxu0 %v2922
    %4254 = vmatpush.bf16.msra.mxu0 %v2914
    %4255 = vmatpush.bf16.msra.mxu0 %v2906
    %4256 = vmatpush.bf16.msra.mxu0 %v2898
    %4257 = vmatpush.bf16.msra.mxu0 %v2890
    %4258 = vmatpush.bf16.msra.mxu0 %v2882
    %4259 = vmatpush.bf16.msra.mxu0 %v2874
    %4260 = vmatpush.bf16.msra.mxu0 %v2866
    %4261 = vmatmul.bf16.gmra.mxu0 %v471
    %v4262 = vpop.f32.mrf.mxu0
    %v4263 = vadd.f32 %v4250, %v4262
    %v4264 = vpop.f32.mrf.mxu0
    %4265 = vdwg.mxu0
    %4266 = vmatpush.bf16.msra.mxu0 %v2986
    %4267 = vmatpush.bf16.msra.mxu0 %v2978
    %4268 = vmatpush.bf16.msra.mxu0 %v2970
    %4269 = vmatpush.bf16.msra.mxu0 %v2962
    %4270 = vmatpush.bf16.msra.mxu0 %v2954
    %4271 = vmatpush.bf16.msra.mxu0 %v2946
    %4272 = vmatpush.bf16.msra.mxu0 %v2938
    %4273 = vmatpush.bf16.msra.mxu0 %v2930
    %4274 = vmatmul.bf16.gmra.mxu0 %v472
    %v4275 = vpop.f32.mrf.mxu0
    %v4276 = vadd.f32 %v4263, %v4275
    %v4277 = vpop.f32.mrf.mxu0
    %4278 = vdwg.mxu0
    %4279 = vmatpush.bf16.msra.mxu0 %v3050
    %4280 = vmatpush.bf16.msra.mxu0 %v3042
    %4281 = vmatpush.bf16.msra.mxu0 %v3034
    %4282 = vmatpush.bf16.msra.mxu0 %v3026
    %4283 = vmatpush.bf16.msra.mxu0 %v3018
    %4284 = vmatpush.bf16.msra.mxu0 %v3010
    %4285 = vmatpush.bf16.msra.mxu0 %v3002
    %4286 = vmatpush.bf16.msra.mxu0 %v2994
    %4287 = vmatmul.bf16.gmra.mxu0 %v473
    %v4288 = vpop.f32.mrf.mxu0
    %v4289 = vadd.f32 %v4276, %v4288
    %v4290 = vpop.f32.mrf.mxu0
    %4291 = vdwg.mxu0
    %4292 = vmatpush.bf16.msra.mxu0 %v2603
    %4293 = vmatpush.bf16.msra.mxu0 %v2595
    %4294 = vmatpush.bf16.msra.mxu0 %v2587
    %4295 = vmatpush.bf16.msra.mxu0 %v2579
    %4296 = vmatpush.bf16.msra.mxu0 %v2571
    %4297 = vmatpush.bf16.msra.mxu0 %v2563
    %4298 = vmatpush.bf16.msra.mxu0 %v2555
    %4299 = vmatpush.bf16.msra.mxu0 %v2547
    %4300 = vmatmul.bf16.gmra.mxu0 %v466
    %v4301 = vpop.f32.mrf.mxu0
    %v4302 = vadd.f32 %v995, %v4301
    %v4303 = vpop.f32.mrf.mxu0
    %4304 = vdwg.mxu0
    %4305 = vmatpush.bf16.msra.mxu0 %v2667
    %4306 = vmatpush.bf16.msra.mxu0 %v2659
    %4307 = vmatpush.bf16.msra.mxu0 %v2651
    %4308 = vmatpush.bf16.msra.mxu0 %v2643
    %4309 = vmatpush.bf16.msra.mxu0 %v2635
    %4310 = vmatpush.bf16.msra.mxu0 %v2627
    %4311 = vmatpush.bf16.msra.mxu0 %v2619
    %4312 = vmatpush.bf16.msra.mxu0 %v2611
    %4313 = vmatmul.bf16.gmra.mxu0 %v467
    %v4314 = vpop.f32.mrf.mxu0
    %v4315 = vadd.f32 %v4302, %v4314
    %v4316 = vpop.f32.mrf.mxu0
    %4317 = vdwg.mxu0
    %4318 = vmatpush.bf16.msra.mxu0 %v2731
    %4319 = vmatpush.bf16.msra.mxu0 %v2723
    %4320 = vmatpush.bf16.msra.mxu0 %v2715
    %4321 = vmatpush.bf16.msra.mxu0 %v2707
    %4322 = vmatpush.bf16.msra.mxu0 %v2699
    %4323 = vmatpush.bf16.msra.mxu0 %v2691
    %4324 = vmatpush.bf16.msra.mxu0 %v2683
    %4325 = vmatpush.bf16.msra.mxu0 %v2675
    %4326 = vmatmul.bf16.gmra.mxu0 %v468
    %v4327 = vpop.f32.mrf.mxu0
    %v4328 = vadd.f32 %v4315, %v4327
    %v4329 = vpop.f32.mrf.mxu0
    %4330 = vdwg.mxu0
    %4331 = vmatpush.bf16.msra.mxu0 %v2795
    %4332 = vmatpush.bf16.msra.mxu0 %v2787
    %4333 = vmatpush.bf16.msra.mxu0 %v2779
    %4334 = vmatpush.bf16.msra.mxu0 %v2771
    %4335 = vmatpush.bf16.msra.mxu0 %v2763
    %4336 = vmatpush.bf16.msra.mxu0 %v2755
    %4337 = vmatpush.bf16.msra.mxu0 %v2747
    %4338 = vmatpush.bf16.msra.mxu0 %v2739
    %4339 = vmatmul.bf16.gmra.mxu0 %v469
    %v4340 = vpop.f32.mrf.mxu0
    %v4341 = vadd.f32 %v4328, %v4340
    %v4342 = vpop.f32.mrf.mxu0
    %4343 = vdwg.mxu0
    %4344 = vmatpush.bf16.msra.mxu0 %v2859
    %4345 = vmatpush.bf16.msra.mxu0 %v2851
    %4346 = vmatpush.bf16.msra.mxu0 %v2843
    %4347 = vmatpush.bf16.msra.mxu0 %v2835
    %4348 = vmatpush.bf16.msra.mxu0 %v2827
    %4349 = vmatpush.bf16.msra.mxu0 %v2819
    %4350 = vmatpush.bf16.msra.mxu0 %v2811
    %4351 = vmatpush.bf16.msra.mxu0 %v2803
    %4352 = vmatmul.bf16.gmra.mxu0 %v470
    %v4353 = vpop.f32.mrf.mxu0
    %v4354 = vadd.f32 %v4341, %v4353
    %v4355 = vpop.f32.mrf.mxu0
    %4356 = vdwg.mxu0
    %4357 = vmatpush.bf16.msra.mxu0 %v2923
    %4358 = vmatpush.bf16.msra.mxu0 %v2915
    %4359 = vmatpush.bf16.msra.mxu0 %v2907
    %4360 = vmatpush.bf16.msra.mxu0 %v2899
    %4361 = vmatpush.bf16.msra.mxu0 %v2891
    %4362 = vmatpush.bf16.msra.mxu0 %v2883
    %4363 = vmatpush.bf16.msra.mxu0 %v2875
    %4364 = vmatpush.bf16.msra.mxu0 %v2867
    %4365 = vmatmul.bf16.gmra.mxu0 %v471
    %v4366 = vpop.f32.mrf.mxu0
    %v4367 = vadd.f32 %v4354, %v4366
    %v4368 = vpop.f32.mrf.mxu0
    %4369 = vdwg.mxu0
    %4370 = vmatpush.bf16.msra.mxu0 %v2987
    %4371 = vmatpush.bf16.msra.mxu0 %v2979
    %4372 = vmatpush.bf16.msra.mxu0 %v2971
    %4373 = vmatpush.bf16.msra.mxu0 %v2963
    %4374 = vmatpush.bf16.msra.mxu0 %v2955
    %4375 = vmatpush.bf16.msra.mxu0 %v2947
    %4376 = vmatpush.bf16.msra.mxu0 %v2939
    %4377 = vmatpush.bf16.msra.mxu0 %v2931
    %4378 = vmatmul.bf16.gmra.mxu0 %v472
    %v4379 = vpop.f32.mrf.mxu0
    %v4380 = vadd.f32 %v4367, %v4379
    %v4381 = vpop.f32.mrf.mxu0
    %4382 = vdwg.mxu0
    %4383 = vmatpush.bf16.msra.mxu0 %v3051
    %4384 = vmatpush.bf16.msra.mxu0 %v3043
    %4385 = vmatpush.bf16.msra.mxu0 %v3035
    %4386 = vmatpush.bf16.msra.mxu0 %v3027
    %4387 = vmatpush.bf16.msra.mxu0 %v3019
    %4388 = vmatpush.bf16.msra.mxu0 %v3011
    %4389 = vmatpush.bf16.msra.mxu0 %v3003
    %4390 = vmatpush.bf16.msra.mxu0 %v2995
    %4391 = vmatmul.bf16.gmra.mxu0 %v473
    %v4392 = vpop.f32.mrf.mxu0
    %v4393 = vadd.f32 %v4380, %v4392
    %v4394 = vpop.f32.mrf.mxu0
    %4395 = vdwg.mxu0
    %v4396 = vmax.f32 %v3665, 0.0
    %v4397 = vmax.f32 %v3769, 0.0
    %v4398 = vmax.f32 %v3873, 0.0
    %v4399 = vmax.f32 %v3977, 0.0
    %v4400 = vmax.f32 %v4081, 0.0
    %v4401 = vmax.f32 %v4185, 0.0
    %v4402 = vmax.f32 %v4289, 0.0
    %v4403 = vmax.f32 %v4393, 0.0
    %v4404 = vpack.c.bf16 %v4396, %v4396
    %v4405 = vpack.c.bf16 %v4397, %v4397
    %v4406 = vpack.c.bf16 %v4398, %v4398
    %v4407 = vpack.c.bf16 %v4399, %v4399
    %v4408 = vpack.c.bf16 %v4400, %v4400
    %v4409 = vpack.c.bf16 %v4401, %v4401
    %v4410 = vpack.c.bf16 %v4402, %v4402
    %v4411 = vpack.c.bf16 %v4403, %v4403
    %v4412 = vld [vmem:[#allocation11] sm:$0xff]
    %v4413 = vld [vmem:[#allocation11 + $0x8] sm:$0xff]
    %v4414 = vld [vmem:[#allocation11 + $0x10] sm:$0xff]
    %v4415 = vld [vmem:[#allocation11 + $0x18] sm:$0xff]
    %v4416 = vld [vmem:[#allocation11 + $0x20] sm:$0xff]
    %v4417 = vld [vmem:[#allocation11 + $0x28] sm:$0xff]
    %v4418 = vld [vmem:[#allocation11 + $0x30] sm:$0xff]
    %v4419 = vld [vmem:[#allocation11 + $0x38] sm:$0xff]
    %v4420 = vld [vmem:[#allocation11 + $0x40] sm:$0xff]
    %v4421 = vld [vmem:[#allocation11 + $0x48] sm:$0xff]
    %v4422 = vld [vmem:[#allocation11 + $0x50] sm:$0xff]
    %v4423 = vld [vmem:[#allocation11 + $0x58] sm:$0xff]
    %v4424 = vld [vmem:[#allocation11 + $0x60] sm:$0xff]
    %v4425 = vld [vmem:[#allocation11 + $0x68] sm:$0xff]
    %v4426 = vld [vmem:[#allocation11 + $0x70] sm:$0xff]
    %v4427 = vld [vmem:[#allocation11 + $0x78] sm:$0xff]
    %v4428 = vld [vmem:[#allocation11 + $0x80] sm:$0xff]
    %v4429 = vld [vmem:[#allocation11 + $0x88] sm:$0xff]
    %v4430 = vld [vmem:[#allocation11 + $0x90] sm:$0xff]
    %v4431 = vld [vmem:[#allocation11 + $0x98] sm:$0xff]
    %v4432 = vld [vmem:[#allocation11 + $0xa0] sm:$0xff]
    %v4433 = vld [vmem:[#allocation11 + $0xa8] sm:$0xff]
    %v4434 = vld [vmem:[#allocation11 + $0xb0] sm:$0xff]
    %v4435 = vld [vmem:[#allocation11 + $0xb8] sm:$0xff]
    %v4436 = vld [vmem:[#allocation11 + $0xc0] sm:$0xff]
    %v4437 = vld [vmem:[#allocation11 + $0xc8] sm:$0xff]
    %v4438 = vld [vmem:[#allocation11 + $0xd0] sm:$0xff]
    %v4439 = vld [vmem:[#allocation11 + $0xd8] sm:$0xff]
    %v4440 = vld [vmem:[#allocation11 + $0xe0] sm:$0xff]
    %v4441 = vld [vmem:[#allocation11 + $0xe8] sm:$0xff]
    %v4442 = vld [vmem:[#allocation11 + $0xf0] sm:$0xff]
    %v4443 = vld [vmem:[#allocation11 + $0xf8] sm:$0xff]
    %v4444 = vld [vmem:[#allocation11 + $0x100] sm:$0xff]
    %v4445 = vld [vmem:[#allocation11 + $0x108] sm:$0xff]
    %v4446 = vld [vmem:[#allocation11 + $0x110] sm:$0xff]
    %v4447 = vld [vmem:[#allocation11 + $0x118] sm:$0xff]
    %v4448 = vld [vmem:[#allocation11 + $0x120] sm:$0xff]
    %v4449 = vld [vmem:[#allocation11 + $0x128] sm:$0xff]
    %v4450 = vld [vmem:[#allocation11 + $0x130] sm:$0xff]
    %v4451 = vld [vmem:[#allocation11 + $0x138] sm:$0xff]
    %v4452 = vld [vmem:[#allocation11 + $0x140] sm:$0xff]
    %v4453 = vld [vmem:[#allocation11 + $0x148] sm:$0xff]
    %v4454 = vld [vmem:[#allocation11 + $0x150] sm:$0xff]
    %v4455 = vld [vmem:[#allocation11 + $0x158] sm:$0xff]
    %v4456 = vld [vmem:[#allocation11 + $0x160] sm:$0xff]
    %v4457 = vld [vmem:[#allocation11 + $0x168] sm:$0xff]
    %v4458 = vld [vmem:[#allocation11 + $0x170] sm:$0xff]
    %v4459 = vld [vmem:[#allocation11 + $0x178] sm:$0xff]
    %v4460 = vld [vmem:[#allocation11 + $0x180] sm:$0xff]
    %v4461 = vld [vmem:[#allocation11 + $0x188] sm:$0xff]
    %v4462 = vld [vmem:[#allocation11 + $0x190] sm:$0xff]
    %v4463 = vld [vmem:[#allocation11 + $0x198] sm:$0xff]
    %v4464 = vld [vmem:[#allocation11 + $0x1a0] sm:$0xff]
    %v4465 = vld [vmem:[#allocation11 + $0x1a8] sm:$0xff]
    %v4466 = vld [vmem:[#allocation11 + $0x1b0] sm:$0xff]
    %v4467 = vld [vmem:[#allocation11 + $0x1b8] sm:$0xff]
    %v4468 = vld [vmem:[#allocation11 + $0x1c0] sm:$0xff]
    %v4469 = vld [vmem:[#allocation11 + $0x1c8] sm:$0xff]
    %v4470 = vld [vmem:[#allocation11 + $0x1d0] sm:$0xff]
    %v4471 = vld [vmem:[#allocation11 + $0x1d8] sm:$0xff]
    %v4472 = vld [vmem:[#allocation11 + $0x1e0] sm:$0xff]
    %v4473 = vld [vmem:[#allocation11 + $0x1e8] sm:$0xff]
    %v4474 = vld [vmem:[#allocation11 + $0x1f0] sm:$0xff]
    %v4475 = vld [vmem:[#allocation11 + $0x1f8] sm:$0xff]
    %v4476 = vld [vmem:[#allocation11 + $0x200] sm:$0xff]
    %v4477 = vld [vmem:[#allocation11 + $0x208] sm:$0xff]
    %v4478 = vld [vmem:[#allocation11 + $0x210] sm:$0xff]
    %v4479 = vld [vmem:[#allocation11 + $0x218] sm:$0xff]
    %v4480 = vld [vmem:[#allocation11 + $0x220] sm:$0xff]
    %v4481 = vld [vmem:[#allocation11 + $0x228] sm:$0xff]
    %v4482 = vld [vmem:[#allocation11 + $0x230] sm:$0xff]
    %v4483 = vld [vmem:[#allocation11 + $0x238] sm:$0xff]
    %v4484 = vld [vmem:[#allocation11 + $0x240] sm:$0xff]
    %v4485 = vld [vmem:[#allocation11 + $0x248] sm:$0xff]
    %v4486 = vld [vmem:[#allocation11 + $0x250] sm:$0xff]
    %v4487 = vld [vmem:[#allocation11 + $0x258] sm:$0xff]
    %v4488 = vld [vmem:[#allocation11 + $0x260] sm:$0xff]
    %v4489 = vld [vmem:[#allocation11 + $0x268] sm:$0xff]
    %v4490 = vld [vmem:[#allocation11 + $0x270] sm:$0xff]
    %v4491 = vld [vmem:[#allocation11 + $0x278] sm:$0xff]
    %v4492 = vld [vmem:[#allocation11 + $0x280] sm:$0xff]
    %v4493 = vld [vmem:[#allocation11 + $0x288] sm:$0xff]
    %v4494 = vld [vmem:[#allocation11 + $0x290] sm:$0xff]
    %v4495 = vld [vmem:[#allocation11 + $0x298] sm:$0xff]
    %v4496 = vld [vmem:[#allocation11 + $0x2a0] sm:$0xff]
    %v4497 = vld [vmem:[#allocation11 + $0x2a8] sm:$0xff]
    %v4498 = vld [vmem:[#allocation11 + $0x2b0] sm:$0xff]
    %v4499 = vld [vmem:[#allocation11 + $0x2b8] sm:$0xff]
    %v4500 = vld [vmem:[#allocation11 + $0x2c0] sm:$0xff]
    %v4501 = vld [vmem:[#allocation11 + $0x2c8] sm:$0xff]
    %v4502 = vld [vmem:[#allocation11 + $0x2d0] sm:$0xff]
    %v4503 = vld [vmem:[#allocation11 + $0x2d8] sm:$0xff]
    %v4504 = vld [vmem:[#allocation11 + $0x2e0] sm:$0xff]
    %v4505 = vld [vmem:[#allocation11 + $0x2e8] sm:$0xff]
    %v4506 = vld [vmem:[#allocation11 + $0x2f0] sm:$0xff]
    %v4507 = vld [vmem:[#allocation11 + $0x2f8] sm:$0xff]
    %v4508 = vld [vmem:[#allocation11 + $0x300] sm:$0xff]
    %v4509 = vld [vmem:[#allocation11 + $0x308] sm:$0xff]
    %v4510 = vld [vmem:[#allocation11 + $0x310] sm:$0xff]
    %v4511 = vld [vmem:[#allocation11 + $0x318] sm:$0xff]
    %v4512 = vld [vmem:[#allocation11 + $0x320] sm:$0xff]
    %v4513 = vld [vmem:[#allocation11 + $0x328] sm:$0xff]
    %v4514 = vld [vmem:[#allocation11 + $0x330] sm:$0xff]
    %v4515 = vld [vmem:[#allocation11 + $0x338] sm:$0xff]
    %v4516 = vld [vmem:[#allocation11 + $0x340] sm:$0xff]
    %v4517 = vld [vmem:[#allocation11 + $0x348] sm:$0xff]
    %v4518 = vld [vmem:[#allocation11 + $0x350] sm:$0xff]
    %v4519 = vld [vmem:[#allocation11 + $0x358] sm:$0xff]
    %v4520 = vld [vmem:[#allocation11 + $0x360] sm:$0xff]
    %v4521 = vld [vmem:[#allocation11 + $0x368] sm:$0xff]
    %v4522 = vld [vmem:[#allocation11 + $0x370] sm:$0xff]
    %v4523 = vld [vmem:[#allocation11 + $0x378] sm:$0xff]
    %v4524 = vld [vmem:[#allocation11 + $0x380] sm:$0xff]
    %v4525 = vld [vmem:[#allocation11 + $0x388] sm:$0xff]
    %v4526 = vld [vmem:[#allocation11 + $0x390] sm:$0xff]
    %v4527 = vld [vmem:[#allocation11 + $0x398] sm:$0xff]
    %v4528 = vld [vmem:[#allocation11 + $0x3a0] sm:$0xff]
    %v4529 = vld [vmem:[#allocation11 + $0x3a8] sm:$0xff]
    %v4530 = vld [vmem:[#allocation11 + $0x3b0] sm:$0xff]
    %v4531 = vld [vmem:[#allocation11 + $0x3b8] sm:$0xff]
    %v4532 = vld [vmem:[#allocation11 + $0x3c0] sm:$0xff]
    %v4533 = vld [vmem:[#allocation11 + $0x3c8] sm:$0xff]
    %v4534 = vld [vmem:[#allocation11 + $0x3d0] sm:$0xff]
    %v4535 = vld [vmem:[#allocation11 + $0x3d8] sm:$0xff]
    %v4536 = vld [vmem:[#allocation11 + $0x3e0] sm:$0xff]
    %v4537 = vld [vmem:[#allocation11 + $0x3e8] sm:$0xff]
    %v4538 = vld [vmem:[#allocation11 + $0x3f0] sm:$0xff]
    %v4539 = vld [vmem:[#allocation11 + $0x3f8] sm:$0xff]
    %v4540 = vld [vmem:[#allocation11 + $0x400] sm:$0xff]
    %v4541 = vld [vmem:[#allocation11 + $0x408] sm:$0xff]
    %v4542 = vld [vmem:[#allocation11 + $0x410] sm:$0xff]
    %v4543 = vld [vmem:[#allocation11 + $0x418] sm:$0xff]
    %v4544 = vld [vmem:[#allocation11 + $0x420] sm:$0xff]
    %v4545 = vld [vmem:[#allocation11 + $0x428] sm:$0xff]
    %v4546 = vld [vmem:[#allocation11 + $0x430] sm:$0xff]
    %v4547 = vld [vmem:[#allocation11 + $0x438] sm:$0xff]
    %v4548 = vld [vmem:[#allocation11 + $0x440] sm:$0xff]
    %v4549 = vld [vmem:[#allocation11 + $0x448] sm:$0xff]
    %v4550 = vld [vmem:[#allocation11 + $0x450] sm:$0xff]
    %v4551 = vld [vmem:[#allocation11 + $0x458] sm:$0xff]
    %v4552 = vld [vmem:[#allocation11 + $0x460] sm:$0xff]
    %v4553 = vld [vmem:[#allocation11 + $0x468] sm:$0xff]
    %v4554 = vld [vmem:[#allocation11 + $0x470] sm:$0xff]
    %v4555 = vld [vmem:[#allocation11 + $0x478] sm:$0xff]
    %v4556 = vld [vmem:[#allocation11 + $0x480] sm:$0xff]
    %v4557 = vld [vmem:[#allocation11 + $0x488] sm:$0xff]
    %v4558 = vld [vmem:[#allocation11 + $0x490] sm:$0xff]
    %v4559 = vld [vmem:[#allocation11 + $0x498] sm:$0xff]
    %v4560 = vld [vmem:[#allocation11 + $0x4a0] sm:$0xff]
    %v4561 = vld [vmem:[#allocation11 + $0x4a8] sm:$0xff]
    %v4562 = vld [vmem:[#allocation11 + $0x4b0] sm:$0xff]
    %v4563 = vld [vmem:[#allocation11 + $0x4b8] sm:$0xff]
    %v4564 = vld [vmem:[#allocation11 + $0x4c0] sm:$0xff]
    %v4565 = vld [vmem:[#allocation11 + $0x4c8] sm:$0xff]
    %v4566 = vld [vmem:[#allocation11 + $0x4d0] sm:$0xff]
    %v4567 = vld [vmem:[#allocation11 + $0x4d8] sm:$0xff]
    %v4568 = vld [vmem:[#allocation11 + $0x4e0] sm:$0xff]
    %v4569 = vld [vmem:[#allocation11 + $0x4e8] sm:$0xff]
    %v4570 = vld [vmem:[#allocation11 + $0x4f0] sm:$0xff]
    %v4571 = vld [vmem:[#allocation11 + $0x4f8] sm:$0xff]
    %v4572 = vld [vmem:[#allocation11 + $0x500] sm:$0xff]
    %v4573 = vld [vmem:[#allocation11 + $0x508] sm:$0xff]
    %v4574 = vld [vmem:[#allocation11 + $0x510] sm:$0xff]
    %v4575 = vld [vmem:[#allocation11 + $0x518] sm:$0xff]
    %v4576 = vld [vmem:[#allocation11 + $0x520] sm:$0xff]
    %v4577 = vld [vmem:[#allocation11 + $0x528] sm:$0xff]
    %v4578 = vld [vmem:[#allocation11 + $0x530] sm:$0xff]
    %v4579 = vld [vmem:[#allocation11 + $0x538] sm:$0xff]
    %v4580 = vld [vmem:[#allocation11 + $0x540] sm:$0xff]
    %v4581 = vld [vmem:[#allocation11 + $0x548] sm:$0xff]
    %v4582 = vld [vmem:[#allocation11 + $0x550] sm:$0xff]
    %v4583 = vld [vmem:[#allocation11 + $0x558] sm:$0xff]
    %v4584 = vld [vmem:[#allocation11 + $0x560] sm:$0xff]
    %v4585 = vld [vmem:[#allocation11 + $0x568] sm:$0xff]
    %v4586 = vld [vmem:[#allocation11 + $0x570] sm:$0xff]
    %v4587 = vld [vmem:[#allocation11 + $0x578] sm:$0xff]
    %v4588 = vld [vmem:[#allocation11 + $0x580] sm:$0xff]
    %v4589 = vld [vmem:[#allocation11 + $0x588] sm:$0xff]
    %v4590 = vld [vmem:[#allocation11 + $0x590] sm:$0xff]
    %v4591 = vld [vmem:[#allocation11 + $0x598] sm:$0xff]
    %v4592 = vld [vmem:[#allocation11 + $0x5a0] sm:$0xff]
    %v4593 = vld [vmem:[#allocation11 + $0x5a8] sm:$0xff]
    %v4594 = vld [vmem:[#allocation11 + $0x5b0] sm:$0xff]
    %v4595 = vld [vmem:[#allocation11 + $0x5b8] sm:$0xff]
    %v4596 = vld [vmem:[#allocation11 + $0x5c0] sm:$0xff]
    %v4597 = vld [vmem:[#allocation11 + $0x5c8] sm:$0xff]
    %v4598 = vld [vmem:[#allocation11 + $0x5d0] sm:$0xff]
    %v4599 = vld [vmem:[#allocation11 + $0x5d8] sm:$0xff]
    %v4600 = vld [vmem:[#allocation11 + $0x5e0] sm:$0xff]
    %v4601 = vld [vmem:[#allocation11 + $0x5e8] sm:$0xff]
    %v4602 = vld [vmem:[#allocation11 + $0x5f0] sm:$0xff]
    %v4603 = vld [vmem:[#allocation11 + $0x5f8] sm:$0xff]
    %v4604 = vld [vmem:[#allocation11 + $0x600] sm:$0xff]
    %v4605 = vld [vmem:[#allocation11 + $0x608] sm:$0xff]
    %v4606 = vld [vmem:[#allocation11 + $0x610] sm:$0xff]
    %v4607 = vld [vmem:[#allocation11 + $0x618] sm:$0xff]
    %v4608 = vld [vmem:[#allocation11 + $0x620] sm:$0xff]
    %v4609 = vld [vmem:[#allocation11 + $0x628] sm:$0xff]
    %v4610 = vld [vmem:[#allocation11 + $0x630] sm:$0xff]
    %v4611 = vld [vmem:[#allocation11 + $0x638] sm:$0xff]
    %v4612 = vld [vmem:[#allocation11 + $0x640] sm:$0xff]
    %v4613 = vld [vmem:[#allocation11 + $0x648] sm:$0xff]
    %v4614 = vld [vmem:[#allocation11 + $0x650] sm:$0xff]
    %v4615 = vld [vmem:[#allocation11 + $0x658] sm:$0xff]
    %v4616 = vld [vmem:[#allocation11 + $0x660] sm:$0xff]
    %v4617 = vld [vmem:[#allocation11 + $0x668] sm:$0xff]
    %v4618 = vld [vmem:[#allocation11 + $0x670] sm:$0xff]
    %v4619 = vld [vmem:[#allocation11 + $0x678] sm:$0xff]
    %v4620 = vld [vmem:[#allocation11 + $0x680] sm:$0xff]
    %v4621 = vld [vmem:[#allocation11 + $0x688] sm:$0xff]
    %v4622 = vld [vmem:[#allocation11 + $0x690] sm:$0xff]
    %v4623 = vld [vmem:[#allocation11 + $0x698] sm:$0xff]
    %v4624 = vld [vmem:[#allocation11 + $0x6a0] sm:$0xff]
    %v4625 = vld [vmem:[#allocation11 + $0x6a8] sm:$0xff]
    %v4626 = vld [vmem:[#allocation11 + $0x6b0] sm:$0xff]
    %v4627 = vld [vmem:[#allocation11 + $0x6b8] sm:$0xff]
    %v4628 = vld [vmem:[#allocation11 + $0x6c0] sm:$0xff]
    %v4629 = vld [vmem:[#allocation11 + $0x6c8] sm:$0xff]
    %v4630 = vld [vmem:[#allocation11 + $0x6d0] sm:$0xff]
    %v4631 = vld [vmem:[#allocation11 + $0x6d8] sm:$0xff]
    %v4632 = vld [vmem:[#allocation11 + $0x6e0] sm:$0xff]
    %v4633 = vld [vmem:[#allocation11 + $0x6e8] sm:$0xff]
    %v4634 = vld [vmem:[#allocation11 + $0x6f0] sm:$0xff]
    %v4635 = vld [vmem:[#allocation11 + $0x6f8] sm:$0xff]
    %v4636 = vld [vmem:[#allocation11 + $0x700] sm:$0xff]
    %v4637 = vld [vmem:[#allocation11 + $0x708] sm:$0xff]
    %v4638 = vld [vmem:[#allocation11 + $0x710] sm:$0xff]
    %v4639 = vld [vmem:[#allocation11 + $0x718] sm:$0xff]
    %v4640 = vld [vmem:[#allocation11 + $0x720] sm:$0xff]
    %v4641 = vld [vmem:[#allocation11 + $0x728] sm:$0xff]
    %v4642 = vld [vmem:[#allocation11 + $0x730] sm:$0xff]
    %v4643 = vld [vmem:[#allocation11 + $0x738] sm:$0xff]
    %v4644 = vld [vmem:[#allocation11 + $0x740] sm:$0xff]
    %v4645 = vld [vmem:[#allocation11 + $0x748] sm:$0xff]
    %v4646 = vld [vmem:[#allocation11 + $0x750] sm:$0xff]
    %v4647 = vld [vmem:[#allocation11 + $0x758] sm:$0xff]
    %v4648 = vld [vmem:[#allocation11 + $0x760] sm:$0xff]
    %v4649 = vld [vmem:[#allocation11 + $0x768] sm:$0xff]
    %v4650 = vld [vmem:[#allocation11 + $0x770] sm:$0xff]
    %v4651 = vld [vmem:[#allocation11 + $0x778] sm:$0xff]
    %v4652 = vld [vmem:[#allocation11 + $0x780] sm:$0xff]
    %v4653 = vld [vmem:[#allocation11 + $0x788] sm:$0xff]
    %v4654 = vld [vmem:[#allocation11 + $0x790] sm:$0xff]
    %v4655 = vld [vmem:[#allocation11 + $0x798] sm:$0xff]
    %v4656 = vld [vmem:[#allocation11 + $0x7a0] sm:$0xff]
    %v4657 = vld [vmem:[#allocation11 + $0x7a8] sm:$0xff]
    %v4658 = vld [vmem:[#allocation11 + $0x7b0] sm:$0xff]
    %v4659 = vld [vmem:[#allocation11 + $0x7b8] sm:$0xff]
    %v4660 = vld [vmem:[#allocation11 + $0x7c0] sm:$0xff]
    %v4661 = vld [vmem:[#allocation11 + $0x7c8] sm:$0xff]
    %v4662 = vld [vmem:[#allocation11 + $0x7d0] sm:$0xff]
    %v4663 = vld [vmem:[#allocation11 + $0x7d8] sm:$0xff]
    %v4664 = vld [vmem:[#allocation11 + $0x7e0] sm:$0xff]
    %v4665 = vld [vmem:[#allocation11 + $0x7e8] sm:$0xff]
    %v4666 = vld [vmem:[#allocation11 + $0x7f0] sm:$0xff]
    %v4667 = vld [vmem:[#allocation11 + $0x7f8] sm:$0xff]
    %v4668 = vld [vmem:[#allocation13] sm:$0xf]
    %v4670 = vperm.slane %v4668, 0
    %v4671 = vperm.slane %v4668, 1
    %v4672 = vperm.slane %v4668, 2
    %v4673 = vperm.slane %v4668, 3
    %v4934 = vunpack.c.l.b16 %v4412
    %v4935 = vunpack.c.h.b16 %v4412
    %v4936 = vunpack.c.l.b16 %v4413
    %v4937 = vunpack.c.h.b16 %v4413
    %v4938 = vunpack.c.l.b16 %v4414
    %v4939 = vunpack.c.h.b16 %v4414
    %v4940 = vunpack.c.l.b16 %v4415
    %v4941 = vunpack.c.h.b16 %v4415
    %v4942 = vunpack.c.l.b16 %v4416
    %v4943 = vunpack.c.h.b16 %v4416
    %v4944 = vunpack.c.l.b16 %v4417
    %v4945 = vunpack.c.h.b16 %v4417
    %v4946 = vunpack.c.l.b16 %v4418
    %v4947 = vunpack.c.h.b16 %v4418
    %v4948 = vunpack.c.l.b16 %v4419
    %v4949 = vunpack.c.h.b16 %v4419
    %v4950 = vunpack.c.l.b16 %v4420
    %v4951 = vunpack.c.h.b16 %v4420
    %v4952 = vunpack.c.l.b16 %v4421
    %v4953 = vunpack.c.h.b16 %v4421
    %v4954 = vunpack.c.l.b16 %v4422
    %v4955 = vunpack.c.h.b16 %v4422
    %v4956 = vunpack.c.l.b16 %v4423
    %v4957 = vunpack.c.h.b16 %v4423
    %v4958 = vunpack.c.l.b16 %v4424
    %v4959 = vunpack.c.h.b16 %v4424
    %v4960 = vunpack.c.l.b16 %v4425
    %v4961 = vunpack.c.h.b16 %v4425
    %v4962 = vunpack.c.l.b16 %v4426
    %v4963 = vunpack.c.h.b16 %v4426
    %v4964 = vunpack.c.l.b16 %v4427
    %v4965 = vunpack.c.h.b16 %v4427
    %v4966 = vunpack.c.l.b16 %v4428
    %v4967 = vunpack.c.h.b16 %v4428
    %v4968 = vunpack.c.l.b16 %v4429
    %v4969 = vunpack.c.h.b16 %v4429
    %v4970 = vunpack.c.l.b16 %v4430
    %v4971 = vunpack.c.h.b16 %v4430
    %v4972 = vunpack.c.l.b16 %v4431
    %v4973 = vunpack.c.h.b16 %v4431
    %v4974 = vunpack.c.l.b16 %v4432
    %v4975 = vunpack.c.h.b16 %v4432
    %v4976 = vunpack.c.l.b16 %v4433
    %v4977 = vunpack.c.h.b16 %v4433
    %v4978 = vunpack.c.l.b16 %v4434
    %v4979 = vunpack.c.h.b16 %v4434
    %v4980 = vunpack.c.l.b16 %v4435
    %v4981 = vunpack.c.h.b16 %v4435
    %v4982 = vunpack.c.l.b16 %v4436
    %v4983 = vunpack.c.h.b16 %v4436
    %v4984 = vunpack.c.l.b16 %v4437
    %v4985 = vunpack.c.h.b16 %v4437
    %v4986 = vunpack.c.l.b16 %v4438
    %v4987 = vunpack.c.h.b16 %v4438
    %v4988 = vunpack.c.l.b16 %v4439
    %v4989 = vunpack.c.h.b16 %v4439
    %v4990 = vunpack.c.l.b16 %v4440
    %v4991 = vunpack.c.h.b16 %v4440
    %v4992 = vunpack.c.l.b16 %v4441
    %v4993 = vunpack.c.h.b16 %v4441
    %v4994 = vunpack.c.l.b16 %v4442
    %v4995 = vunpack.c.h.b16 %v4442
    %v4996 = vunpack.c.l.b16 %v4443
    %v4997 = vunpack.c.h.b16 %v4443
    %v4998 = vunpack.c.l.b16 %v4444
    %v4999 = vunpack.c.h.b16 %v4444
    %v5000 = vunpack.c.l.b16 %v4445
    %v5001 = vunpack.c.h.b16 %v4445
    %v5002 = vunpack.c.l.b16 %v4446
    %v5003 = vunpack.c.h.b16 %v4446
    %v5004 = vunpack.c.l.b16 %v4447
    %v5005 = vunpack.c.h.b16 %v4447
    %v5006 = vunpack.c.l.b16 %v4448
    %v5007 = vunpack.c.h.b16 %v4448
    %v5008 = vunpack.c.l.b16 %v4449
    %v5009 = vunpack.c.h.b16 %v4449
    %v5010 = vunpack.c.l.b16 %v4450
    %v5011 = vunpack.c.h.b16 %v4450
    %v5012 = vunpack.c.l.b16 %v4451
    %v5013 = vunpack.c.h.b16 %v4451
    %v5014 = vunpack.c.l.b16 %v4452
    %v5015 = vunpack.c.h.b16 %v4452
    %v5016 = vunpack.c.l.b16 %v4453
    %v5017 = vunpack.c.h.b16 %v4453
    %v5018 = vunpack.c.l.b16 %v4454
    %v5019 = vunpack.c.h.b16 %v4454
    %v5020 = vunpack.c.l.b16 %v4455
    %v5021 = vunpack.c.h.b16 %v4455
    %v5022 = vunpack.c.l.b16 %v4456
    %v5023 = vunpack.c.h.b16 %v4456
    %v5024 = vunpack.c.l.b16 %v4457
    %v5025 = vunpack.c.h.b16 %v4457
    %v5026 = vunpack.c.l.b16 %v4458
    %v5027 = vunpack.c.h.b16 %v4458
    %v5028 = vunpack.c.l.b16 %v4459
    %v5029 = vunpack.c.h.b16 %v4459
    %v5030 = vunpack.c.l.b16 %v4460
    %v5031 = vunpack.c.h.b16 %v4460
    %v5032 = vunpack.c.l.b16 %v4461
    %v5033 = vunpack.c.h.b16 %v4461
    %v5034 = vunpack.c.l.b16 %v4462
    %v5035 = vunpack.c.h.b16 %v4462
    %v5036 = vunpack.c.l.b16 %v4463
    %v5037 = vunpack.c.h.b16 %v4463
    %v5038 = vunpack.c.l.b16 %v4464
    %v5039 = vunpack.c.h.b16 %v4464
    %v5040 = vunpack.c.l.b16 %v4465
    %v5041 = vunpack.c.h.b16 %v4465
    %v5042 = vunpack.c.l.b16 %v4466
    %v5043 = vunpack.c.h.b16 %v4466
    %v5044 = vunpack.c.l.b16 %v4467
    %v5045 = vunpack.c.h.b16 %v4467
    %v5046 = vunpack.c.l.b16 %v4468
    %v5047 = vunpack.c.h.b16 %v4468
    %v5048 = vunpack.c.l.b16 %v4469
    %v5049 = vunpack.c.h.b16 %v4469
    %v5050 = vunpack.c.l.b16 %v4470
    %v5051 = vunpack.c.h.b16 %v4470
    %v5052 = vunpack.c.l.b16 %v4471
    %v5053 = vunpack.c.h.b16 %v4471
    %v5054 = vunpack.c.l.b16 %v4472
    %v5055 = vunpack.c.h.b16 %v4472
    %v5056 = vunpack.c.l.b16 %v4473
    %v5057 = vunpack.c.h.b16 %v4473
    %v5058 = vunpack.c.l.b16 %v4474
    %v5059 = vunpack.c.h.b16 %v4474
    %v5060 = vunpack.c.l.b16 %v4475
    %v5061 = vunpack.c.h.b16 %v4475
    %v5062 = vunpack.c.l.b16 %v4476
    %v5063 = vunpack.c.h.b16 %v4476
    %v5064 = vunpack.c.l.b16 %v4477
    %v5065 = vunpack.c.h.b16 %v4477
    %v5066 = vunpack.c.l.b16 %v4478
    %v5067 = vunpack.c.h.b16 %v4478
    %v5068 = vunpack.c.l.b16 %v4479
    %v5069 = vunpack.c.h.b16 %v4479
    %v5070 = vunpack.c.l.b16 %v4480
    %v5071 = vunpack.c.h.b16 %v4480
    %v5072 = vunpack.c.l.b16 %v4481
    %v5073 = vunpack.c.h.b16 %v4481
    %v5074 = vunpack.c.l.b16 %v4482
    %v5075 = vunpack.c.h.b16 %v4482
    %v5076 = vunpack.c.l.b16 %v4483
    %v5077 = vunpack.c.h.b16 %v4483
    %v5078 = vunpack.c.l.b16 %v4484
    %v5079 = vunpack.c.h.b16 %v4484
    %v5080 = vunpack.c.l.b16 %v4485
    %v5081 = vunpack.c.h.b16 %v4485
    %v5082 = vunpack.c.l.b16 %v4486
    %v5083 = vunpack.c.h.b16 %v4486
    %v5084 = vunpack.c.l.b16 %v4487
    %v5085 = vunpack.c.h.b16 %v4487
    %v5086 = vunpack.c.l.b16 %v4488
    %v5087 = vunpack.c.h.b16 %v4488
    %v5088 = vunpack.c.l.b16 %v4489
    %v5089 = vunpack.c.h.b16 %v4489
    %v5090 = vunpack.c.l.b16 %v4490
    %v5091 = vunpack.c.h.b16 %v4490
    %v5092 = vunpack.c.l.b16 %v4491
    %v5093 = vunpack.c.h.b16 %v4491
    %v5094 = vunpack.c.l.b16 %v4492
    %v5095 = vunpack.c.h.b16 %v4492
    %v5096 = vunpack.c.l.b16 %v4493
    %v5097 = vunpack.c.h.b16 %v4493
    %v5098 = vunpack.c.l.b16 %v4494
    %v5099 = vunpack.c.h.b16 %v4494
    %v5100 = vunpack.c.l.b16 %v4495
    %v5101 = vunpack.c.h.b16 %v4495
    %v5102 = vunpack.c.l.b16 %v4496
    %v5103 = vunpack.c.h.b16 %v4496
    %v5104 = vunpack.c.l.b16 %v4497
    %v5105 = vunpack.c.h.b16 %v4497
    %v5106 = vunpack.c.l.b16 %v4498
    %v5107 = vunpack.c.h.b16 %v4498
    %v5108 = vunpack.c.l.b16 %v4499
    %v5109 = vunpack.c.h.b16 %v4499
    %v5110 = vunpack.c.l.b16 %v4500
    %v5111 = vunpack.c.h.b16 %v4500
    %v5112 = vunpack.c.l.b16 %v4501
    %v5113 = vunpack.c.h.b16 %v4501
    %v5114 = vunpack.c.l.b16 %v4502
    %v5115 = vunpack.c.h.b16 %v4502
    %v5116 = vunpack.c.l.b16 %v4503
    %v5117 = vunpack.c.h.b16 %v4503
    %v5118 = vunpack.c.l.b16 %v4504
    %v5119 = vunpack.c.h.b16 %v4504
    %v5120 = vunpack.c.l.b16 %v4505
    %v5121 = vunpack.c.h.b16 %v4505
    %v5122 = vunpack.c.l.b16 %v4506
    %v5123 = vunpack.c.h.b16 %v4506
    %v5124 = vunpack.c.l.b16 %v4507
    %v5125 = vunpack.c.h.b16 %v4507
    %v5126 = vunpack.c.l.b16 %v4508
    %v5127 = vunpack.c.h.b16 %v4508
    %v5128 = vunpack.c.l.b16 %v4509
    %v5129 = vunpack.c.h.b16 %v4509
    %v5130 = vunpack.c.l.b16 %v4510
    %v5131 = vunpack.c.h.b16 %v4510
    %v5132 = vunpack.c.l.b16 %v4511
    %v5133 = vunpack.c.h.b16 %v4511
    %v5134 = vunpack.c.l.b16 %v4512
    %v5135 = vunpack.c.h.b16 %v4512
    %v5136 = vunpack.c.l.b16 %v4513
    %v5137 = vunpack.c.h.b16 %v4513
    %v5138 = vunpack.c.l.b16 %v4514
    %v5139 = vunpack.c.h.b16 %v4514
    %v5140 = vunpack.c.l.b16 %v4515
    %v5141 = vunpack.c.h.b16 %v4515
    %v5142 = vunpack.c.l.b16 %v4516
    %v5143 = vunpack.c.h.b16 %v4516
    %v5144 = vunpack.c.l.b16 %v4517
    %v5145 = vunpack.c.h.b16 %v4517
    %v5146 = vunpack.c.l.b16 %v4518
    %v5147 = vunpack.c.h.b16 %v4518
    %v5148 = vunpack.c.l.b16 %v4519
    %v5149 = vunpack.c.h.b16 %v4519
    %v5150 = vunpack.c.l.b16 %v4520
    %v5151 = vunpack.c.h.b16 %v4520
    %v5152 = vunpack.c.l.b16 %v4521
    %v5153 = vunpack.c.h.b16 %v4521
    %v5154 = vunpack.c.l.b16 %v4522
    %v5155 = vunpack.c.h.b16 %v4522
    %v5156 = vunpack.c.l.b16 %v4523
    %v5157 = vunpack.c.h.b16 %v4523
    %v5158 = vunpack.c.l.b16 %v4524
    %v5159 = vunpack.c.h.b16 %v4524
    %v5160 = vunpack.c.l.b16 %v4525
    %v5161 = vunpack.c.h.b16 %v4525
    %v5162 = vunpack.c.l.b16 %v4526
    %v5163 = vunpack.c.h.b16 %v4526
    %v5164 = vunpack.c.l.b16 %v4527
    %v5165 = vunpack.c.h.b16 %v4527
    %v5166 = vunpack.c.l.b16 %v4528
    %v5167 = vunpack.c.h.b16 %v4528
    %v5168 = vunpack.c.l.b16 %v4529
    %v5169 = vunpack.c.h.b16 %v4529
    %v5170 = vunpack.c.l.b16 %v4530
    %v5171 = vunpack.c.h.b16 %v4530
    %v5172 = vunpack.c.l.b16 %v4531
    %v5173 = vunpack.c.h.b16 %v4531
    %v5174 = vunpack.c.l.b16 %v4532
    %v5175 = vunpack.c.h.b16 %v4532
    %v5176 = vunpack.c.l.b16 %v4533
    %v5177 = vunpack.c.h.b16 %v4533
    %v5178 = vunpack.c.l.b16 %v4534
    %v5179 = vunpack.c.h.b16 %v4534
    %v5180 = vunpack.c.l.b16 %v4535
    %v5181 = vunpack.c.h.b16 %v4535
    %v5182 = vunpack.c.l.b16 %v4536
    %v5183 = vunpack.c.h.b16 %v4536
    %v5184 = vunpack.c.l.b16 %v4537
    %v5185 = vunpack.c.h.b16 %v4537
    %v5186 = vunpack.c.l.b16 %v4538
    %v5187 = vunpack.c.h.b16 %v4538
    %v5188 = vunpack.c.l.b16 %v4539
    %v5189 = vunpack.c.h.b16 %v4539
    %v5190 = vunpack.c.l.b16 %v4540
    %v5191 = vunpack.c.h.b16 %v4540
    %v5192 = vunpack.c.l.b16 %v4541
    %v5193 = vunpack.c.h.b16 %v4541
    %v5194 = vunpack.c.l.b16 %v4542
    %v5195 = vunpack.c.h.b16 %v4542
    %v5196 = vunpack.c.l.b16 %v4543
    %v5197 = vunpack.c.h.b16 %v4543
    %v5198 = vunpack.c.l.b16 %v4544
    %v5199 = vunpack.c.h.b16 %v4544
    %v5200 = vunpack.c.l.b16 %v4545
    %v5201 = vunpack.c.h.b16 %v4545
    %v5202 = vunpack.c.l.b16 %v4546
    %v5203 = vunpack.c.h.b16 %v4546
    %v5204 = vunpack.c.l.b16 %v4547
    %v5205 = vunpack.c.h.b16 %v4547
    %v5206 = vunpack.c.l.b16 %v4548
    %v5207 = vunpack.c.h.b16 %v4548
    %v5208 = vunpack.c.l.b16 %v4549
    %v5209 = vunpack.c.h.b16 %v4549
    %v5210 = vunpack.c.l.b16 %v4550
    %v5211 = vunpack.c.h.b16 %v4550
    %v5212 = vunpack.c.l.b16 %v4551
    %v5213 = vunpack.c.h.b16 %v4551
    %v5214 = vunpack.c.l.b16 %v4552
    %v5215 = vunpack.c.h.b16 %v4552
    %v5216 = vunpack.c.l.b16 %v4553
    %v5217 = vunpack.c.h.b16 %v4553
    %v5218 = vunpack.c.l.b16 %v4554
    %v5219 = vunpack.c.h.b16 %v4554
    %v5220 = vunpack.c.l.b16 %v4555
    %v5221 = vunpack.c.h.b16 %v4555
    %v5222 = vunpack.c.l.b16 %v4556
    %v5223 = vunpack.c.h.b16 %v4556
    %v5224 = vunpack.c.l.b16 %v4557
    %v5225 = vunpack.c.h.b16 %v4557
    %v5226 = vunpack.c.l.b16 %v4558
    %v5227 = vunpack.c.h.b16 %v4558
    %v5228 = vunpack.c.l.b16 %v4559
    %v5229 = vunpack.c.h.b16 %v4559
    %v5230 = vunpack.c.l.b16 %v4560
    %v5231 = vunpack.c.h.b16 %v4560
    %v5232 = vunpack.c.l.b16 %v4561
    %v5233 = vunpack.c.h.b16 %v4561
    %v5234 = vunpack.c.l.b16 %v4562
    %v5235 = vunpack.c.h.b16 %v4562
    %v5236 = vunpack.c.l.b16 %v4563
    %v5237 = vunpack.c.h.b16 %v4563
    %v5238 = vunpack.c.l.b16 %v4564
    %v5239 = vunpack.c.h.b16 %v4564
    %v5240 = vunpack.c.l.b16 %v4565
    %v5241 = vunpack.c.h.b16 %v4565
    %v5242 = vunpack.c.l.b16 %v4566
    %v5243 = vunpack.c.h.b16 %v4566
    %v5244 = vunpack.c.l.b16 %v4567
    %v5245 = vunpack.c.h.b16 %v4567
    %v5246 = vunpack.c.l.b16 %v4568
    %v5247 = vunpack.c.h.b16 %v4568
    %v5248 = vunpack.c.l.b16 %v4569
    %v5249 = vunpack.c.h.b16 %v4569
    %v5250 = vunpack.c.l.b16 %v4570
    %v5251 = vunpack.c.h.b16 %v4570
    %v5252 = vunpack.c.l.b16 %v4571
    %v5253 = vunpack.c.h.b16 %v4571
    %v5254 = vunpack.c.l.b16 %v4572
    %v5255 = vunpack.c.h.b16 %v4572
    %v5256 = vunpack.c.l.b16 %v4573
    %v5257 = vunpack.c.h.b16 %v4573
    %v5258 = vunpack.c.l.b16 %v4574
    %v5259 = vunpack.c.h.b16 %v4574
    %v5260 = vunpack.c.l.b16 %v4575
    %v5261 = vunpack.c.h.b16 %v4575
    %v5262 = vunpack.c.l.b16 %v4576
    %v5263 = vunpack.c.h.b16 %v4576
    %v5264 = vunpack.c.l.b16 %v4577
    %v5265 = vunpack.c.h.b16 %v4577
    %v5266 = vunpack.c.l.b16 %v4578
    %v5267 = vunpack.c.h.b16 %v4578
    %v5268 = vunpack.c.l.b16 %v4579
    %v5269 = vunpack.c.h.b16 %v4579
    %v5270 = vunpack.c.l.b16 %v4580
    %v5271 = vunpack.c.h.b16 %v4580
    %v5272 = vunpack.c.l.b16 %v4581
    %v5273 = vunpack.c.h.b16 %v4581
    %v5274 = vunpack.c.l.b16 %v4582
    %v5275 = vunpack.c.h.b16 %v4582
    %v5276 = vunpack.c.l.b16 %v4583
    %v5277 = vunpack.c.h.b16 %v4583
    %v5278 = vunpack.c.l.b16 %v4584
    %v5279 = vunpack.c.h.b16 %v4584
    %v5280 = vunpack.c.l.b16 %v4585
    %v5281 = vunpack.c.h.b16 %v4585
    %v5282 = vunpack.c.l.b16 %v4586
    %v5283 = vunpack.c.h.b16 %v4586
    %v5284 = vunpack.c.l.b16 %v4587
    %v5285 = vunpack.c.h.b16 %v4587
    %v5286 = vunpack.c.l.b16 %v4588
    %v5287 = vunpack.c.h.b16 %v4588
    %v5288 = vunpack.c.l.b16 %v4589
    %v5289 = vunpack.c.h.b16 %v4589
    %v5290 = vunpack.c.l.b16 %v4590
    %v5291 = vunpack.c.h.b16 %v4590
    %v5292 = vunpack.c.l.b16 %v4591
    %v5293 = vunpack.c.h.b16 %v4591
    %v5294 = vunpack.c.l.b16 %v4592
    %v5295 = vunpack.c.h.b16 %v4592
    %v5296 = vunpack.c.l.b16 %v4593
    %v5297 = vunpack.c.h.b16 %v4593
    %v5298 = vunpack.c.l.b16 %v4594
    %v5299 = vunpack.c.h.b16 %v4594
    %v5300 = vunpack.c.l.b16 %v4595
    %v5301 = vunpack.c.h.b16 %v4595
    %v5302 = vunpack.c.l.b16 %v4596
    %v5303 = vunpack.c.h.b16 %v4596
    %v5304 = vunpack.c.l.b16 %v4597
    %v5305 = vunpack.c.h.b16 %v4597
    %v5306 = vunpack.c.l.b16 %v4598
    %v5307 = vunpack.c.h.b16 %v4598
    %v5308 = vunpack.c.l.b16 %v4599
    %v5309 = vunpack.c.h.b16 %v4599
    %v5310 = vunpack.c.l.b16 %v4600
    %v5311 = vunpack.c.h.b16 %v4600
    %v5312 = vunpack.c.l.b16 %v4601
    %v5313 = vunpack.c.h.b16 %v4601
    %v5314 = vunpack.c.l.b16 %v4602
    %v5315 = vunpack.c.h.b16 %v4602
    %v5316 = vunpack.c.l.b16 %v4603
    %v5317 = vunpack.c.h.b16 %v4603
    %v5318 = vunpack.c.l.b16 %v4604
    %v5319 = vunpack.c.h.b16 %v4604
    %v5320 = vunpack.c.l.b16 %v4605
    %v5321 = vunpack.c.h.b16 %v4605
    %v5322 = vunpack.c.l.b16 %v4606
    %v5323 = vunpack.c.h.b16 %v4606
    %v5324 = vunpack.c.l.b16 %v4607
    %v5325 = vunpack.c.h.b16 %v4607
    %v5326 = vunpack.c.l.b16 %v4608
    %v5327 = vunpack.c.h.b16 %v4608
    %v5328 = vunpack.c.l.b16 %v4609
    %v5329 = vunpack.c.h.b16 %v4609
    %v5330 = vunpack.c.l.b16 %v4610
    %v5331 = vunpack.c.h.b16 %v4610
    %v5332 = vunpack.c.l.b16 %v4611
    %v5333 = vunpack.c.h.b16 %v4611
    %v5334 = vunpack.c.l.b16 %v4612
    %v5335 = vunpack.c.h.b16 %v4612
    %v5336 = vunpack.c.l.b16 %v4613
    %v5337 = vunpack.c.h.b16 %v4613
    %v5338 = vunpack.c.l.b16 %v4614
    %v5339 = vunpack.c.h.b16 %v4614
    %v5340 = vunpack.c.l.b16 %v4615
    %v5341 = vunpack.c.h.b16 %v4615
    %v5342 = vunpack.c.l.b16 %v4616
    %v5343 = vunpack.c.h.b16 %v4616
    %v5344 = vunpack.c.l.b16 %v4617
    %v5345 = vunpack.c.h.b16 %v4617
    %v5346 = vunpack.c.l.b16 %v4618
    %v5347 = vunpack.c.h.b16 %v4618
    %v5348 = vunpack.c.l.b16 %v4619
    %v5349 = vunpack.c.h.b16 %v4619
    %v5350 = vunpack.c.l.b16 %v4620
    %v5351 = vunpack.c.h.b16 %v4620
    %v5352 = vunpack.c.l.b16 %v4621
    %v5353 = vunpack.c.h.b16 %v4621
    %v5354 = vunpack.c.l.b16 %v4622
    %v5355 = vunpack.c.h.b16 %v4622
    %v5356 = vunpack.c.l.b16 %v4623
    %v5357 = vunpack.c.h.b16 %v4623
    %v5358 = vunpack.c.l.b16 %v4624
    %v5359 = vunpack.c.h.b16 %v4624
    %v5360 = vunpack.c.l.b16 %v4625
    %v5361 = vunpack.c.h.b16 %v4625
    %v5362 = vunpack.c.l.b16 %v4626
    %v5363 = vunpack.c.h.b16 %v4626
    %v5364 = vunpack.c.l.b16 %v4627
    %v5365 = vunpack.c.h.b16 %v4627
    %v5366 = vunpack.c.l.b16 %v4628
    %v5367 = vunpack.c.h.b16 %v4628
    %v5368 = vunpack.c.l.b16 %v4629
    %v5369 = vunpack.c.h.b16 %v4629
    %v5370 = vunpack.c.l.b16 %v4630
    %v5371 = vunpack.c.h.b16 %v4630
    %v5372 = vunpack.c.l.b16 %v4631
    %v5373 = vunpack.c.h.b16 %v4631
    %v5374 = vunpack.c.l.b16 %v4632
    %v5375 = vunpack.c.h.b16 %v4632
    %v5376 = vunpack.c.l.b16 %v4633
    %v5377 = vunpack.c.h.b16 %v4633
    %v5378 = vunpack.c.l.b16 %v4634
    %v5379 = vunpack.c.h.b16 %v4634
    %v5380 = vunpack.c.l.b16 %v4635
    %v5381 = vunpack.c.h.b16 %v4635
    %v5382 = vunpack.c.l.b16 %v4636
    %v5383 = vunpack.c.h.b16 %v4636
    %v5384 = vunpack.c.l.b16 %v4637
    %v5385 = vunpack.c.h.b16 %v4637
    %v5386 = vunpack.c.l.b16 %v4638
    %v5387 = vunpack.c.h.b16 %v4638
    %v5388 = vunpack.c.l.b16 %v4639
    %v5389 = vunpack.c.h.b16 %v4639
    %v5390 = vunpack.c.l.b16 %v4640
    %v5391 = vunpack.c.h.b16 %v4640
    %v5392 = vunpack.c.l.b16 %v4641
    %v5393 = vunpack.c.h.b16 %v4641
    %v5394 = vunpack.c.l.b16 %v4642
    %v5395 = vunpack.c.h.b16 %v4642
    %v5396 = vunpack.c.l.b16 %v4643
    %v5397 = vunpack.c.h.b16 %v4643
    %v5398 = vunpack.c.l.b16 %v4644
    %v5399 = vunpack.c.h.b16 %v4644
    %v5400 = vunpack.c.l.b16 %v4645
    %v5401 = vunpack.c.h.b16 %v4645
    %v5402 = vunpack.c.l.b16 %v4646
    %v5403 = vunpack.c.h.b16 %v4646
    %v5404 = vunpack.c.l.b16 %v4647
    %v5405 = vunpack.c.h.b16 %v4647
    %v5406 = vunpack.c.l.b16 %v4648
    %v5407 = vunpack.c.h.b16 %v4648
    %v5408 = vunpack.c.l.b16 %v4649
    %v5409 = vunpack.c.h.b16 %v4649
    %v5410 = vunpack.c.l.b16 %v4650
    %v5411 = vunpack.c.h.b16 %v4650
    %v5412 = vunpack.c.l.b16 %v4651
    %v5413 = vunpack.c.h.b16 %v4651
    %v5414 = vunpack.c.l.b16 %v4652
    %v5415 = vunpack.c.h.b16 %v4652
    %v5416 = vunpack.c.l.b16 %v4653
    %v5417 = vunpack.c.h.b16 %v4653
    %v5418 = vunpack.c.l.b16 %v4654
    %v5419 = vunpack.c.h.b16 %v4654
    %v5420 = vunpack.c.l.b16 %v4655
    %v5421 = vunpack.c.h.b16 %v4655
    %v5422 = vunpack.c.l.b16 %v4656
    %v5423 = vunpack.c.h.b16 %v4656
    %v5424 = vunpack.c.l.b16 %v4657
    %v5425 = vunpack.c.h.b16 %v4657
    %v5426 = vunpack.c.l.b16 %v4658
    %v5427 = vunpack.c.h.b16 %v4658
    %v5428 = vunpack.c.l.b16 %v4659
    %v5429 = vunpack.c.h.b16 %v4659
    %v5430 = vunpack.c.l.b16 %v4660
    %v5431 = vunpack.c.h.b16 %v4660
    %v5432 = vunpack.c.l.b16 %v4661
    %v5433 = vunpack.c.h.b16 %v4661
    %v5434 = vunpack.c.l.b16 %v4662
    %v5435 = vunpack.c.h.b16 %v4662
    %v5436 = vunpack.c.l.b16 %v4663
    %v5437 = vunpack.c.h.b16 %v4663
    %v5438 = vunpack.c.l.b16 %v4664
    %v5439 = vunpack.c.h.b16 %v4664
    %v5440 = vunpack.c.l.b16 %v4665
    %v5441 = vunpack.c.h.b16 %v4665
    %v5442 = vunpack.c.l.b16 %v4666
    %v5443 = vunpack.c.h.b16 %v4666
    %v5444 = vunpack.c.l.b16 %v4667
    %v5445 = vunpack.c.h.b16 %v4667
    %v5446 = vpack.c.b16 %v4938, %v4934
    %v5447 = vpack.c.b16 %v4939, %v4935
    %v5448 = vpack.c.b16 %v4940, %v4936
    %v5449 = vpack.c.b16 %v4941, %v4937
    %v5450 = vpack.c.b16 %v4946, %v4942
    %v5451 = vpack.c.b16 %v4947, %v4943
    %v5452 = vpack.c.b16 %v4948, %v4944
    %v5453 = vpack.c.b16 %v4949, %v4945
    %v5454 = vpack.c.b16 %v4954, %v4950
    %v5455 = vpack.c.b16 %v4955, %v4951
    %v5456 = vpack.c.b16 %v4956, %v4952
    %v5457 = vpack.c.b16 %v4957, %v4953
    %v5458 = vpack.c.b16 %v4962, %v4958
    %v5459 = vpack.c.b16 %v4963, %v4959
    %v5460 = vpack.c.b16 %v4964, %v4960
    %v5461 = vpack.c.b16 %v4965, %v4961
    %v5462 = vpack.c.b16 %v4970, %v4966
    %v5463 = vpack.c.b16 %v4971, %v4967
    %v5464 = vpack.c.b16 %v4972, %v4968
    %v5465 = vpack.c.b16 %v4973, %v4969
    %v5466 = vpack.c.b16 %v4978, %v4974
    %v5467 = vpack.c.b16 %v4979, %v4975
    %v5468 = vpack.c.b16 %v4980, %v4976
    %v5469 = vpack.c.b16 %v4981, %v4977
    %v5470 = vpack.c.b16 %v4986, %v4982
    %v5471 = vpack.c.b16 %v4987, %v4983
    %v5472 = vpack.c.b16 %v4988, %v4984
    %v5473 = vpack.c.b16 %v4989, %v4985
    %v5474 = vpack.c.b16 %v4994, %v4990
    %v5475 = vpack.c.b16 %v4995, %v4991
    %v5476 = vpack.c.b16 %v4996, %v4992
    %v5477 = vpack.c.b16 %v4997, %v4993
    %v5478 = vpack.c.b16 %v5002, %v4998
    %v5479 = vpack.c.b16 %v5003, %v4999
    %v5480 = vpack.c.b16 %v5004, %v5000
    %v5481 = vpack.c.b16 %v5005, %v5001
    %v5482 = vpack.c.b16 %v5010, %v5006
    %v5483 = vpack.c.b16 %v5011, %v5007
    %v5484 = vpack.c.b16 %v5012, %v5008
    %v5485 = vpack.c.b16 %v5013, %v5009
    %v5486 = vpack.c.b16 %v5018, %v5014
    %v5487 = vpack.c.b16 %v5019, %v5015
    %v5488 = vpack.c.b16 %v5020, %v5016
    %v5489 = vpack.c.b16 %v5021, %v5017
    %v5490 = vpack.c.b16 %v5026, %v5022
    %v5491 = vpack.c.b16 %v5027, %v5023
    %v5492 = vpack.c.b16 %v5028, %v5024
    %v5493 = vpack.c.b16 %v5029, %v5025
    %v5494 = vpack.c.b16 %v5034, %v5030
    %v5495 = vpack.c.b16 %v5035, %v5031
    %v5496 = vpack.c.b16 %v5036, %v5032
    %v5497 = vpack.c.b16 %v5037, %v5033
    %v5498 = vpack.c.b16 %v5042, %v5038
    %v5499 = vpack.c.b16 %v5043, %v5039
    %v5500 = vpack.c.b16 %v5044, %v5040
    %v5501 = vpack.c.b16 %v5045, %v5041
    %v5502 = vpack.c.b16 %v5050, %v5046
    %v5503 = vpack.c.b16 %v5051, %v5047
    %v5504 = vpack.c.b16 %v5052, %v5048
    %v5505 = vpack.c.b16 %v5053, %v5049
    %v5506 = vpack.c.b16 %v5058, %v5054
    %v5507 = vpack.c.b16 %v5059, %v5055
    %v5508 = vpack.c.b16 %v5060, %v5056
    %v5509 = vpack.c.b16 %v5061, %v5057
    %v5510 = vpack.c.b16 %v5066, %v5062
    %v5511 = vpack.c.b16 %v5067, %v5063
    %v5512 = vpack.c.b16 %v5068, %v5064
    %v5513 = vpack.c.b16 %v5069, %v5065
    %v5514 = vpack.c.b16 %v5074, %v5070
    %v5515 = vpack.c.b16 %v5075, %v5071
    %v5516 = vpack.c.b16 %v5076, %v5072
    %v5517 = vpack.c.b16 %v5077, %v5073
    %v5518 = vpack.c.b16 %v5082, %v5078
    %v5519 = vpack.c.b16 %v5083, %v5079
    %v5520 = vpack.c.b16 %v5084, %v5080
    %v5521 = vpack.c.b16 %v5085, %v5081
    %v5522 = vpack.c.b16 %v5090, %v5086
    %v5523 = vpack.c.b16 %v5091, %v5087
    %v5524 = vpack.c.b16 %v5092, %v5088
    %v5525 = vpack.c.b16 %v5093, %v5089
    %v5526 = vpack.c.b16 %v5098, %v5094
    %v5527 = vpack.c.b16 %v5099, %v5095
    %v5528 = vpack.c.b16 %v5100, %v5096
    %v5529 = vpack.c.b16 %v5101, %v5097
    %v5530 = vpack.c.b16 %v5106, %v5102
    %v5531 = vpack.c.b16 %v5107, %v5103
    %v5532 = vpack.c.b16 %v5108, %v5104
    %v5533 = vpack.c.b16 %v5109, %v5105
    %v5534 = vpack.c.b16 %v5114, %v5110
    %v5535 = vpack.c.b16 %v5115, %v5111
    %v5536 = vpack.c.b16 %v5116, %v5112
    %v5537 = vpack.c.b16 %v5117, %v5113
    %v5538 = vpack.c.b16 %v5122, %v5118
    %v5539 = vpack.c.b16 %v5123, %v5119
    %v5540 = vpack.c.b16 %v5124, %v5120
    %v5541 = vpack.c.b16 %v5125, %v5121
    %v5542 = vpack.c.b16 %v5130, %v5126
    %v5543 = vpack.c.b16 %v5131, %v5127
    %v5544 = vpack.c.b16 %v5132, %v5128
    %v5545 = vpack.c.b16 %v5133, %v5129
    %v5546 = vpack.c.b16 %v5138, %v5134
    %v5547 = vpack.c.b16 %v5139, %v5135
    %v5548 = vpack.c.b16 %v5140, %v5136
    %v5549 = vpack.c.b16 %v5141, %v5137
    %v5550 = vpack.c.b16 %v5146, %v5142
    %v5551 = vpack.c.b16 %v5147, %v5143
    %v5552 = vpack.c.b16 %v5148, %v5144
    %v5553 = vpack.c.b16 %v5149, %v5145
    %v5554 = vpack.c.b16 %v5154, %v5150
    %v5555 = vpack.c.b16 %v5155, %v5151
    %v5556 = vpack.c.b16 %v5156, %v5152
    %v5557 = vpack.c.b16 %v5157, %v5153
    %v5558 = vpack.c.b16 %v5162, %v5158
    %v5559 = vpack.c.b16 %v5163, %v5159
    %v5560 = vpack.c.b16 %v5164, %v5160
    %v5561 = vpack.c.b16 %v5165, %v5161
    %v5562 = vpack.c.b16 %v5170, %v5166
    %v5563 = vpack.c.b16 %v5171, %v5167
    %v5564 = vpack.c.b16 %v5172, %v5168
    %v5565 = vpack.c.b16 %v5173, %v5169
    %v5566 = vpack.c.b16 %v5178, %v5174
    %v5567 = vpack.c.b16 %v5179, %v5175
    %v5568 = vpack.c.b16 %v5180, %v5176
    %v5569 = vpack.c.b16 %v5181, %v5177
    %v5570 = vpack.c.b16 %v5186, %v5182
    %v5571 = vpack.c.b16 %v5187, %v5183
    %v5572 = vpack.c.b16 %v5188, %v5184
    %v5573 = vpack.c.b16 %v5189, %v5185
    %v5574 = vpack.c.b16 %v5194, %v5190
    %v5575 = vpack.c.b16 %v5195, %v5191
    %v5576 = vpack.c.b16 %v5196, %v5192
    %v5577 = vpack.c.b16 %v5197, %v5193
    %v5578 = vpack.c.b16 %v5202, %v5198
    %v5579 = vpack.c.b16 %v5203, %v5199
    %v5580 = vpack.c.b16 %v5204, %v5200
    %v5581 = vpack.c.b16 %v5205, %v5201
    %v5582 = vpack.c.b16 %v5210, %v5206
    %v5583 = vpack.c.b16 %v5211, %v5207
    %v5584 = vpack.c.b16 %v5212, %v5208
    %v5585 = vpack.c.b16 %v5213, %v5209
    %v5586 = vpack.c.b16 %v5218, %v5214
    %v5587 = vpack.c.b16 %v5219, %v5215
    %v5588 = vpack.c.b16 %v5220, %v5216
    %v5589 = vpack.c.b16 %v5221, %v5217
    %v5590 = vpack.c.b16 %v5226, %v5222
    %v5591 = vpack.c.b16 %v5227, %v5223
    %v5592 = vpack.c.b16 %v5228, %v5224
    %v5593 = vpack.c.b16 %v5229, %v5225
    %v5594 = vpack.c.b16 %v5234, %v5230
    %v5595 = vpack.c.b16 %v5235, %v5231
    %v5596 = vpack.c.b16 %v5236, %v5232
    %v5597 = vpack.c.b16 %v5237, %v5233
    %v5598 = vpack.c.b16 %v5242, %v5238
    %v5599 = vpack.c.b16 %v5243, %v5239
    %v5600 = vpack.c.b16 %v5244, %v5240
    %v5601 = vpack.c.b16 %v5245, %v5241
    %v5602 = vpack.c.b16 %v5250, %v5246
    %v5603 = vpack.c.b16 %v5251, %v5247
    %v5604 = vpack.c.b16 %v5252, %v5248
    %v5605 = vpack.c.b16 %v5253, %v5249
    %v5606 = vpack.c.b16 %v5258, %v5254
    %v5607 = vpack.c.b16 %v5259, %v5255
    %v5608 = vpack.c.b16 %v5260, %v5256
    %v5609 = vpack.c.b16 %v5261, %v5257
    %v5610 = vpack.c.b16 %v5266, %v5262
    %v5611 = vpack.c.b16 %v5267, %v5263
    %v5612 = vpack.c.b16 %v5268, %v5264
    %v5613 = vpack.c.b16 %v5269, %v5265
    %v5614 = vpack.c.b16 %v5274, %v5270
    %v5615 = vpack.c.b16 %v5275, %v5271
    %v5616 = vpack.c.b16 %v5276, %v5272
    %v5617 = vpack.c.b16 %v5277, %v5273
    %v5618 = vpack.c.b16 %v5282, %v5278
    %v5619 = vpack.c.b16 %v5283, %v5279
    %v5620 = vpack.c.b16 %v5284, %v5280
    %v5621 = vpack.c.b16 %v5285, %v5281
    %v5622 = vpack.c.b16 %v5290, %v5286
    %v5623 = vpack.c.b16 %v5291, %v5287
    %v5624 = vpack.c.b16 %v5292, %v5288
    %v5625 = vpack.c.b16 %v5293, %v5289
    %v5626 = vpack.c.b16 %v5298, %v5294
    %v5627 = vpack.c.b16 %v5299, %v5295
    %v5628 = vpack.c.b16 %v5300, %v5296
    %v5629 = vpack.c.b16 %v5301, %v5297
    %v5630 = vpack.c.b16 %v5306, %v5302
    %v5631 = vpack.c.b16 %v5307, %v5303
    %v5632 = vpack.c.b16 %v5308, %v5304
    %v5633 = vpack.c.b16 %v5309, %v5305
    %v5634 = vpack.c.b16 %v5314, %v5310
    %v5635 = vpack.c.b16 %v5315, %v5311
    %v5636 = vpack.c.b16 %v5316, %v5312
    %v5637 = vpack.c.b16 %v5317, %v5313
    %v5638 = vpack.c.b16 %v5322, %v5318
    %v5639 = vpack.c.b16 %v5323, %v5319
    %v5640 = vpack.c.b16 %v5324, %v5320
    %v5641 = vpack.c.b16 %v5325, %v5321
    %v5642 = vpack.c.b16 %v5330, %v5326
    %v5643 = vpack.c.b16 %v5331, %v5327
    %v5644 = vpack.c.b16 %v5332, %v5328
    %v5645 = vpack.c.b16 %v5333, %v5329
    %v5646 = vpack.c.b16 %v5338, %v5334
    %v5647 = vpack.c.b16 %v5339, %v5335
    %v5648 = vpack.c.b16 %v5340, %v5336
    %v5649 = vpack.c.b16 %v5341, %v5337
    %v5650 = vpack.c.b16 %v5346, %v5342
    %v5651 = vpack.c.b16 %v5347, %v5343
    %v5652 = vpack.c.b16 %v5348, %v5344
    %v5653 = vpack.c.b16 %v5349, %v5345
    %v5654 = vpack.c.b16 %v5354, %v5350
    %v5655 = vpack.c.b16 %v5355, %v5351
    %v5656 = vpack.c.b16 %v5356, %v5352
    %v5657 = vpack.c.b16 %v5357, %v5353
    %v5658 = vpack.c.b16 %v5362, %v5358
    %v5659 = vpack.c.b16 %v5363, %v5359
    %v5660 = vpack.c.b16 %v5364, %v5360
    %v5661 = vpack.c.b16 %v5365, %v5361
    %v5662 = vpack.c.b16 %v5370, %v5366
    %v5663 = vpack.c.b16 %v5371, %v5367
    %v5664 = vpack.c.b16 %v5372, %v5368
    %v5665 = vpack.c.b16 %v5373, %v5369
    %v5666 = vpack.c.b16 %v5378, %v5374
    %v5667 = vpack.c.b16 %v5379, %v5375
    %v5668 = vpack.c.b16 %v5380, %v5376
    %v5669 = vpack.c.b16 %v5381, %v5377
    %v5670 = vpack.c.b16 %v5386, %v5382
    %v5671 = vpack.c.b16 %v5387, %v5383
    %v5672 = vpack.c.b16 %v5388, %v5384
    %v5673 = vpack.c.b16 %v5389, %v5385
    %v5674 = vpack.c.b16 %v5394, %v5390
    %v5675 = vpack.c.b16 %v5395, %v5391
    %v5676 = vpack.c.b16 %v5396, %v5392
    %v5677 = vpack.c.b16 %v5397, %v5393
    %v5678 = vpack.c.b16 %v5402, %v5398
    %v5679 = vpack.c.b16 %v5403, %v5399
    %v5680 = vpack.c.b16 %v5404, %v5400
    %v5681 = vpack.c.b16 %v5405, %v5401
    %v5682 = vpack.c.b16 %v5410, %v5406
    %v5683 = vpack.c.b16 %v5411, %v5407
    %v5684 = vpack.c.b16 %v5412, %v5408
    %v5685 = vpack.c.b16 %v5413, %v5409
    %v5686 = vpack.c.b16 %v5418, %v5414
    %v5687 = vpack.c.b16 %v5419, %v5415
    %v5688 = vpack.c.b16 %v5420, %v5416
    %v5689 = vpack.c.b16 %v5421, %v5417
    %v5690 = vpack.c.b16 %v5426, %v5422
    %v5691 = vpack.c.b16 %v5427, %v5423
    %v5692 = vpack.c.b16 %v5428, %v5424
    %v5693 = vpack.c.b16 %v5429, %v5425
    %v5694 = vpack.c.b16 %v5434, %v5430
    %v5695 = vpack.c.b16 %v5435, %v5431
    %v5696 = vpack.c.b16 %v5436, %v5432
    %v5697 = vpack.c.b16 %v5437, %v5433
    %v5698 = vpack.c.b16 %v5442, %v5438
    %v5699 = vpack.c.b16 %v5443, %v5439
    %v5700 = vpack.c.b16 %v5444, %v5440
    %v5701 = vpack.c.b16 %v5445, %v5441
    %5958 = vmatpush.bf16.msra.mxu0 %v5474
    %5959 = vmatpush.bf16.msra.mxu0 %v5470
    %5960 = vmatpush.bf16.msra.mxu0 %v5466
    %5961 = vmatpush.bf16.msra.mxu0 %v5462
    %5962 = vmatpush.bf16.msra.mxu0 %v5458
    %5963 = vmatpush.bf16.msra.mxu0 %v5454
    %5964 = vmatpush.bf16.msra.mxu0 %v5450
    %5965 = vmatpush.bf16.msra.mxu0 %v5446
    %5966 = vmatmul.bf16.gmra.mxu0 %v4404
    %v5967 = vpop.f32.mrf.mxu0
    %v5968 = vadd.f32 %v4670, %v5967
    %v5969 = vpop.f32.mrf.mxu0
    %5970 = vdwg.mxu0
    %5971 = vmatpush.bf16.msra.mxu0 %v5506
    %5972 = vmatpush.bf16.msra.mxu0 %v5502
    %5973 = vmatpush.bf16.msra.mxu0 %v5498
    %5974 = vmatpush.bf16.msra.mxu0 %v5494
    %5975 = vmatpush.bf16.msra.mxu0 %v5490
    %5976 = vmatpush.bf16.msra.mxu0 %v5486
    %5977 = vmatpush.bf16.msra.mxu0 %v5482
    %5978 = vmatpush.bf16.msra.mxu0 %v5478
    %5979 = vmatmul.bf16.gmra.mxu0 %v4405
    %v5980 = vpop.f32.mrf.mxu0
    %v5981 = vadd.f32 %v5968, %v5980
    %v5982 = vpop.f32.mrf.mxu0
    %5983 = vdwg.mxu0
    %5984 = vmatpush.bf16.msra.mxu0 %v5538
    %5985 = vmatpush.bf16.msra.mxu0 %v5534
    %5986 = vmatpush.bf16.msra.mxu0 %v5530
    %5987 = vmatpush.bf16.msra.mxu0 %v5526
    %5988 = vmatpush.bf16.msra.mxu0 %v5522
    %5989 = vmatpush.bf16.msra.mxu0 %v5518
    %5990 = vmatpush.bf16.msra.mxu0 %v5514
    %5991 = vmatpush.bf16.msra.mxu0 %v5510
    %5992 = vmatmul.bf16.gmra.mxu0 %v4406
    %v5993 = vpop.f32.mrf.mxu0
    %v5994 = vadd.f32 %v5981, %v5993
    %v5995 = vpop.f32.mrf.mxu0
    %5996 = vdwg.mxu0
    %5997 = vmatpush.bf16.msra.mxu0 %v5570
    %5998 = vmatpush.bf16.msra.mxu0 %v5566
    %5999 = vmatpush.bf16.msra.mxu0 %v5562
    %6000 = vmatpush.bf16.msra.mxu0 %v5558
    %6001 = vmatpush.bf16.msra.mxu0 %v5554
    %6002 = vmatpush.bf16.msra.mxu0 %v5550
    %6003 = vmatpush.bf16.msra.mxu0 %v5546
    %6004 = vmatpush.bf16.msra.mxu0 %v5542
    %6005 = vmatmul.bf16.gmra.mxu0 %v4407
    %v6006 = vpop.f32.mrf.mxu0
    %v6007 = vadd.f32 %v5994, %v6006
    %v6008 = vpop.f32.mrf.mxu0
    %6009 = vdwg.mxu0
    %6010 = vmatpush.bf16.msra.mxu0 %v5602
    %6011 = vmatpush.bf16.msra.mxu0 %v5598
    %6012 = vmatpush.bf16.msra.mxu0 %v5594
    %6013 = vmatpush.bf16.msra.mxu0 %v5590
    %6014 = vmatpush.bf16.msra.mxu0 %v5586
    %6015 = vmatpush.bf16.msra.mxu0 %v5582
    %6016 = vmatpush.bf16.msra.mxu0 %v5578
    %6017 = vmatpush.bf16.msra.mxu0 %v5574
    %6018 = vmatmul.bf16.gmra.mxu0 %v4408
    %v6019 = vpop.f32.mrf.mxu0
    %v6020 = vadd.f32 %v6007, %v6019
    %v6021 = vpop.f32.mrf.mxu0
    %6022 = vdwg.mxu0
    %6023 = vmatpush.bf16.msra.mxu0 %v5634
    %6024 = vmatpush.bf16.msra.mxu0 %v5630
    %6025 = vmatpush.bf16.msra.mxu0 %v5626
    %6026 = vmatpush.bf16.msra.mxu0 %v5622
    %6027 = vmatpush.bf16.msra.mxu0 %v5618
    %6028 = vmatpush.bf16.msra.mxu0 %v5614
    %6029 = vmatpush.bf16.msra.mxu0 %v5610
    %6030 = vmatpush.bf16.msra.mxu0 %v5606
    %6031 = vmatmul.bf16.gmra.mxu0 %v4409
    %v6032 = vpop.f32.mrf.mxu0
    %v6033 = vadd.f32 %v6020, %v6032
    %v6034 = vpop.f32.mrf.mxu0
    %6035 = vdwg.mxu0
    %6036 = vmatpush.bf16.msra.mxu0 %v5666
    %6037 = vmatpush.bf16.msra.mxu0 %v5662
    %6038 = vmatpush.bf16.msra.mxu0 %v5658
    %6039 = vmatpush.bf16.msra.mxu0 %v5654
    %6040 = vmatpush.bf16.msra.mxu0 %v5650
    %6041 = vmatpush.bf16.msra.mxu0 %v5646
    %6042 = vmatpush.bf16.msra.mxu0 %v5642
    %6043 = vmatpush.bf16.msra.mxu0 %v5638
    %6044 = vmatmul.bf16.gmra.mxu0 %v4410
    %v6045 = vpop.f32.mrf.mxu0
    %v6046 = vadd.f32 %v6033, %v6045
    %v6047 = vpop.f32.mrf.mxu0
    %6048 = vdwg.mxu0
    %6049 = vmatpush.bf16.msra.mxu0 %v5698
    %6050 = vmatpush.bf16.msra.mxu0 %v5694
    %6051 = vmatpush.bf16.msra.mxu0 %v5690
    %6052 = vmatpush.bf16.msra.mxu0 %v5686
    %6053 = vmatpush.bf16.msra.mxu0 %v5682
    %6054 = vmatpush.bf16.msra.mxu0 %v5678
    %6055 = vmatpush.bf16.msra.mxu0 %v5674
    %6056 = vmatpush.bf16.msra.mxu0 %v5670
    %6057 = vmatmul.bf16.gmra.mxu0 %v4411
    %v6058 = vpop.f32.mrf.mxu0
    %v6059 = vadd.f32 %v6046, %v6058
    %v6060 = vpop.f32.mrf.mxu0
    %6061 = vdwg.mxu0
    %6062 = vmatpush.bf16.msra.mxu0 %v5475
    %6063 = vmatpush.bf16.msra.mxu0 %v5471
    %6064 = vmatpush.bf16.msra.mxu0 %v5467
    %6065 = vmatpush.bf16.msra.mxu0 %v5463
    %6066 = vmatpush.bf16.msra.mxu0 %v5459
    %6067 = vmatpush.bf16.msra.mxu0 %v5455
    %6068 = vmatpush.bf16.msra.mxu0 %v5451
    %6069 = vmatpush.bf16.msra.mxu0 %v5447
    %6070 = vmatmul.bf16.gmra.mxu0 %v4404
    %v6071 = vpop.f32.mrf.mxu0
    %v6072 = vadd.f32 %v4671, %v6071
    %v6073 = vpop.f32.mrf.mxu0
    %6074 = vdwg.mxu0
    %6075 = vmatpush.bf16.msra.mxu0 %v5507
    %6076 = vmatpush.bf16.msra.mxu0 %v5503
    %6077 = vmatpush.bf16.msra.mxu0 %v5499
    %6078 = vmatpush.bf16.msra.mxu0 %v5495
    %6079 = vmatpush.bf16.msra.mxu0 %v5491
    %6080 = vmatpush.bf16.msra.mxu0 %v5487
    %6081 = vmatpush.bf16.msra.mxu0 %v5483
    %6082 = vmatpush.bf16.msra.mxu0 %v5479
    %6083 = vmatmul.bf16.gmra.mxu0 %v4405
    %v6084 = vpop.f32.mrf.mxu0
    %v6085 = vadd.f32 %v6072, %v6084
    %v6086 = vpop.f32.mrf.mxu0
    %6087 = vdwg.mxu0
    %6088 = vmatpush.bf16.msra.mxu0 %v5539
    %6089 = vmatpush.bf16.msra.mxu0 %v5535
    %6090 = vmatpush.bf16.msra.mxu0 %v5531
    %6091 = vmatpush.bf16.msra.mxu0 %v5527
    %6092 = vmatpush.bf16.msra.mxu0 %v5523
    %6093 = vmatpush.bf16.msra.mxu0 %v5519
    %6094 = vmatpush.bf16.msra.mxu0 %v5515
    %6095 = vmatpush.bf16.msra.mxu0 %v5511
    %6096 = vmatmul.bf16.gmra.mxu0 %v4406
    %v6097 = vpop.f32.mrf.mxu0
    %v6098 = vadd.f32 %v6085, %v6097
    %v6099 = vpop.f32.mrf.mxu0
    %6100 = vdwg.mxu0
    %6101 = vmatpush.bf16.msra.mxu0 %v5571
    %6102 = vmatpush.bf16.msra.mxu0 %v5567
    %6103 = vmatpush.bf16.msra.mxu0 %v5563
    %6104 = vmatpush.bf16.msra.mxu0 %v5559
    %6105 = vmatpush.bf16.msra.mxu0 %v5555
    %6106 = vmatpush.bf16.msra.mxu0 %v5551
    %6107 = vmatpush.bf16.msra.mxu0 %v5547
    %6108 = vmatpush.bf16.msra.mxu0 %v5543
    %6109 = vmatmul.bf16.gmra.mxu0 %v4407
    %v6110 = vpop.f32.mrf.mxu0
    %v6111 = vadd.f32 %v6098, %v6110
    %v6112 = vpop.f32.mrf.mxu0
    %6113 = vdwg.mxu0
    %6114 = vmatpush.bf16.msra.mxu0 %v5603
    %6115 = vmatpush.bf16.msra.mxu0 %v5599
    %6116 = vmatpush.bf16.msra.mxu0 %v5595
    %6117 = vmatpush.bf16.msra.mxu0 %v5591
    %6118 = vmatpush.bf16.msra.mxu0 %v5587
    %6119 = vmatpush.bf16.msra.mxu0 %v5583
    %6120 = vmatpush.bf16.msra.mxu0 %v5579
    %6121 = vmatpush.bf16.msra.mxu0 %v5575
    %6122 = vmatmul.bf16.gmra.mxu0 %v4408
    %v6123 = vpop.f32.mrf.mxu0
    %v6124 = vadd.f32 %v6111, %v6123
    %v6125 = vpop.f32.mrf.mxu0
    %6126 = vdwg.mxu0
    %6127 = vmatpush.bf16.msra.mxu0 %v5635
    %6128 = vmatpush.bf16.msra.mxu0 %v5631
    %6129 = vmatpush.bf16.msra.mxu0 %v5627
    %6130 = vmatpush.bf16.msra.mxu0 %v5623
    %6131 = vmatpush.bf16.msra.mxu0 %v5619
    %6132 = vmatpush.bf16.msra.mxu0 %v5615
    %6133 = vmatpush.bf16.msra.mxu0 %v5611
    %6134 = vmatpush.bf16.msra.mxu0 %v5607
    %6135 = vmatmul.bf16.gmra.mxu0 %v4409
    %v6136 = vpop.f32.mrf.mxu0
    %v6137 = vadd.f32 %v6124, %v6136
    %v6138 = vpop.f32.mrf.mxu0
    %6139 = vdwg.mxu0
    %6140 = vmatpush.bf16.msra.mxu0 %v5667
    %6141 = vmatpush.bf16.msra.mxu0 %v5663
    %6142 = vmatpush.bf16.msra.mxu0 %v5659
    %6143 = vmatpush.bf16.msra.mxu0 %v5655
    %6144 = vmatpush.bf16.msra.mxu0 %v5651
    %6145 = vmatpush.bf16.msra.mxu0 %v5647
    %6146 = vmatpush.bf16.msra.mxu0 %v5643
    %6147 = vmatpush.bf16.msra.mxu0 %v5639
    %6148 = vmatmul.bf16.gmra.mxu0 %v4410
    %v6149 = vpop.f32.mrf.mxu0
    %v6150 = vadd.f32 %v6137, %v6149
    %v6151 = vpop.f32.mrf.mxu0
    %6152 = vdwg.mxu0
    %6153 = vmatpush.bf16.msra.mxu0 %v5699
    %6154 = vmatpush.bf16.msra.mxu0 %v5695
    %6155 = vmatpush.bf16.msra.mxu0 %v5691
    %6156 = vmatpush.bf16.msra.mxu0 %v5687
    %6157 = vmatpush.bf16.msra.mxu0 %v5683
    %6158 = vmatpush.bf16.msra.mxu0 %v5679
    %6159 = vmatpush.bf16.msra.mxu0 %v5675
    %6160 = vmatpush.bf16.msra.mxu0 %v5671
    %6161 = vmatmul.bf16.gmra.mxu0 %v4411
    %v6162 = vpop.f32.mrf.mxu0
    %v6163 = vadd.f32 %v6150, %v6162
    %v6164 = vpop.f32.mrf.mxu0
    %6165 = vdwg.mxu0
    %6166 = vmatpush.bf16.msra.mxu0 %v5476
    %6167 = vmatpush.bf16.msra.mxu0 %v5472
    %6168 = vmatpush.bf16.msra.mxu0 %v5468
    %6169 = vmatpush.bf16.msra.mxu0 %v5464
    %6170 = vmatpush.bf16.msra.mxu0 %v5460
    %6171 = vmatpush.bf16.msra.mxu0 %v5456
    %6172 = vmatpush.bf16.msra.mxu0 %v5452
    %6173 = vmatpush.bf16.msra.mxu0 %v5448
    %6174 = vmatmul.bf16.gmra.mxu0 %v4404
    %v6175 = vpop.f32.mrf.mxu0
    %v6176 = vadd.f32 %v4672, %v6175
    %v6177 = vpop.f32.mrf.mxu0
    %6178 = vdwg.mxu0
    %6179 = vmatpush.bf16.msra.mxu0 %v5508
    %6180 = vmatpush.bf16.msra.mxu0 %v5504
    %6181 = vmatpush.bf16.msra.mxu0 %v5500
    %6182 = vmatpush.bf16.msra.mxu0 %v5496
    %6183 = vmatpush.bf16.msra.mxu0 %v5492
    %6184 = vmatpush.bf16.msra.mxu0 %v5488
    %6185 = vmatpush.bf16.msra.mxu0 %v5484
    %6186 = vmatpush.bf16.msra.mxu0 %v5480
    %6187 = vmatmul.bf16.gmra.mxu0 %v4405
    %v6188 = vpop.f32.mrf.mxu0
    %v6189 = vadd.f32 %v6176, %v6188
    %v6190 = vpop.f32.mrf.mxu0
    %6191 = vdwg.mxu0
    %6192 = vmatpush.bf16.msra.mxu0 %v5540
    %6193 = vmatpush.bf16.msra.mxu0 %v5536
    %6194 = vmatpush.bf16.msra.mxu0 %v5532
    %6195 = vmatpush.bf16.msra.mxu0 %v5528
    %6196 = vmatpush.bf16.msra.mxu0 %v5524
    %6197 = vmatpush.bf16.msra.mxu0 %v5520
    %6198 = vmatpush.bf16.msra.mxu0 %v5516
    %6199 = vmatpush.bf16.msra.mxu0 %v5512
    %6200 = vmatmul.bf16.gmra.mxu0 %v4406
    %v6201 = vpop.f32.mrf.mxu0
    %v6202 = vadd.f32 %v6189, %v6201
    %v6203 = vpop.f32.mrf.mxu0
    %6204 = vdwg.mxu0
    %6205 = vmatpush.bf16.msra.mxu0 %v5572
    %6206 = vmatpush.bf16.msra.mxu0 %v5568
    %6207 = vmatpush.bf16.msra.mxu0 %v5564
    %6208 = vmatpush.bf16.msra.mxu0 %v5560
    %6209 = vmatpush.bf16.msra.mxu0 %v5556
    %6210 = vmatpush.bf16.msra.mxu0 %v5552
    %6211 = vmatpush.bf16.msra.mxu0 %v5548
    %6212 = vmatpush.bf16.msra.mxu0 %v5544
    %6213 = vmatmul.bf16.gmra.mxu0 %v4407
    %v6214 = vpop.f32.mrf.mxu0
    %v6215 = vadd.f32 %v6202, %v6214
    %v6216 = vpop.f32.mrf.mxu0
    %6217 = vdwg.mxu0
    %6218 = vmatpush.bf16.msra.mxu0 %v5604
    %6219 = vmatpush.bf16.msra.mxu0 %v5600
    %6220 = vmatpush.bf16.msra.mxu0 %v5596
    %6221 = vmatpush.bf16.msra.mxu0 %v5592
    %6222 = vmatpush.bf16.msra.mxu0 %v5588
    %6223 = vmatpush.bf16.msra.mxu0 %v5584
    %6224 = vmatpush.bf16.msra.mxu0 %v5580
    %6225 = vmatpush.bf16.msra.mxu0 %v5576
    %6226 = vmatmul.bf16.gmra.mxu0 %v4408
    %v6227 = vpop.f32.mrf.mxu0
    %v6228 = vadd.f32 %v6215, %v6227
    %v6229 = vpop.f32.mrf.mxu0
    %6230 = vdwg.mxu0
    %6231 = vmatpush.bf16.msra.mxu0 %v5636
    %6232 = vmatpush.bf16.msra.mxu0 %v5632
    %6233 = vmatpush.bf16.msra.mxu0 %v5628
    %6234 = vmatpush.bf16.msra.mxu0 %v5624
    %6235 = vmatpush.bf16.msra.mxu0 %v5620
    %6236 = vmatpush.bf16.msra.mxu0 %v5616
    %6237 = vmatpush.bf16.msra.mxu0 %v5612
    %6238 = vmatpush.bf16.msra.mxu0 %v5608
    %6239 = vmatmul.bf16.gmra.mxu0 %v4409
    %v6240 = vpop.f32.mrf.mxu0
    %v6241 = vadd.f32 %v6228, %v6240
    %v6242 = vpop.f32.mrf.mxu0
    %6243 = vdwg.mxu0
    %6244 = vmatpush.bf16.msra.mxu0 %v5668
    %6245 = vmatpush.bf16.msra.mxu0 %v5664
    %6246 = vmatpush.bf16.msra.mxu0 %v5660
    %6247 = vmatpush.bf16.msra.mxu0 %v5656
    %6248 = vmatpush.bf16.msra.mxu0 %v5652
    %6249 = vmatpush.bf16.msra.mxu0 %v5648
    %6250 = vmatpush.bf16.msra.mxu0 %v5644
    %6251 = vmatpush.bf16.msra.mxu0 %v5640
    %6252 = vmatmul.bf16.gmra.mxu0 %v4410
    %v6253 = vpop.f32.mrf.mxu0
    %v6254 = vadd.f32 %v6241, %v6253
    %v6255 = vpop.f32.mrf.mxu0
    %6256 = vdwg.mxu0
    %6257 = vmatpush.bf16.msra.mxu0 %v5700
    %6258 = vmatpush.bf16.msra.mxu0 %v5696
    %6259 = vmatpush.bf16.msra.mxu0 %v5692
    %6260 = vmatpush.bf16.msra.mxu0 %v5688
    %6261 = vmatpush.bf16.msra.mxu0 %v5684
    %6262 = vmatpush.bf16.msra.mxu0 %v5680
    %6263 = vmatpush.bf16.msra.mxu0 %v5676
    %6264 = vmatpush.bf16.msra.mxu0 %v5672
    %6265 = vmatmul.bf16.gmra.mxu0 %v4411
    %v6266 = vpop.f32.mrf.mxu0
    %v6267 = vadd.f32 %v6254, %v6266
    %v6268 = vpop.f32.mrf.mxu0
    %6269 = vdwg.mxu0
    %6270 = vmatpush.bf16.msra.mxu0 %v5477
    %6271 = vmatpush.bf16.msra.mxu0 %v5473
    %6272 = vmatpush.bf16.msra.mxu0 %v5469
    %6273 = vmatpush.bf16.msra.mxu0 %v5465
    %6274 = vmatpush.bf16.msra.mxu0 %v5461
    %6275 = vmatpush.bf16.msra.mxu0 %v5457
    %6276 = vmatpush.bf16.msra.mxu0 %v5453
    %6277 = vmatpush.bf16.msra.mxu0 %v5449
    %6278 = vmatmul.bf16.gmra.mxu0 %v4404
    %v6279 = vpop.f32.mrf.mxu0
    %v6280 = vadd.f32 %v4673, %v6279
    %v6281 = vpop.f32.mrf.mxu0
    %6282 = vdwg.mxu0
    %6283 = vmatpush.bf16.msra.mxu0 %v5509
    %6284 = vmatpush.bf16.msra.mxu0 %v5505
    %6285 = vmatpush.bf16.msra.mxu0 %v5501
    %6286 = vmatpush.bf16.msra.mxu0 %v5497
    %6287 = vmatpush.bf16.msra.mxu0 %v5493
    %6288 = vmatpush.bf16.msra.mxu0 %v5489
    %6289 = vmatpush.bf16.msra.mxu0 %v5485
    %6290 = vmatpush.bf16.msra.mxu0 %v5481
    %6291 = vmatmul.bf16.gmra.mxu0 %v4405
    %v6292 = vpop.f32.mrf.mxu0
    %v6293 = vadd.f32 %v6280, %v6292
    %v6294 = vpop.f32.mrf.mxu0
    %6295 = vdwg.mxu0
    %6296 = vmatpush.bf16.msra.mxu0 %v5541
    %6297 = vmatpush.bf16.msra.mxu0 %v5537
    %6298 = vmatpush.bf16.msra.mxu0 %v5533
    %6299 = vmatpush.bf16.msra.mxu0 %v5529
    %6300 = vmatpush.bf16.msra.mxu0 %v5525
    %6301 = vmatpush.bf16.msra.mxu0 %v5521
    %6302 = vmatpush.bf16.msra.mxu0 %v5517
    %6303 = vmatpush.bf16.msra.mxu0 %v5513
    %6304 = vmatmul.bf16.gmra.mxu0 %v4406
    %v6305 = vpop.f32.mrf.mxu0
    %v6306 = vadd.f32 %v6293, %v6305
    %v6307 = vpop.f32.mrf.mxu0
    %6308 = vdwg.mxu0
    %6309 = vmatpush.bf16.msra.mxu0 %v5573
    %6310 = vmatpush.bf16.msra.mxu0 %v5569
    %6311 = vmatpush.bf16.msra.mxu0 %v5565
    %6312 = vmatpush.bf16.msra.mxu0 %v5561
    %6313 = vmatpush.bf16.msra.mxu0 %v5557
    %6314 = vmatpush.bf16.msra.mxu0 %v5553
    %6315 = vmatpush.bf16.msra.mxu0 %v5549
    %6316 = vmatpush.bf16.msra.mxu0 %v5545
    %6317 = vmatmul.bf16.gmra.mxu0 %v4407
    %v6318 = vpop.f32.mrf.mxu0
    %v6319 = vadd.f32 %v6306, %v6318
    %v6320 = vpop.f32.mrf.mxu0
    %6321 = vdwg.mxu0
    %6322 = vmatpush.bf16.msra.mxu0 %v5605
    %6323 = vmatpush.bf16.msra.mxu0 %v5601
    %6324 = vmatpush.bf16.msra.mxu0 %v5597
    %6325 = vmatpush.bf16.msra.mxu0 %v5593
    %6326 = vmatpush.bf16.msra.mxu0 %v5589
    %6327 = vmatpush.bf16.msra.mxu0 %v5585
    %6328 = vmatpush.bf16.msra.mxu0 %v5581
    %6329 = vmatpush.bf16.msra.mxu0 %v5577
    %6330 = vmatmul.bf16.gmra.mxu0 %v4408
    %v6331 = vpop.f32.mrf.mxu0
    %v6332 = vadd.f32 %v6319, %v6331
    %v6333 = vpop.f32.mrf.mxu0
    %6334 = vdwg.mxu0
    %6335 = vmatpush.bf16.msra.mxu0 %v5637
    %6336 = vmatpush.bf16.msra.mxu0 %v5633
    %6337 = vmatpush.bf16.msra.mxu0 %v5629
    %6338 = vmatpush.bf16.msra.mxu0 %v5625
    %6339 = vmatpush.bf16.msra.mxu0 %v5621
    %6340 = vmatpush.bf16.msra.mxu0 %v5617
    %6341 = vmatpush.bf16.msra.mxu0 %v5613
    %6342 = vmatpush.bf16.msra.mxu0 %v5609
    %6343 = vmatmul.bf16.gmra.mxu0 %v4409
    %v6344 = vpop.f32.mrf.mxu0
    %v6345 = vadd.f32 %v6332, %v6344
    %v6346 = vpop.f32.mrf.mxu0
    %6347 = vdwg.mxu0
    %6348 = vmatpush.bf16.msra.mxu0 %v5669
    %6349 = vmatpush.bf16.msra.mxu0 %v5665
    %6350 = vmatpush.bf16.msra.mxu0 %v5661
    %6351 = vmatpush.bf16.msra.mxu0 %v5657
    %6352 = vmatpush.bf16.msra.mxu0 %v5653
    %6353 = vmatpush.bf16.msra.mxu0 %v5649
    %6354 = vmatpush.bf16.msra.mxu0 %v5645
    %6355 = vmatpush.bf16.msra.mxu0 %v5641
    %6356 = vmatmul.bf16.gmra.mxu0 %v4410
    %v6357 = vpop.f32.mrf.mxu0
    %v6358 = vadd.f32 %v6345, %v6357
    %v6359 = vpop.f32.mrf.mxu0
    %6360 = vdwg.mxu0
    %6361 = vmatpush.bf16.msra.mxu0 %v5701
    %6362 = vmatpush.bf16.msra.mxu0 %v5697
    %6363 = vmatpush.bf16.msra.mxu0 %v5693
    %6364 = vmatpush.bf16.msra.mxu0 %v5689
    %6365 = vmatpush.bf16.msra.mxu0 %v5685
    %6366 = vmatpush.bf16.msra.mxu0 %v5681
    %6367 = vmatpush.bf16.msra.mxu0 %v5677
    %6368 = vmatpush.bf16.msra.mxu0 %v5673
    %6369 = vmatmul.bf16.gmra.mxu0 %v4411
    %v6370 = vpop.f32.mrf.mxu0
    %v6371 = vadd.f32 %v6358, %v6370
    %v6372 = vpop.f32.mrf.mxu0
    %6373 = vdwg.mxu0
    %v6374 = vmax.f32 %v6059, 0.0
    %v6375 = vmax.f32 %v6163, 0.0
    %v6376 = vmax.f32 %v6267, 0.0
    %v6377 = vmax.f32 %v6371, 0.0
    %v6378 = vpack.c.bf16 %v6374, %v6374
    %v6379 = vpack.c.bf16 %v6375, %v6375
    %v6380 = vpack.c.bf16 %v6376, %v6376
    %v6381 = vpack.c.bf16 %v6377, %v6377
    %v6382 = vld [vmem:[#allocation14] sm:$0xff]
    %v6383 = vld [vmem:[#allocation14 + $0x8] sm:$0xff]
    %v6384 = vld [vmem:[#allocation14 + $0x10] sm:$0xff]
    %v6385 = vld [vmem:[#allocation14 + $0x18] sm:$0xff]
    %v6386 = vld [vmem:[#allocation14 + $0x20] sm:$0xff]
    %v6387 = vld [vmem:[#allocation14 + $0x28] sm:$0xff]
    %v6388 = vld [vmem:[#allocation14 + $0x30] sm:$0xff]
    %v6389 = vld [vmem:[#allocation14 + $0x38] sm:$0xff]
    %v6390 = vld [vmem:[#allocation14 + $0x40] sm:$0xff]
    %v6391 = vld [vmem:[#allocation14 + $0x48] sm:$0xff]
    %v6392 = vld [vmem:[#allocation14 + $0x50] sm:$0xff]
    %v6393 = vld [vmem:[#allocation14 + $0x58] sm:$0xff]
    %v6394 = vld [vmem:[#allocation14 + $0x60] sm:$0xff]
    %v6395 = vld [vmem:[#allocation14 + $0x68] sm:$0xff]
    %v6396 = vld [vmem:[#allocation14 + $0x70] sm:$0xff]
    %v6397 = vld [vmem:[#allocation14 + $0x78] sm:$0xff]
    %v6398 = vld [vmem:[#allocation14 + $0x80] sm:$0xff]
    %v6399 = vld [vmem:[#allocation14 + $0x88] sm:$0xff]
    %v6400 = vld [vmem:[#allocation14 + $0x90] sm:$0xff]
    %v6401 = vld [vmem:[#allocation14 + $0x98] sm:$0xff]
    %v6402 = vld [vmem:[#allocation14 + $0xa0] sm:$0xff]
    %v6403 = vld [vmem:[#allocation14 + $0xa8] sm:$0xff]
    %v6404 = vld [vmem:[#allocation14 + $0xb0] sm:$0xff]
    %v6405 = vld [vmem:[#allocation14 + $0xb8] sm:$0xff]
    %v6406 = vld [vmem:[#allocation14 + $0xc0] sm:$0xff]
    %v6407 = vld [vmem:[#allocation14 + $0xc8] sm:$0xff]
    %v6408 = vld [vmem:[#allocation14 + $0xd0] sm:$0xff]
    %v6409 = vld [vmem:[#allocation14 + $0xd8] sm:$0xff]
    %v6410 = vld [vmem:[#allocation14 + $0xe0] sm:$0xff]
    %v6411 = vld [vmem:[#allocation14 + $0xe8] sm:$0xff]
    %v6412 = vld [vmem:[#allocation14 + $0xf0] sm:$0xff]
    %v6413 = vld [vmem:[#allocation14 + $0xf8] sm:$0xff]
    %v6414 = vld [vmem:[#allocation14 + $0x100] sm:$0xff]
    %v6415 = vld [vmem:[#allocation14 + $0x108] sm:$0xff]
    %v6416 = vld [vmem:[#allocation14 + $0x110] sm:$0xff]
    %v6417 = vld [vmem:[#allocation14 + $0x118] sm:$0xff]
    %v6418 = vld [vmem:[#allocation14 + $0x120] sm:$0xff]
    %v6419 = vld [vmem:[#allocation14 + $0x128] sm:$0xff]
    %v6420 = vld [vmem:[#allocation14 + $0x130] sm:$0xff]
    %v6421 = vld [vmem:[#allocation14 + $0x138] sm:$0xff]
    %v6422 = vld [vmem:[#allocation14 + $0x140] sm:$0xff]
    %v6423 = vld [vmem:[#allocation14 + $0x148] sm:$0xff]
    %v6424 = vld [vmem:[#allocation14 + $0x150] sm:$0xff]
    %v6425 = vld [vmem:[#allocation14 + $0x158] sm:$0xff]
    %v6426 = vld [vmem:[#allocation14 + $0x160] sm:$0xff]
    %v6427 = vld [vmem:[#allocation14 + $0x168] sm:$0xff]
    %v6428 = vld [vmem:[#allocation14 + $0x170] sm:$0xff]
    %v6429 = vld [vmem:[#allocation14 + $0x178] sm:$0xff]
    %v6430 = vld [vmem:[#allocation14 + $0x180] sm:$0xff]
    %v6431 = vld [vmem:[#allocation14 + $0x188] sm:$0xff]
    %v6432 = vld [vmem:[#allocation14 + $0x190] sm:$0xff]
    %v6433 = vld [vmem:[#allocation14 + $0x198] sm:$0xff]
    %v6434 = vld [vmem:[#allocation14 + $0x1a0] sm:$0xff]
    %v6435 = vld [vmem:[#allocation14 + $0x1a8] sm:$0xff]
    %v6436 = vld [vmem:[#allocation14 + $0x1b0] sm:$0xff]
    %v6437 = vld [vmem:[#allocation14 + $0x1b8] sm:$0xff]
    %v6438 = vld [vmem:[#allocation14 + $0x1c0] sm:$0xff]
    %v6439 = vld [vmem:[#allocation14 + $0x1c8] sm:$0xff]
    %v6440 = vld [vmem:[#allocation14 + $0x1d0] sm:$0xff]
    %v6441 = vld [vmem:[#allocation14 + $0x1d8] sm:$0xff]
    %v6442 = vld [vmem:[#allocation14 + $0x1e0] sm:$0xff]
    %v6443 = vld [vmem:[#allocation14 + $0x1e8] sm:$0xff]
    %v6444 = vld [vmem:[#allocation14 + $0x1f0] sm:$0xff]
    %v6445 = vld [vmem:[#allocation14 + $0x1f8] sm:$0xff]
    %v6446 = vld [vmem:[#allocation16] sm:$0x3]
    %v6448 = vperm.slane %v6446, 0
    %v6449 = vperm.slane %v6446, 1
    %v6516 = vunpack.c.l.b16 %v6382
    %v6517 = vunpack.c.h.b16 %v6382
    %v6518 = vunpack.c.l.b16 %v6383
    %v6519 = vunpack.c.h.b16 %v6383
    %v6520 = vunpack.c.l.b16 %v6384
    %v6521 = vunpack.c.h.b16 %v6384
    %v6522 = vunpack.c.l.b16 %v6385
    %v6523 = vunpack.c.h.b16 %v6385
    %v6524 = vunpack.c.l.b16 %v6386
    %v6525 = vunpack.c.h.b16 %v6386
    %v6526 = vunpack.c.l.b16 %v6387
    %v6527 = vunpack.c.h.b16 %v6387
    %v6528 = vunpack.c.l.b16 %v6388
    %v6529 = vunpack.c.h.b16 %v6388
    %v6530 = vunpack.c.l.b16 %v6389
    %v6531 = vunpack.c.h.b16 %v6389
    %v6532 = vunpack.c.l.b16 %v6390
    %v6533 = vunpack.c.h.b16 %v6390
    %v6534 = vunpack.c.l.b16 %v6391
    %v6535 = vunpack.c.h.b16 %v6391
    %v6536 = vunpack.c.l.b16 %v6392
    %v6537 = vunpack.c.h.b16 %v6392
    %v6538 = vunpack.c.l.b16 %v6393
    %v6539 = vunpack.c.h.b16 %v6393
    %v6540 = vunpack.c.l.b16 %v6394
    %v6541 = vunpack.c.h.b16 %v6394
    %v6542 = vunpack.c.l.b16 %v6395
    %v6543 = vunpack.c.h.b16 %v6395
    %v6544 = vunpack.c.l.b16 %v6396
    %v6545 = vunpack.c.h.b16 %v6396
    %v6546 = vunpack.c.l.b16 %v6397
    %v6547 = vunpack.c.h.b16 %v6397
    %v6548 = vunpack.c.l.b16 %v6398
    %v6549 = vunpack.c.h.b16 %v6398
    %v6550 = vunpack.c.l.b16 %v6399
    %v6551 = vunpack.c.h.b16 %v6399
    %v6552 = vunpack.c.l.b16 %v6400
    %v6553 = vunpack.c.h.b16 %v6400
    %v6554 = vunpack.c.l.b16 %v6401
    %v6555 = vunpack.c.h.b16 %v6401
    %v6556 = vunpack.c.l.b16 %v6402
    %v6557 = vunpack.c.h.b16 %v6402
    %v6558 = vunpack.c.l.b16 %v6403
    %v6559 = vunpack.c.h.b16 %v6403
    %v6560 = vunpack.c.l.b16 %v6404
    %v6561 = vunpack.c.h.b16 %v6404
    %v6562 = vunpack.c.l.b16 %v6405
    %v6563 = vunpack.c.h.b16 %v6405
    %v6564 = vunpack.c.l.b16 %v6406
    %v6565 = vunpack.c.h.b16 %v6406
    %v6566 = vunpack.c.l.b16 %v6407
    %v6567 = vunpack.c.h.b16 %v6407
    %v6568 = vunpack.c.l.b16 %v6408
    %v6569 = vunpack.c.h.b16 %v6408
    %v6570 = vunpack.c.l.b16 %v6409
    %v6571 = vunpack.c.h.b16 %v6409
    %v6572 = vunpack.c.l.b16 %v6410
    %v6573 = vunpack.c.h.b16 %v6410
    %v6574 = vunpack.c.l.b16 %v6411
    %v6575 = vunpack.c.h.b16 %v6411
    %v6576 = vunpack.c.l.b16 %v6412
    %v6577 = vunpack.c.h.b16 %v6412
    %v6578 = vunpack.c.l.b16 %v6413
    %v6579 = vunpack.c.h.b16 %v6413
    %v6580 = vunpack.c.l.b16 %v6414
    %v6581 = vunpack.c.h.b16 %v6414
    %v6582 = vunpack.c.l.b16 %v6415
    %v6583 = vunpack.c.h.b16 %v6415
    %v6584 = vunpack.c.l.b16 %v6416
    %v6585 = vunpack.c.h.b16 %v6416
    %v6586 = vunpack.c.l.b16 %v6417
    %v6587 = vunpack.c.h.b16 %v6417
    %v6588 = vunpack.c.l.b16 %v6418
    %v6589 = vunpack.c.h.b16 %v6418
    %v6590 = vunpack.c.l.b16 %v6419
    %v6591 = vunpack.c.h.b16 %v6419
    %v6592 = vunpack.c.l.b16 %v6420
    %v6593 = vunpack.c.h.b16 %v6420
    %v6594 = vunpack.c.l.b16 %v6421
    %v6595 = vunpack.c.h.b16 %v6421
    %v6596 = vunpack.c.l.b16 %v6422
    %v6597 = vunpack.c.h.b16 %v6422
    %v6598 = vunpack.c.l.b16 %v6423
    %v6599 = vunpack.c.h.b16 %v6423
    %v6600 = vunpack.c.l.b16 %v6424
    %v6601 = vunpack.c.h.b16 %v6424
    %v6602 = vunpack.c.l.b16 %v6425
    %v6603 = vunpack.c.h.b16 %v6425
    %v6604 = vunpack.c.l.b16 %v6426
    %v6605 = vunpack.c.h.b16 %v6426
    %v6606 = vunpack.c.l.b16 %v6427
    %v6607 = vunpack.c.h.b16 %v6427
    %v6608 = vunpack.c.l.b16 %v6428
    %v6609 = vunpack.c.h.b16 %v6428
    %v6610 = vunpack.c.l.b16 %v6429
    %v6611 = vunpack.c.h.b16 %v6429
    %v6612 = vunpack.c.l.b16 %v6430
    %v6613 = vunpack.c.h.b16 %v6430
    %v6614 = vunpack.c.l.b16 %v6431
    %v6615 = vunpack.c.h.b16 %v6431
    %v6616 = vunpack.c.l.b16 %v6432
    %v6617 = vunpack.c.h.b16 %v6432
    %v6618 = vunpack.c.l.b16 %v6433
    %v6619 = vunpack.c.h.b16 %v6433
    %v6620 = vunpack.c.l.b16 %v6434
    %v6621 = vunpack.c.h.b16 %v6434
    %v6622 = vunpack.c.l.b16 %v6435
    %v6623 = vunpack.c.h.b16 %v6435
    %v6624 = vunpack.c.l.b16 %v6436
    %v6625 = vunpack.c.h.b16 %v6436
    %v6626 = vunpack.c.l.b16 %v6437
    %v6627 = vunpack.c.h.b16 %v6437
    %v6628 = vunpack.c.l.b16 %v6438
    %v6629 = vunpack.c.h.b16 %v6438
    %v6630 = vunpack.c.l.b16 %v6439
    %v6631 = vunpack.c.h.b16 %v6439
    %v6632 = vunpack.c.l.b16 %v6440
    %v6633 = vunpack.c.h.b16 %v6440
    %v6634 = vunpack.c.l.b16 %v6441
    %v6635 = vunpack.c.h.b16 %v6441
    %v6636 = vunpack.c.l.b16 %v6442
    %v6637 = vunpack.c.h.b16 %v6442
    %v6638 = vunpack.c.l.b16 %v6443
    %v6639 = vunpack.c.h.b16 %v6443
    %v6640 = vunpack.c.l.b16 %v6444
    %v6641 = vunpack.c.h.b16 %v6444
    %v6642 = vunpack.c.l.b16 %v6445
    %v6643 = vunpack.c.h.b16 %v6445
    %v6644 = vpack.c.b16 %v6518, %v6516
    %v6645 = vpack.c.b16 %v6519, %v6517
    %v6646 = vpack.c.b16 %v6522, %v6520
    %v6647 = vpack.c.b16 %v6523, %v6521
    %v6648 = vpack.c.b16 %v6526, %v6524
    %v6649 = vpack.c.b16 %v6527, %v6525
    %v6650 = vpack.c.b16 %v6530, %v6528
    %v6651 = vpack.c.b16 %v6531, %v6529
    %v6652 = vpack.c.b16 %v6534, %v6532
    %v6653 = vpack.c.b16 %v6535, %v6533
    %v6654 = vpack.c.b16 %v6538, %v6536
    %v6655 = vpack.c.b16 %v6539, %v6537
    %v6656 = vpack.c.b16 %v6542, %v6540
    %v6657 = vpack.c.b16 %v6543, %v6541
    %v6658 = vpack.c.b16 %v6546, %v6544
    %v6659 = vpack.c.b16 %v6547, %v6545
    %v6660 = vpack.c.b16 %v6550, %v6548
    %v6661 = vpack.c.b16 %v6551, %v6549
    %v6662 = vpack.c.b16 %v6554, %v6552
    %v6663 = vpack.c.b16 %v6555, %v6553
    %v6664 = vpack.c.b16 %v6558, %v6556
    %v6665 = vpack.c.b16 %v6559, %v6557
    %v6666 = vpack.c.b16 %v6562, %v6560
    %v6667 = vpack.c.b16 %v6563, %v6561
    %v6668 = vpack.c.b16 %v6566, %v6564
    %v6669 = vpack.c.b16 %v6567, %v6565
    %v6670 = vpack.c.b16 %v6570, %v6568
    %v6671 = vpack.c.b16 %v6571, %v6569
    %v6672 = vpack.c.b16 %v6574, %v6572
    %v6673 = vpack.c.b16 %v6575, %v6573
    %v6674 = vpack.c.b16 %v6578, %v6576
    %v6675 = vpack.c.b16 %v6579, %v6577
    %v6676 = vpack.c.b16 %v6582, %v6580
    %v6677 = vpack.c.b16 %v6583, %v6581
    %v6678 = vpack.c.b16 %v6586, %v6584
    %v6679 = vpack.c.b16 %v6587, %v6585
    %v6680 = vpack.c.b16 %v6590, %v6588
    %v6681 = vpack.c.b16 %v6591, %v6589
    %v6682 = vpack.c.b16 %v6594, %v6592
    %v6683 = vpack.c.b16 %v6595, %v6593
    %v6684 = vpack.c.b16 %v6598, %v6596
    %v6685 = vpack.c.b16 %v6599, %v6597
    %v6686 = vpack.c.b16 %v6602, %v6600
    %v6687 = vpack.c.b16 %v6603, %v6601
    %v6688 = vpack.c.b16 %v6606, %v6604
    %v6689 = vpack.c.b16 %v6607, %v6605
    %v6690 = vpack.c.b16 %v6610, %v6608
    %v6691 = vpack.c.b16 %v6611, %v6609
    %v6692 = vpack.c.b16 %v6614, %v6612
    %v6693 = vpack.c.b16 %v6615, %v6613
    %v6694 = vpack.c.b16 %v6618, %v6616
    %v6695 = vpack.c.b16 %v6619, %v6617
    %v6696 = vpack.c.b16 %v6622, %v6620
    %v6697 = vpack.c.b16 %v6623, %v6621
    %v6698 = vpack.c.b16 %v6626, %v6624
    %v6699 = vpack.c.b16 %v6627, %v6625
    %v6700 = vpack.c.b16 %v6630, %v6628
    %v6701 = vpack.c.b16 %v6631, %v6629
    %v6702 = vpack.c.b16 %v6634, %v6632
    %v6703 = vpack.c.b16 %v6635, %v6633
    %v6704 = vpack.c.b16 %v6638, %v6636
    %v6705 = vpack.c.b16 %v6639, %v6637
    %v6706 = vpack.c.b16 %v6642, %v6640
    %v6707 = vpack.c.b16 %v6643, %v6641
    %6772 = vmatpush.bf16.msra.mxu0 %v6658
    %6773 = vmatpush.bf16.msra.mxu0 %v6656
    %6774 = vmatpush.bf16.msra.mxu0 %v6654
    %6775 = vmatpush.bf16.msra.mxu0 %v6652
    %6776 = vmatpush.bf16.msra.mxu0 %v6650
    %6777 = vmatpush.bf16.msra.mxu0 %v6648
    %6778 = vmatpush.bf16.msra.mxu0 %v6646
    %6779 = vmatpush.bf16.msra.mxu0 %v6644
    %6780 = vmatmul.bf16.gmra.mxu0 %v6378
    %v6781 = vpop.f32.mrf.mxu0
    %v6782 = vadd.f32 %v6448, %v6781
    %v6783 = vpop.f32.mrf.mxu0
    %6784 = vdwg.mxu0
    %6785 = vmatpush.bf16.msra.mxu0 %v6674
    %6786 = vmatpush.bf16.msra.mxu0 %v6672
    %6787 = vmatpush.bf16.msra.mxu0 %v6670
    %6788 = vmatpush.bf16.msra.mxu0 %v6668
    %6789 = vmatpush.bf16.msra.mxu0 %v6666
    %6790 = vmatpush.bf16.msra.mxu0 %v6664
    %6791 = vmatpush.bf16.msra.mxu0 %v6662
    %6792 = vmatpush.bf16.msra.mxu0 %v6660
    %6793 = vmatmul.bf16.gmra.mxu0 %v6379
    %v6794 = vpop.f32.mrf.mxu0
    %v6795 = vadd.f32 %v6782, %v6794
    %v6796 = vpop.f32.mrf.mxu0
    %6797 = vdwg.mxu0
    %6798 = vmatpush.bf16.msra.mxu0 %v6690
    %6799 = vmatpush.bf16.msra.mxu0 %v6688
    %6800 = vmatpush.bf16.msra.mxu0 %v6686
    %6801 = vmatpush.bf16.msra.mxu0 %v6684
    %6802 = vmatpush.bf16.msra.mxu0 %v6682
    %6803 = vmatpush.bf16.msra.mxu0 %v6680
    %6804 = vmatpush.bf16.msra.mxu0 %v6678
    %6805 = vmatpush.bf16.msra.mxu0 %v6676
    %6806 = vmatmul.bf16.gmra.mxu0 %v6380
    %v6807 = vpop.f32.mrf.mxu0
    %v6808 = vadd.f32 %v6795, %v6807
    %v6809 = vpop.f32.mrf.mxu0
    %6810 = vdwg.mxu0
    %6811 = vmatpush.bf16.msra.mxu0 %v6706
    %6812 = vmatpush.bf16.msra.mxu0 %v6704
    %6813 = vmatpush.bf16.msra.mxu0 %v6702
    %6814 = vmatpush.bf16.msra.mxu0 %v6700
    %6815 = vmatpush.bf16.msra.mxu0 %v6698
    %6816 = vmatpush.bf16.msra.mxu0 %v6696
    %6817 = vmatpush.bf16.msra.mxu0 %v6694
    %6818 = vmatpush.bf16.msra.mxu0 %v6692
    %6819 = vmatmul.bf16.gmra.mxu0 %v6381
    %v6820 = vpop.f32.mrf.mxu0
    %v6821 = vadd.f32 %v6808, %v6820
    %v6822 = vpop.f32.mrf.mxu0
    %6823 = vdwg.mxu0
    %6824 = vmatpush.bf16.msra.mxu0 %v6659
    %6825 = vmatpush.bf16.msra.mxu0 %v6657
    %6826 = vmatpush.bf16.msra.mxu0 %v6655
    %6827 = vmatpush.bf16.msra.mxu0 %v6653
    %6828 = vmatpush.bf16.msra.mxu0 %v6651
    %6829 = vmatpush.bf16.msra.mxu0 %v6649
    %6830 = vmatpush.bf16.msra.mxu0 %v6647
    %6831 = vmatpush.bf16.msra.mxu0 %v6645
    %6832 = vmatmul.bf16.gmra.mxu0 %v6378
    %v6833 = vpop.f32.mrf.mxu0
    %v6834 = vadd.f32 %v6449, %v6833
    %v6835 = vpop.f32.mrf.mxu0
    %6836 = vdwg.mxu0
    %6837 = vmatpush.bf16.msra.mxu0 %v6675
    %6838 = vmatpush.bf16.msra.mxu0 %v6673
    %6839 = vmatpush.bf16.msra.mxu0 %v6671
    %6840 = vmatpush.bf16.msra.mxu0 %v6669
    %6841 = vmatpush.bf16.msra.mxu0 %v6667
    %6842 = vmatpush.bf16.msra.mxu0 %v6665
    %6843 = vmatpush.bf16.msra.mxu0 %v6663
    %6844 = vmatpush.bf16.msra.mxu0 %v6661
    %6845 = vmatmul.bf16.gmra.mxu0 %v6379
    %v6846 = vpop.f32.mrf.mxu0
    %v6847 = vadd.f32 %v6834, %v6846
    %v6848 = vpop.f32.mrf.mxu0
    %6849 = vdwg.mxu0
    %6850 = vmatpush.bf16.msra.mxu0 %v6691
    %6851 = vmatpush.bf16.msra.mxu0 %v6689
    %6852 = vmatpush.bf16.msra.mxu0 %v6687
    %6853 = vmatpush.bf16.msra.mxu0 %v6685
    %6854 = vmatpush.bf16.msra.mxu0 %v6683
    %6855 = vmatpush.bf16.msra.mxu0 %v6681
    %6856 = vmatpush.bf16.msra.mxu0 %v6679
    %6857 = vmatpush.bf16.msra.mxu0 %v6677
    %6858 = vmatmul.bf16.gmra.mxu0 %v6380
    %v6859 = vpop.f32.mrf.mxu0
    %v6860 = vadd.f32 %v6847, %v6859
    %v6861 = vpop.f32.mrf.mxu0
    %6862 = vdwg.mxu0
    %6863 = vmatpush.bf16.msra.mxu0 %v6707
    %6864 = vmatpush.bf16.msra.mxu0 %v6705
    %6865 = vmatpush.bf16.msra.mxu0 %v6703
    %6866 = vmatpush.bf16.msra.mxu0 %v6701
    %6867 = vmatpush.bf16.msra.mxu0 %v6699
    %6868 = vmatpush.bf16.msra.mxu0 %v6697
    %6869 = vmatpush.bf16.msra.mxu0 %v6695
    %6870 = vmatpush.bf16.msra.mxu0 %v6693
    %6871 = vmatmul.bf16.gmra.mxu0 %v6381
    %v6872 = vpop.f32.mrf.mxu0
    %v6873 = vadd.f32 %v6860, %v6872
    %v6874 = vpop.f32.mrf.mxu0
    %6875 = vdwg.mxu0
    %v6876 = vmax.f32 %v6821, 0.0
    %v6877 = vmax.f32 %v6873, 0.0
    %v6878 = vpack.c.bf16 %v6876, %v6876
    %v6879 = vpack.c.bf16 %v6877, %v6877
    %v6880 = vld [vmem:[#allocation17] sm:$0xf]
    %v6881 = vld [vmem:[#allocation17 + $0x4] sm:$0xf]
    %v6882 = vld [vmem:[#allocation17 + $0x8] sm:$0xf]
    %v6883 = vld [vmem:[#allocation17 + $0xc] sm:$0xf]
    %v6884 = vld [vmem:[#allocation17 + $0x10] sm:$0xf]
    %v6885 = vld [vmem:[#allocation17 + $0x14] sm:$0xf]
    %v6886 = vld [vmem:[#allocation17 + $0x18] sm:$0xf]
    %v6887 = vld [vmem:[#allocation17 + $0x1c] sm:$0xf]
    %v6888 = vld [vmem:[#allocation17 + $0x20] sm:$0xf]
    %v6889 = vld [vmem:[#allocation17 + $0x24] sm:$0xf]
    %v6890 = vld [vmem:[#allocation17 + $0x28] sm:$0xf]
    %v6891 = vld [vmem:[#allocation17 + $0x2c] sm:$0xf]
    %v6892 = vld [vmem:[#allocation17 + $0x30] sm:$0xf]
    %v6893 = vld [vmem:[#allocation17 + $0x34] sm:$0xf]
    %v6894 = vld [vmem:[#allocation17 + $0x38] sm:$0xf]
    %v6895 = vld [vmem:[#allocation17 + $0x3c] sm:$0xf]
    %v6896 = vld [vmem:[#allocation17 + $0x40] sm:$0xf]
    %v6897 = vld [vmem:[#allocation17 + $0x44] sm:$0xf]
    %v6898 = vld [vmem:[#allocation17 + $0x48] sm:$0xf]
    %v6899 = vld [vmem:[#allocation17 + $0x4c] sm:$0xf]
    %v6900 = vld [vmem:[#allocation17 + $0x50] sm:$0xf]
    %v6901 = vld [vmem:[#allocation17 + $0x54] sm:$0xf]
    %v6902 = vld [vmem:[#allocation17 + $0x58] sm:$0xf]
    %v6903 = vld [vmem:[#allocation17 + $0x5c] sm:$0xf]
    %v6904 = vld [vmem:[#allocation17 + $0x60] sm:$0xf]
    %v6905 = vld [vmem:[#allocation17 + $0x64] sm:$0xf]
    %v6906 = vld [vmem:[#allocation17 + $0x68] sm:$0xf]
    %v6907 = vld [vmem:[#allocation17 + $0x6c] sm:$0xf]
    %v6908 = vld [vmem:[#allocation17 + $0x70] sm:$0xf]
    %v6909 = vld [vmem:[#allocation17 + $0x74] sm:$0xf]
    %v6910 = vld [vmem:[#allocation17 + $0x78] sm:$0xf]
    %v6911 = vld [vmem:[#allocation17 + $0x7c] sm:$0xf]
    %v6912 = vld [vmem:[#allocation19] sm:$0x1]
    %v6914 = vperm.slane %v6912, 0
    %v6948 = vunpack.c.l.b16 %v6880
    %v6949 = vunpack.c.l.b16 %v6881
    %v6950 = vunpack.c.l.b16 %v6882
    %v6951 = vunpack.c.l.b16 %v6883
    %v6952 = vunpack.c.l.b16 %v6884
    %v6953 = vunpack.c.l.b16 %v6885
    %v6954 = vunpack.c.l.b16 %v6886
    %v6955 = vunpack.c.l.b16 %v6887
    %v6956 = vunpack.c.l.b16 %v6888
    %v6957 = vunpack.c.l.b16 %v6889
    %v6958 = vunpack.c.l.b16 %v6890
    %v6959 = vunpack.c.l.b16 %v6891
    %v6960 = vunpack.c.l.b16 %v6892
    %v6961 = vunpack.c.l.b16 %v6893
    %v6962 = vunpack.c.l.b16 %v6894
    %v6963 = vunpack.c.l.b16 %v6895
    %v6964 = vunpack.c.l.b16 %v6896
    %v6965 = vunpack.c.l.b16 %v6897
    %v6966 = vunpack.c.l.b16 %v6898
    %v6967 = vunpack.c.l.b16 %v6899
    %v6968 = vunpack.c.l.b16 %v6900
    %v6969 = vunpack.c.l.b16 %v6901
    %v6970 = vunpack.c.l.b16 %v6902
    %v6971 = vunpack.c.l.b16 %v6903
    %v6972 = vunpack.c.l.b16 %v6904
    %v6973 = vunpack.c.l.b16 %v6905
    %v6974 = vunpack.c.l.b16 %v6906
    %v6975 = vunpack.c.l.b16 %v6907
    %v6976 = vunpack.c.l.b16 %v6908
    %v6977 = vunpack.c.l.b16 %v6909
    %v6978 = vunpack.c.l.b16 %v6910
    %v6979 = vunpack.c.l.b16 %v6911
    %v6980 = vpack.c.b16 %v6949, %v6948
    %v6981 = vpack.c.b16 %v6951, %v6950
    %v6982 = vpack.c.b16 %v6953, %v6952
    %v6983 = vpack.c.b16 %v6955, %v6954
    %v6984 = vpack.c.b16 %v6957, %v6956
    %v6985 = vpack.c.b16 %v6959, %v6958
    %v6986 = vpack.c.b16 %v6961, %v6960
    %v6987 = vpack.c.b16 %v6963, %v6962
    %v6988 = vpack.c.b16 %v6965, %v6964
    %v6989 = vpack.c.b16 %v6967, %v6966
    %v6990 = vpack.c.b16 %v6969, %v6968
    %v6991 = vpack.c.b16 %v6971, %v6970
    %v6992 = vpack.c.b16 %v6973, %v6972
    %v6993 = vpack.c.b16 %v6975, %v6974
    %v6994 = vpack.c.b16 %v6977, %v6976
    %v6995 = vpack.c.b16 %v6979, %v6978
    %7012 = vmatpush.bf16.msra.mxu0 %v6987
    %7013 = vmatpush.bf16.msra.mxu0 %v6986
    %7014 = vmatpush.bf16.msra.mxu0 %v6985
    %7015 = vmatpush.bf16.msra.mxu0 %v6984
    %7016 = vmatpush.bf16.msra.mxu0 %v6983
    %7017 = vmatpush.bf16.msra.mxu0 %v6982
    %7018 = vmatpush.bf16.msra.mxu0 %v6981
    %7019 = vmatpush.bf16.msra.mxu0 %v6980
    %7020 = vmatmul.bf16.gmra.mxu0 %v6878
    %v7021 = vpop.f32.mrf.mxu0
    %v7022 = vadd.f32 %v6914, %v7021
    %v7023 = vpop.f32.mrf.mxu0
    %7024 = vdwg.mxu0
    %7025 = vmatpush.bf16.msra.mxu0 %v6995
    %7026 = vmatpush.bf16.msra.mxu0 %v6994
    %7027 = vmatpush.bf16.msra.mxu0 %v6993
    %7028 = vmatpush.bf16.msra.mxu0 %v6992
    %7029 = vmatpush.bf16.msra.mxu0 %v6991
    %7030 = vmatpush.bf16.msra.mxu0 %v6990
    %7031 = vmatpush.bf16.msra.mxu0 %v6989
    %7032 = vmatpush.bf16.msra.mxu0 %v6988
    %7033 = vmatmul.bf16.gmra.mxu0 %v6879
    %v7034 = vpop.f32.mrf.mxu0
    %v7035 = vadd.f32 %v7022, %v7034
    %v7036 = vpop.f32.mrf.mxu0
    %7037 = vdwg.mxu0
    %v7038 = vmax.f32 %v7035, 0.0
    %v7039 = vpack.c.bf16 %v7038, %v7038
    %v7040 = vld [vmem:[#allocation20] sm:$0xff]
    %v7041 = vld [vmem:[#allocation20 + $0x8] sm:$0xff]
    %v7042 = vld [vmem:[#allocation20 + $0x10] sm:$0xff]
    %v7043 = vld [vmem:[#allocation20 + $0x18] sm:$0xff]
    %v7044 = vld [vmem:[#allocation20 + $0x20] sm:$0xff]
    %v7045 = vld [vmem:[#allocation20 + $0x28] sm:$0xff]
    %v7046 = vld [vmem:[#allocation20 + $0x30] sm:$0xff]
    %v7047 = vld [vmem:[#allocation20 + $0x38] sm:$0xff]
    %v7048 = vld [vmem:[#allocation20 + $0x40] sm:$0xff]
    %v7049 = vld [vmem:[#allocation20 + $0x48] sm:$0xff]
    %v7050 = vld [vmem:[#allocation20 + $0x50] sm:$0xff]
    %v7051 = vld [vmem:[#allocation20 + $0x58] sm:$0xff]
    %v7052 = vld [vmem:[#allocation20 + $0x60] sm:$0xff]
    %v7053 = vld [vmem:[#allocation20 + $0x68] sm:$0xff]
    %v7054 = vld [vmem:[#allocation20 + $0x70] sm:$0xff]
    %v7055 = vld [vmem:[#allocation20 + $0x78] sm:$0xff]
    %v7056 = vld [vmem:[#allocation20 + $0x80] sm:$0xff]
    %v7057 = vld [vmem:[#allocation20 + $0x88] sm:$0xff]
    %v7058 = vld [vmem:[#allocation20 + $0x90] sm:$0xff]
    %v7059 = vld [vmem:[#allocation20 + $0x98] sm:$0xff]
    %v7060 = vld [vmem:[#allocation20 + $0xa0] sm:$0xff]
    %v7061 = vld [vmem:[#allocation20 + $0xa8] sm:$0xff]
    %v7062 = vld [vmem:[#allocation20 + $0xb0] sm:$0xff]
    %v7063 = vld [vmem:[#allocation20 + $0xb8] sm:$0xff]
    %v7064 = vld [vmem:[#allocation20 + $0xc0] sm:$0xff]
    %v7065 = vld [vmem:[#allocation20 + $0xc8] sm:$0xff]
    %v7066 = vld [vmem:[#allocation20 + $0xd0] sm:$0xff]
    %v7067 = vld [vmem:[#allocation20 + $0xd8] sm:$0xff]
    %v7068 = vld [vmem:[#allocation20 + $0xe0] sm:$0xff]
    %v7069 = vld [vmem:[#allocation20 + $0xe8] sm:$0xff]
    %v7070 = vld [vmem:[#allocation20 + $0xf0] sm:$0xff]
    %v7071 = vld [vmem:[#allocation20 + $0xf8] sm:$0xff]
    %v7072 = vld [vmem:[#allocation20 + $0x100] sm:$0xff]
    %v7073 = vld [vmem:[#allocation20 + $0x108] sm:$0xff]
    %v7074 = vld [vmem:[#allocation20 + $0x110] sm:$0xff]
    %v7075 = vld [vmem:[#allocation20 + $0x118] sm:$0xff]
    %v7076 = vld [vmem:[#allocation20 + $0x120] sm:$0xff]
    %v7077 = vld [vmem:[#allocation20 + $0x128] sm:$0xff]
    %v7078 = vld [vmem:[#allocation20 + $0x130] sm:$0xff]
    %v7079 = vld [vmem:[#allocation20 + $0x138] sm:$0xff]
    %v7080 = vld [vmem:[#allocation20 + $0x140] sm:$0xff]
    %v7081 = vld [vmem:[#allocation20 + $0x148] sm:$0xff]
    %v7082 = vld [vmem:[#allocation20 + $0x150] sm:$0xff]
    %v7083 = vld [vmem:[#allocation20 + $0x158] sm:$0xff]
    %v7084 = vld [vmem:[#allocation20 + $0x160] sm:$0xff]
    %v7085 = vld [vmem:[#allocation20 + $0x168] sm:$0xff]
    %v7086 = vld [vmem:[#allocation20 + $0x170] sm:$0xff]
    %v7087 = vld [vmem:[#allocation20 + $0x178] sm:$0xff]
    %v7088 = vld [vmem:[#allocation20 + $0x180] sm:$0xff]
    %v7089 = vld [vmem:[#allocation20 + $0x188] sm:$0xff]
    %v7090 = vld [vmem:[#allocation20 + $0x190] sm:$0xff]
    %v7091 = vld [vmem:[#allocation20 + $0x198] sm:$0xff]
    %v7092 = vld [vmem:[#allocation20 + $0x1a0] sm:$0xff]
    %v7093 = vld [vmem:[#allocation20 + $0x1a8] sm:$0xff]
    %v7094 = vld [vmem:[#allocation20 + $0x1b0] sm:$0xff]
    %v7095 = vld [vmem:[#allocation20 + $0x1b8] sm:$0xff]
    %v7096 = vld [vmem:[#allocation20 + $0x1c0] sm:$0xff]
    %v7097 = vld [vmem:[#allocation20 + $0x1c8] sm:$0xff]
    %v7098 = vld [vmem:[#allocation20 + $0x1d0] sm:$0xff]
    %v7099 = vld [vmem:[#allocation20 + $0x1d8] sm:$0xff]
    %v7100 = vld [vmem:[#allocation20 + $0x1e0] sm:$0xff]
    %v7101 = vld [vmem:[#allocation20 + $0x1e8] sm:$0xff]
    %v7102 = vld [vmem:[#allocation20 + $0x1f0] sm:$0xff]
    %v7103 = vld [vmem:[#allocation20 + $0x1f8] sm:$0xff]
    %v7104 = vld [vmem:[#allocation22] sm:$0xff]
    %v7106 = vperm.slane %v7104, 0
    %v7107 = vperm.slane %v7104, 1
    %v7108 = vperm.slane %v7104, 2
    %v7109 = vperm.slane %v7104, 3
    %v7110 = vperm.slane %v7104, 4
    %v7111 = vperm.slane %v7104, 5
    %v7112 = vperm.slane %v7104, 6
    %v7113 = vperm.slane %v7104, 7
    %v7186 = vunpack.c.l.b16 %v7040
    %v7187 = vunpack.c.h.b16 %v7040
    %v7188 = vunpack.c.l.b16 %v7041
    %v7189 = vunpack.c.h.b16 %v7041
    %v7190 = vunpack.c.l.b16 %v7042
    %v7191 = vunpack.c.h.b16 %v7042
    %v7192 = vunpack.c.l.b16 %v7043
    %v7193 = vunpack.c.h.b16 %v7043
    %v7194 = vunpack.c.l.b16 %v7044
    %v7195 = vunpack.c.h.b16 %v7044
    %v7196 = vunpack.c.l.b16 %v7045
    %v7197 = vunpack.c.h.b16 %v7045
    %v7198 = vunpack.c.l.b16 %v7046
    %v7199 = vunpack.c.h.b16 %v7046
    %v7200 = vunpack.c.l.b16 %v7047
    %v7201 = vunpack.c.h.b16 %v7047
    %v7202 = vunpack.c.l.b16 %v7048
    %v7203 = vunpack.c.h.b16 %v7048
    %v7204 = vunpack.c.l.b16 %v7049
    %v7205 = vunpack.c.h.b16 %v7049
    %v7206 = vunpack.c.l.b16 %v7050
    %v7207 = vunpack.c.h.b16 %v7050
    %v7208 = vunpack.c.l.b16 %v7051
    %v7209 = vunpack.c.h.b16 %v7051
    %v7210 = vunpack.c.l.b16 %v7052
    %v7211 = vunpack.c.h.b16 %v7052
    %v7212 = vunpack.c.l.b16 %v7053
    %v7213 = vunpack.c.h.b16 %v7053
    %v7214 = vunpack.c.l.b16 %v7054
    %v7215 = vunpack.c.h.b16 %v7054
    %v7216 = vunpack.c.l.b16 %v7055
    %v7217 = vunpack.c.h.b16 %v7055
    %v7218 = vunpack.c.l.b16 %v7056
    %v7219 = vunpack.c.h.b16 %v7056
    %v7220 = vunpack.c.l.b16 %v7057
    %v7221 = vunpack.c.h.b16 %v7057
    %v7222 = vunpack.c.l.b16 %v7058
    %v7223 = vunpack.c.h.b16 %v7058
    %v7224 = vunpack.c.l.b16 %v7059
    %v7225 = vunpack.c.h.b16 %v7059
    %v7226 = vunpack.c.l.b16 %v7060
    %v7227 = vunpack.c.h.b16 %v7060
    %v7228 = vunpack.c.l.b16 %v7061
    %v7229 = vunpack.c.h.b16 %v7061
    %v7230 = vunpack.c.l.b16 %v7062
    %v7231 = vunpack.c.h.b16 %v7062
    %v7232 = vunpack.c.l.b16 %v7063
    %v7233 = vunpack.c.h.b16 %v7063
    %v7234 = vunpack.c.l.b16 %v7064
    %v7235 = vunpack.c.h.b16 %v7064
    %v7236 = vunpack.c.l.b16 %v7065
    %v7237 = vunpack.c.h.b16 %v7065
    %v7238 = vunpack.c.l.b16 %v7066
    %v7239 = vunpack.c.h.b16 %v7066
    %v7240 = vunpack.c.l.b16 %v7067
    %v7241 = vunpack.c.h.b16 %v7067
    %v7242 = vunpack.c.l.b16 %v7068
    %v7243 = vunpack.c.h.b16 %v7068
    %v7244 = vunpack.c.l.b16 %v7069
    %v7245 = vunpack.c.h.b16 %v7069
    %v7246 = vunpack.c.l.b16 %v7070
    %v7247 = vunpack.c.h.b16 %v7070
    %v7248 = vunpack.c.l.b16 %v7071
    %v7249 = vunpack.c.h.b16 %v7071
    %v7250 = vunpack.c.l.b16 %v7072
    %v7251 = vunpack.c.h.b16 %v7072
    %v7252 = vunpack.c.l.b16 %v7073
    %v7253 = vunpack.c.h.b16 %v7073
    %v7254 = vunpack.c.l.b16 %v7074
    %v7255 = vunpack.c.h.b16 %v7074
    %v7256 = vunpack.c.l.b16 %v7075
    %v7257 = vunpack.c.h.b16 %v7075
    %v7258 = vunpack.c.l.b16 %v7076
    %v7259 = vunpack.c.h.b16 %v7076
    %v7260 = vunpack.c.l.b16 %v7077
    %v7261 = vunpack.c.h.b16 %v7077
    %v7262 = vunpack.c.l.b16 %v7078
    %v7263 = vunpack.c.h.b16 %v7078
    %v7264 = vunpack.c.l.b16 %v7079
    %v7265 = vunpack.c.h.b16 %v7079
    %v7266 = vunpack.c.l.b16 %v7080
    %v7267 = vunpack.c.h.b16 %v7080
    %v7268 = vunpack.c.l.b16 %v7081
    %v7269 = vunpack.c.h.b16 %v7081
    %v7270 = vunpack.c.l.b16 %v7082
    %v7271 = vunpack.c.h.b16 %v7082
    %v7272 = vunpack.c.l.b16 %v7083
    %v7273 = vunpack.c.h.b16 %v7083
    %v7274 = vunpack.c.l.b16 %v7084
    %v7275 = vunpack.c.h.b16 %v7084
    %v7276 = vunpack.c.l.b16 %v7085
    %v7277 = vunpack.c.h.b16 %v7085
    %v7278 = vunpack.c.l.b16 %v7086
    %v7279 = vunpack.c.h.b16 %v7086
    %v7280 = vunpack.c.l.b16 %v7087
    %v7281 = vunpack.c.h.b16 %v7087
    %v7282 = vunpack.c.l.b16 %v7088
    %v7283 = vunpack.c.h.b16 %v7088
    %v7284 = vunpack.c.l.b16 %v7089
    %v7285 = vunpack.c.h.b16 %v7089
    %v7286 = vunpack.c.l.b16 %v7090
    %v7287 = vunpack.c.h.b16 %v7090
    %v7288 = vunpack.c.l.b16 %v7091
    %v7289 = vunpack.c.h.b16 %v7091
    %v7290 = vunpack.c.l.b16 %v7092
    %v7291 = vunpack.c.h.b16 %v7092
    %v7292 = vunpack.c.l.b16 %v7093
    %v7293 = vunpack.c.h.b16 %v7093
    %v7294 = vunpack.c.l.b16 %v7094
    %v7295 = vunpack.c.h.b16 %v7094
    %v7296 = vunpack.c.l.b16 %v7095
    %v7297 = vunpack.c.h.b16 %v7095
    %v7298 = vunpack.c.l.b16 %v7096
    %v7299 = vunpack.c.h.b16 %v7096
    %v7300 = vunpack.c.l.b16 %v7097
    %v7301 = vunpack.c.h.b16 %v7097
    %v7302 = vunpack.c.l.b16 %v7098
    %v7303 = vunpack.c.h.b16 %v7098
    %v7304 = vunpack.c.l.b16 %v7099
    %v7305 = vunpack.c.h.b16 %v7099
    %v7306 = vunpack.c.l.b16 %v7100
    %v7307 = vunpack.c.h.b16 %v7100
    %v7308 = vunpack.c.l.b16 %v7101
    %v7309 = vunpack.c.h.b16 %v7101
    %v7310 = vunpack.c.l.b16 %v7102
    %v7311 = vunpack.c.h.b16 %v7102
    %v7312 = vunpack.c.l.b16 %v7103
    %v7313 = vunpack.c.h.b16 %v7103
    %v7314 = vpack.c.b16 %v7194, %v7186
    %v7315 = vpack.c.b16 %v7195, %v7187
    %v7316 = vpack.c.b16 %v7196, %v7188
    %v7317 = vpack.c.b16 %v7197, %v7189
    %v7318 = vpack.c.b16 %v7198, %v7190
    %v7319 = vpack.c.b16 %v7199, %v7191
    %v7320 = vpack.c.b16 %v7200, %v7192
    %v7321 = vpack.c.b16 %v7201, %v7193
    %v7322 = vpack.c.b16 %v7210, %v7202
    %v7323 = vpack.c.b16 %v7211, %v7203
    %v7324 = vpack.c.b16 %v7212, %v7204
    %v7325 = vpack.c.b16 %v7213, %v7205
    %v7326 = vpack.c.b16 %v7214, %v7206
    %v7327 = vpack.c.b16 %v7215, %v7207
    %v7328 = vpack.c.b16 %v7216, %v7208
    %v7329 = vpack.c.b16 %v7217, %v7209
    %v7330 = vpack.c.b16 %v7226, %v7218
    %v7331 = vpack.c.b16 %v7227, %v7219
    %v7332 = vpack.c.b16 %v7228, %v7220
    %v7333 = vpack.c.b16 %v7229, %v7221
    %v7334 = vpack.c.b16 %v7230, %v7222
    %v7335 = vpack.c.b16 %v7231, %v7223
    %v7336 = vpack.c.b16 %v7232, %v7224
    %v7337 = vpack.c.b16 %v7233, %v7225
    %v7338 = vpack.c.b16 %v7242, %v7234
    %v7339 = vpack.c.b16 %v7243, %v7235
    %v7340 = vpack.c.b16 %v7244, %v7236
    %v7341 = vpack.c.b16 %v7245, %v7237
    %v7342 = vpack.c.b16 %v7246, %v7238
    %v7343 = vpack.c.b16 %v7247, %v7239
    %v7344 = vpack.c.b16 %v7248, %v7240
    %v7345 = vpack.c.b16 %v7249, %v7241
    %v7346 = vpack.c.b16 %v7258, %v7250
    %v7347 = vpack.c.b16 %v7259, %v7251
    %v7348 = vpack.c.b16 %v7260, %v7252
    %v7349 = vpack.c.b16 %v7261, %v7253
    %v7350 = vpack.c.b16 %v7262, %v7254
    %v7351 = vpack.c.b16 %v7263, %v7255
    %v7352 = vpack.c.b16 %v7264, %v7256
    %v7353 = vpack.c.b16 %v7265, %v7257
    %v7354 = vpack.c.b16 %v7274, %v7266
    %v7355 = vpack.c.b16 %v7275, %v7267
    %v7356 = vpack.c.b16 %v7276, %v7268
    %v7357 = vpack.c.b16 %v7277, %v7269
    %v7358 = vpack.c.b16 %v7278, %v7270
    %v7359 = vpack.c.b16 %v7279, %v7271
    %v7360 = vpack.c.b16 %v7280, %v7272
    %v7361 = vpack.c.b16 %v7281, %v7273
    %v7362 = vpack.c.b16 %v7290, %v7282
    %v7363 = vpack.c.b16 %v7291, %v7283
    %v7364 = vpack.c.b16 %v7292, %v7284
    %v7365 = vpack.c.b16 %v7293, %v7285
    %v7366 = vpack.c.b16 %v7294, %v7286
    %v7367 = vpack.c.b16 %v7295, %v7287
    %v7368 = vpack.c.b16 %v7296, %v7288
    %v7369 = vpack.c.b16 %v7297, %v7289
    %v7370 = vpack.c.b16 %v7306, %v7298
    %v7371 = vpack.c.b16 %v7307, %v7299
    %v7372 = vpack.c.b16 %v7308, %v7300
    %v7373 = vpack.c.b16 %v7309, %v7301
    %v7374 = vpack.c.b16 %v7310, %v7302
    %v7375 = vpack.c.b16 %v7311, %v7303
    %v7376 = vpack.c.b16 %v7312, %v7304
    %v7377 = vpack.c.b16 %v7313, %v7305
    %7442 = vmatpush.bf16.msra.mxu0 %v7370
    %7443 = vmatpush.bf16.msra.mxu0 %v7362
    %7444 = vmatpush.bf16.msra.mxu0 %v7354
    %7445 = vmatpush.bf16.msra.mxu0 %v7346
    %7446 = vmatpush.bf16.msra.mxu0 %v7338
    %7447 = vmatpush.bf16.msra.mxu0 %v7330
    %7448 = vmatpush.bf16.msra.mxu0 %v7322
    %7449 = vmatpush.bf16.msra.mxu0 %v7314
    %7450 = vmatmul.bf16.gmra.mxu0 %v7039
    %v7451 = vpop.f32.mrf.mxu0
    %v7452 = vadd.f32 %v7106, %v7451
    %v7453 = vpop.f32.mrf.mxu0
    %7454 = vdwg.mxu0
    %7455 = vmatpush.bf16.msra.mxu0 %v7371
    %7456 = vmatpush.bf16.msra.mxu0 %v7363
    %7457 = vmatpush.bf16.msra.mxu0 %v7355
    %7458 = vmatpush.bf16.msra.mxu0 %v7347
    %7459 = vmatpush.bf16.msra.mxu0 %v7339
    %7460 = vmatpush.bf16.msra.mxu0 %v7331
    %7461 = vmatpush.bf16.msra.mxu0 %v7323
    %7462 = vmatpush.bf16.msra.mxu0 %v7315
    %7463 = vmatmul.bf16.gmra.mxu0 %v7039
    %v7464 = vpop.f32.mrf.mxu0
    %v7465 = vadd.f32 %v7107, %v7464
    %v7466 = vpop.f32.mrf.mxu0
    %7467 = vdwg.mxu0
    %7468 = vmatpush.bf16.msra.mxu0 %v7372
    %7469 = vmatpush.bf16.msra.mxu0 %v7364
    %7470 = vmatpush.bf16.msra.mxu0 %v7356
    %7471 = vmatpush.bf16.msra.mxu0 %v7348
    %7472 = vmatpush.bf16.msra.mxu0 %v7340
    %7473 = vmatpush.bf16.msra.mxu0 %v7332
    %7474 = vmatpush.bf16.msra.mxu0 %v7324
    %7475 = vmatpush.bf16.msra.mxu0 %v7316
    %7476 = vmatmul.bf16.gmra.mxu0 %v7039
    %v7477 = vpop.f32.mrf.mxu0
    %v7478 = vadd.f32 %v7108, %v7477
    %v7479 = vpop.f32.mrf.mxu0
    %7480 = vdwg.mxu0
    %7481 = vmatpush.bf16.msra.mxu0 %v7373
    %7482 = vmatpush.bf16.msra.mxu0 %v7365
    %7483 = vmatpush.bf16.msra.mxu0 %v7357
    %7484 = vmatpush.bf16.msra.mxu0 %v7349
    %7485 = vmatpush.bf16.msra.mxu0 %v7341
    %7486 = vmatpush.bf16.msra.mxu0 %v7333
    %7487 = vmatpush.bf16.msra.mxu0 %v7325
    %7488 = vmatpush.bf16.msra.mxu0 %v7317
    %7489 = vmatmul.bf16.gmra.mxu0 %v7039
    %v7490 = vpop.f32.mrf.mxu0
    %v7491 = vadd.f32 %v7109, %v7490
    %v7492 = vpop.f32.mrf.mxu0
    %7493 = vdwg.mxu0
    %7494 = vmatpush.bf16.msra.mxu0 %v7374
    %7495 = vmatpush.bf16.msra.mxu0 %v7366
    %7496 = vmatpush.bf16.msra.mxu0 %v7358
    %7497 = vmatpush.bf16.msra.mxu0 %v7350
    %7498 = vmatpush.bf16.msra.mxu0 %v7342
    %7499 = vmatpush.bf16.msra.mxu0 %v7334
    %7500 = vmatpush.bf16.msra.mxu0 %v7326
    %7501 = vmatpush.bf16.msra.mxu0 %v7318
    %7502 = vmatmul.bf16.gmra.mxu0 %v7039
    %v7503 = vpop.f32.mrf.mxu0
    %v7504 = vadd.f32 %v7110, %v7503
    %v7505 = vpop.f32.mrf.mxu0
    %7506 = vdwg.mxu0
    %7507 = vmatpush.bf16.msra.mxu0 %v7375
    %7508 = vmatpush.bf16.msra.mxu0 %v7367
    %7509 = vmatpush.bf16.msra.mxu0 %v7359
    %7510 = vmatpush.bf16.msra.mxu0 %v7351
    %7511 = vmatpush.bf16.msra.mxu0 %v7343
    %7512 = vmatpush.bf16.msra.mxu0 %v7335
    %7513 = vmatpush.bf16.msra.mxu0 %v7327
    %7514 = vmatpush.bf16.msra.mxu0 %v7319
    %7515 = vmatmul.bf16.gmra.mxu0 %v7039
    %v7516 = vpop.f32.mrf.mxu0
    %v7517 = vadd.f32 %v7111, %v7516
    %v7518 = vpop.f32.mrf.mxu0
    %7519 = vdwg.mxu0
    %7520 = vmatpush.bf16.msra.mxu0 %v7376
    %7521 = vmatpush.bf16.msra.mxu0 %v7368
    %7522 = vmatpush.bf16.msra.mxu0 %v7360
    %7523 = vmatpush.bf16.msra.mxu0 %v7352
    %7524 = vmatpush.bf16.msra.mxu0 %v7344
    %7525 = vmatpush.bf16.msra.mxu0 %v7336
    %7526 = vmatpush.bf16.msra.mxu0 %v7328
    %7527 = vmatpush.bf16.msra.mxu0 %v7320
    %7528 = vmatmul.bf16.gmra.mxu0 %v7039
    %v7529 = vpop.f32.mrf.mxu0
    %v7530 = vadd.f32 %v7112, %v7529
    %v7531 = vpop.f32.mrf.mxu0
    %7532 = vdwg.mxu0
    %7533 = vmatpush.bf16.msra.mxu0 %v7377
    %7534 = vmatpush.bf16.msra.mxu0 %v7369
    %7535 = vmatpush.bf16.msra.mxu0 %v7361
    %7536 = vmatpush.bf16.msra.mxu0 %v7353
    %7537 = vmatpush.bf16.msra.mxu0 %v7345
    %7538 = vmatpush.bf16.msra.mxu0 %v7337
    %7539 = vmatpush.bf16.msra.mxu0 %v7329
    %7540 = vmatpush.bf16.msra.mxu0 %v7321
    %7541 = vmatmul.bf16.gmra.mxu0 %v7039
    %v7542 = vpop.f32.mrf.mxu0
    %v7543 = vadd.f32 %v7113, %v7542
    %v7544 = vpop.f32.mrf.mxu0
    %7545 = vdwg.mxu0
    %v7546 = vmax.f32 %v7452, 0.0
    %v7547 = vmax.f32 %v7465, 0.0
    %v7548 = vmax.f32 %v7478, 0.0
    %v7549 = vmax.f32 %v7491, 0.0
    %v7550 = vmax.f32 %v7504, 0.0
    %v7551 = vmax.f32 %v7517, 0.0
    %v7552 = vmax.f32 %v7530, 0.0
    %v7553 = vmax.f32 %v7543, 0.0
    %7554 = vst [vmem:[#allocation23] sm:$0xff] %v7546
    %7555 = vst [vmem:[#allocation23 + $0x8] sm:$0xff] %v7547
    %7556 = vst [vmem:[#allocation23 + $0x10] sm:$0xff] %v7548
    %7557 = vst [vmem:[#allocation23 + $0x18] sm:$0xff] %v7549
    %7558 = vst [vmem:[#allocation23 + $0x20] sm:$0xff] %v7550
    %7559 = vst [vmem:[#allocation23 + $0x28] sm:$0xff] %v7551
    %7560 = vst [vmem:[#allocation23 + $0x30] sm:$0xff] %v7552
    %7561 = vst [vmem:[#allocation23 + $0x38] sm:$0xff] %v7553
    // Predicated region
    $region106: #{tpu_custom_call.1} parent=1 // pred_check
      _
    $region107: #{tpu_custom_call.1} parent=1 // pred_check_branch
      %7563 = sbr.rel (0) target = $region109
    $region108: #{tpu_custom_call.1} parent=1 // pred_region
      %7565 = vsyncadd [#allocation4], 0
      %s7567 = sshll.u32 [#allocation23], 4
      %s7568 = int_to_ptr.vmem [resolvable:$true] %s7567
      %s7569 = sshll.u32 %s13, 4
      %s7570 = int_to_ptr.hbm [resolvable:$true] %s7569
      %7572 = dma.vmem_to_hbm [thread:$0]  %s7568, 1024, %s7570, [#allocation4]
    $region109: #{tpu_custom_call.1} parent=1 // pred_fallthru
      _
    // Predicated region
    $region110: #{tpu_custom_call.1} parent=1 // pred_check
      _
    $region111: #{tpu_custom_call.1} parent=1 // pred_check_branch
      %7574 = sbr.rel (0) target = $region113
    $region112: #{tpu_custom_call.1} parent=1 // pred_region
      %7576 = dma.done [#allocation4], 1024
    $region113: #{tpu_custom_call.1} parent=1 // pred_fallthru
      _
    %7577 = vsyncpa [#allocation3], 1
    %7578 = vsyncpa [#allocation6], 1
    %7579 = vsyncpa [#allocation9], 1
    %7580 = vsyncpa [#allocation12], 1
    %7581 = vsyncpa [#allocation15], 1
    %7582 = vsyncpa [#allocation18], 1
    %7583 = vsyncpa [#allocation21], 1
    %7584 = vsyncpa [#allocation4], 1

</llo_original>
